<compile_context>
chip_gen: v7x
topology: tpu7x:2x2x1
jax: 0.10.0
libtpu: 0.0.40
codegen_flags: <defaults>
</compile_context>

<pallas_src>
import math
import jax
import jax.numpy as jnp
from jax.experimental import pallas as pl
from jax.experimental.pallas import tpu as pltpu

# ----------------------------- model config ---------------------------------
D_MODEL = 32
N_LAYER = 2
VOCAB = 64
EXPAND = 2
D_INNER = EXPAND * D_MODEL          # 64
D_STATE = 16
D_CONV = 4
DT_RANK = math.ceil(D_MODEL / 16)   # 2
EPS = 1e-5

BATCH = 2
SEQLEN = 8

HIGH = jax.lax.Precision.HIGHEST


# ----------------------------- shared math helpers ---------------------------
def _layernorm(x, w, b, eps=EPS):
    mu = jnp.mean(x, axis=-1, keepdims=True)
    var = jnp.mean(jnp.square(x - mu), axis=-1, keepdims=True)
    return (x - mu) * jax.lax.rsqrt(var + eps) * w + b


def _silu(x):
    return x * jax.nn.sigmoid(x)


def _softplus(x):
    # matches torch.nn.functional.softplus (threshold=20)
    return jnp.where(x > 20.0, x, jnp.log1p(jnp.exp(x)))


# ----------------------------- fused forward kernel --------------------------
def build_fused_forward(batch, seqlen):
    bl = batch * seqlen

    def kernel(hs0_ref, shift_ref,
               ln_w_ref, ln_b_ref, w_x_ref, w_z_ref, conv_w_ref, conv_b_ref,
               w_B_ref, w_C_ref, w_dt_ref, dt_b_ref, A_logT_ref, Dp_ref, w_out_ref,
               nf_w_ref, nf_b_ref, embT_ref,
               logits_ref,
               hid_sc, res_sc, y_sc):
        layer = pl.program_id(0)

        # first layer: residual=None -> 0, hidden = embeddings
        @pl.when(layer == 0)
        def _():
            hid_sc[...] = hs0_ref[...]
            res_sc[...] = jnp.zeros_like(res_sc)

        # Block: residual = hidden + residual ; hidden = LayerNorm(residual)
        residual = hid_sc[...] + res_sc[...]                  # (BL, D)
        xn = _layernorm(residual, ln_w_ref[0], ln_b_ref[0])

        # in_proj split into x / z (no bias) -> no mid-vreg slicing
        x = jnp.dot(xn, w_x_ref[0], preferred_element_type=jnp.float32)  # (BL, d_in)
        z = jnp.dot(xn, w_z_ref[0], preferred_element_type=jnp.float32)  # (BL, d_in)

        # causal depthwise conv along seq: tap K-1 hits x[t], tap K-1-s hits x[t-s].
        # Shifts are realized as constant banded matrices on the (idle) MXU, which is
        # batch-boundary safe and avoids concatenate/sublane-copy materializations.
        cw = conv_w_ref[0]                                    # (D_CONV, d_inner)
        acc = x * cw[D_CONV - 1][None, :]
        for s in range(1, D_CONV):
            shifted = jnp.dot(shift_ref[s - 1], x,
                              preferred_element_type=jnp.float32)
            acc = acc + shifted * cw[D_CONV - 1 - s][None, :]
        xc = _silu(acc + conv_b_ref[0])                       # (BL, d_inner)

        # x_proj split into B / C; dt_proj folded into the dt columns of x_proj
        Bm = jnp.dot(xc, w_B_ref[0], preferred_element_type=jnp.float32)   # (BL, N)
        Cm = jnp.dot(xc, w_C_ref[0], preferred_element_type=jnp.float32)   # (BL, N)
        delta = _softplus(
            jnp.dot(xc, w_dt_ref[0], preferred_element_type=jnp.float32)
            + dt_b_ref[0])                                                 # (BL, d_inner)

        # discretize with a lane-dense (D_STATE, D_INNER)-last layout (64 lanes)
        AT = -jnp.exp(A_logT_ref[0])                          # (d_state, d_inner)
        dA = jnp.exp(delta[:, None, :] * AT[None, :, :])      # (BL, d_state, d_inner)
        dBu = Bm[:, :, None] * (delta * xc)[:, None, :]       # (BL, d_state, d_inner)
        CmS = Cm[:, :, None]                                  # (BL, d_state, 1)

        # sequential selective scan over time (tiny static trip count -> unrolled).
        # TODO(synk): for long seqlen switch to lax.fori_loop over VMEM-resident
        #             dA/dBu scratch buffers instead of full unrolling.
        h = [jnp.zeros((D_STATE, D_INNER), jnp.float32) for _ in range(batch)]
        for t in range(seqlen):
            for b in range(batch):
                r = b * seqlen + t
                hb = dA[r] * h[b] + dBu[r]                    # (d_state, d_inner)
                h[b] = hb
                y_sc[r, :] = jnp.sum(hb * CmS[r], axis=0)     # (d_inner,)

        y = y_sc[...]                                         # (BL, d_inner)
        y = y + xc * Dp_ref[0]                                # skip term D * u
        y = y * _silu(z)                                      # gate
        out = jnp.dot(y, w_out_ref[0], preferred_element_type=jnp.float32)  # (BL, D)

        hid_sc[...] = out
        res_sc[...] = residual

        # last layer: final add + LayerNorm + tied lm_head, single HBM store
        @pl.when(layer == pl.num_programs(0) - 1)
        def _():
            rf = out + residual
            xf = _layernorm(rf, nf_w_ref[...], nf_b_ref[...])
            logits_ref[...] = jnp.dot(xf, embT_ref[...],
                                      preferred_element_type=jnp.float32)

    def full(shape):
        nd = len(shape)
        return pl.BlockSpec(shape, lambda l, _nd=nd: (0,) * _nd)

    def per_layer(*rest):
        n = len(rest)
        return pl.BlockSpec((1,) + tuple(rest),
                            lambda l, _n=n: (l,) + (0,) * _n)

    in_specs = [
        full((bl, D_MODEL)),                    # embedded tokens
        full((D_CONV - 1, bl, bl)),             # conv shift matrices
        per_layer(1, D_MODEL),                  # ln_w
        per_layer(1, D_MODEL),                  # ln_b
        per_layer(D_MODEL, D_INNER),            # w_x   (in_proj, x half, transposed)
        per_layer(D_MODEL, D_INNER),            # w_z   (in_proj, z half, transposed)
        per_layer(D_CONV, D_INNER),             # conv_w (transposed)
        per_layer(1, D_INNER),                  # conv_b
        per_layer(D_INNER, D_STATE),            # w_B
        per_layer(D_INNER, D_STATE),            # w_C
        per_layer(D_INNER, D_INNER),            # w_dt  (x_proj_dt^T @ dt_proj^T)
        per_layer(1, D_INNER),                  # dt_bias
        per_layer(D_STATE, D_INNER),            # A_log^T
        per_layer(1, D_INNER),                  # D
        per_layer(D_INNER, D_MODEL),            # w_out (out_proj transposed)
        full((1, D_MODEL)),                     # norm_f weight
        full((1, D_MODEL)),                     # norm_f bias
        full((D_MODEL, VOCAB)),                 # embedding^T (tied lm_head)
    ]

    return pl.pallas_call(
        kernel,
        out_shape=jax.ShapeDtypeStruct((bl, VOCAB), jnp.float32),
        grid_spec=pltpu.PrefetchScalarGridSpec(
            num_scalar_prefetch=0,
            grid=(N_LAYER,),
            in_specs=in_specs,
            out_specs=full((bl, VOCAB)),
            scratch_shapes=[pltpu.VMEM((bl, D_MODEL), jnp.float32),   # hidden
                            pltpu.VMEM((bl, D_MODEL), jnp.float32),   # residual
                            pltpu.VMEM((bl, D_INNER), jnp.float32)],  # scan output y
        ),
        compiler_params=pltpu.CompilerParams(dimension_semantics=("arbitrary",)),
    )


def make_shift_mats(batch, seqlen):
    """S[s-1] @ x shifts rows down by s within each length-`seqlen` segment."""
    n = batch * seqlen
    r = jnp.arange(n)[:, None]
    q = jnp.arange(n)[None, :]
    mats = [((q == r - s) & ((r % seqlen) >= s)).astype(jnp.float32)
            for s in range(1, D_CONV)]
    return jnp.stack(mats)                      # (D_CONV - 1, n, n)


# ----------------------------- parameter init (PyTorch layout) ---------------
def _uniform(key, shape, fan_in):
    bound = 1.0 / math.sqrt(fan_in)
    return jax.random.uniform(key, shape, jnp.float32, -bound, bound)


def init_raw_params(key):
    k_emb, k_layers = jax.random.split(key)
    raw = {
        "embedding": 0.02 * jax.random.normal(k_emb, (VOCAB, D_MODEL), jnp.float32),
        "norm_f_w": jnp.ones((D_MODEL,), jnp.float32),
        "norm_f_b": jnp.zeros((D_MODEL,), jnp.float32),
        "layers": [],
    }
    layer_keys = jax.random.split(k_layers, N_LAYER)
    dt_min, dt_max = 1e-3, 1e-1
    for i in range(N_LAYER):
        ks = jax.random.split(layer_keys[i], 7)
        in_proj = _uniform(ks[0], (2 * D_INNER, D_MODEL), D_MODEL)
        conv_w = _uniform(ks[1], (D_INNER, D_CONV), D_CONV)   # squeezed (C,1,K)->(C,K)
        conv_b = _uniform(ks[2], (D_INNER,), D_CONV)
        x_proj = _uniform(ks[3], (DT_RANK + 2 * D_STATE, D_INNER), D_INNER)
        dt_init_std = DT_RANK ** -0.5
        dt_w = jax.random.uniform(ks[4], (D_INNER, DT_RANK), jnp.float32,
                                  -dt_init_std, dt_init_std)
        dt = jnp.exp(jax.random.uniform(ks[5], (D_INNER,), jnp.float32)
                     * (math.log(dt_max) - math.log(dt_min)) + math.log(dt_min))
        dt = jnp.clip(dt, 1e-4, None)
        dt_b = dt + jnp.log(-jnp.expm1(-dt))                  # inverse softplus
        A_log = jnp.log(jnp.tile(
            jnp.arange(1, D_STATE + 1, dtype=jnp.float32)[None, :], (D_INNER, 1)))
        D_param = jnp.ones((D_INNER,), jnp.float32)
        out_proj = _uniform(ks[6], (D_MODEL, D_INNER), D_INNER) / math.sqrt(N_LAYER)
        raw["layers"].append(dict(
            ln_w=jnp.ones((D_MODEL,), jnp.float32),
            ln_b=jnp.zeros((D_MODEL,), jnp.float32),
            in_proj=in_proj, conv_w=conv_w, conv_b=conv_b, x_proj=x_proj,
            dt_w=dt_w, dt_b=dt_b, A_log=A_log, D=D_param, out_proj=out_proj))
    return raw


def prepare_kernel_params(raw):
    """Split / transpose / fuse weights into lane-friendly, layer-stacked arrays."""
    layers = raw["layers"]

    def stack(fn):
        return jnp.stack([fn(l) for l in layers])

    kp = dict(
        ln_w=stack(lambda l: l["ln_w"][None, :]),
        ln_b=stack(lambda l: l["ln_b"][None, :]),
        w_x=stack(lambda l: l["in_proj"][:D_INNER].T),
        w_z=stack(lambda l: l["in_proj"][D_INNER:].T),
        conv_w=stack(lambda l: l["conv_w"].T),                          # (K, d_inner)
        conv_b=stack(lambda l: l["conv_b"][None, :]),
        w_B=stack(lambda l: l["x_proj"][DT_RANK:DT_RANK + D_STATE].T),
        w_C=stack(lambda l: l["x_proj"][DT_RANK + D_STATE:].T),
        # fold dt_proj into the dt columns of x_proj: delta_pre = xc @ W_dt + dt_bias
        w_dt=stack(lambda l: jnp.dot(l["x_proj"][:DT_RANK].T, l["dt_w"].T,
                                     precision=HIGH)),
        dt_b=stack(lambda l: l["dt_b"][None, :]),
        A_logT=stack(lambda l: l["A_log"].T),                           # (N, d_inner)
        Dp=stack(lambda l: l["D"][None, :]),
        w_out=stack(lambda l: l["out_proj"].T),
        norm_f_w=raw["norm_f_w"][None, :],
        norm_f_b=raw["norm_f_b"][None, :],
        embedding=raw["embedding"],
        embT=raw["embedding"].T,
    )
    return kp


# ----------------------------- forward (Pallas) -------------------------------
def mamba_lm_forward(input_ids, kp):
    batch, seqlen = input_ids.shape
    hidden = jnp.take(kp["embedding"], input_ids, axis=0)      # (B, L, D)
    hidden = hidden.reshape(batch * seqlen, D_MODEL)
    shift = make_shift_mats(batch, seqlen)
    call = build_fused_forward(batch, seqlen)
    logits = call(hidden, shift,
                  kp["ln_w"], kp["ln_b"], kp["w_x"], kp["w_z"],
                  kp["conv_w"], kp["conv_b"], kp["w_B"], kp["w_C"],
                  kp["w_dt"], kp["dt_b"], kp["A_logT"], kp["Dp"], kp["w_out"],
                  kp["norm_f_w"], kp["norm_f_b"], kp["embT"])
    return logits.reshape(batch, seqlen, VOCAB)


# ----------------------------- pure-JAX reference (original layout) ----------
def reference_forward(input_ids, raw):
    B, L = input_ids.shape
    hidden = jnp.take(raw["embedding"], input_ids, axis=0)     # (B, L, D)
    residual = jnp.zeros_like(hidden)
    for lyr in raw["layers"]:
        residual = hidden + residual
        xn = _layernorm(residual, lyr["ln_w"], lyr["ln_b"])
        xz = jnp.einsum("bld,ed->ble", xn, lyr["in_proj"], precision=HIGH)
        xi, z = xz[..., :D_INNER], xz[..., D_INNER:]
        xp = jnp.pad(xi, ((0, 0), (D_CONV - 1, 0), (0, 0)))
        conv = sum(xp[:, k:k + L, :] * lyr["conv_w"][:, k][None, None, :]
                   for k in range(D_CONV))
        xc = _silu(conv + lyr["conv_b"][None, None, :])
        x_dbl = jnp.einsum("blc,ec->ble", xc, lyr["x_proj"], precision=HIGH)
        dt_low = x_dbl[..., :DT_RANK]
        Bm = x_dbl[..., DT_RANK:DT_RANK + D_STATE]
        Cm = x_dbl[..., DT_RANK + D_STATE:]
        dt = jnp.einsum("blr,cr->blc", dt_low, lyr["dt_w"], precision=HIGH)
        delta = _softplus(dt + lyr["dt_b"][None, None, :])
        A = -jnp.exp(lyr["A_log"])                              # (C, N)
        dA = jnp.exp(delta[..., None] * A[None, None])
        dBu = delta[..., None] * Bm[:, :, None, :] * xc[..., None]
        h = jnp.zeros((B, D_INNER, D_STATE), jnp.float32)
        ys = []
        for t in range(L):
            h = dA[:, t] * h + dBu[:, t]
            ys.append(jnp.sum(h * Cm[:, t, None, :], axis=-1))
        y = jnp.stack(ys, axis=1)
        y = y + xc * lyr["D"][None, None, :]
        y = y * _silu(z)
        hidden = jnp.einsum("blc,dc->bld", y, lyr["out_proj"], precision=HIGH)
    residual = hidden + residual
    hidden = _layernorm(residual, raw["norm_f_w"], raw["norm_f_b"])
    return jnp.einsum("bld,vd->blv", hidden, raw["embedding"], precision=HIGH)


# ----------------------------- main -------------------------------------------
if __name__ == "__main__":
    root = jax.random.PRNGKey(0)
    k_params, k_ids = jax.random.split(root)
    raw = init_raw_params(k_params)
    kparams = prepare_kernel_params(raw)
    input_ids = jax.random.randint(k_ids, (BATCH, SEQLEN), 0, VOCAB, dtype=jnp.int32)

    logits = jax.jit(mamba_lm_forward)(input_ids, kparams)
    logits = jax.block_until_ready(logits)

    assert logits.shape == (BATCH, SEQLEN, VOCAB) and logits.dtype == jnp.float32
    assert bool(jnp.all(jnp.isfinite(logits)))

    ref = reference_forward(input_ids, raw)
    err = float(jnp.max(jnp.abs(logits - ref)))
    assert err < 2e-3, f"mismatch vs reference: max abs err {err}"
    print("KERNEL_OK")
</pallas_src>

<mosaic_0001>
module attributes {stable_mosaic.version = 11 : i64} {
  func.func @kernel(%arg0: i32, %arg1: memref<16x32xf32, #tpu.memory_space<vmem>>, %arg2: memref<3x16x16xf32, #tpu.memory_space<vmem>>, %arg3: memref<1x1x32xf32, #tpu.memory_space<vmem>>, %arg4: memref<1x1x32xf32, #tpu.memory_space<vmem>>, %arg5: memref<1x32x64xf32, #tpu.memory_space<vmem>>, %arg6: memref<1x32x64xf32, #tpu.memory_space<vmem>>, %arg7: memref<1x4x64xf32, #tpu.memory_space<vmem>>, %arg8: memref<1x1x64xf32, #tpu.memory_space<vmem>>, %arg9: memref<1x64x16xf32, #tpu.memory_space<vmem>>, %arg10: memref<1x64x16xf32, #tpu.memory_space<vmem>>, %arg11: memref<1x64x64xf32, #tpu.memory_space<vmem>>, %arg12: memref<1x1x64xf32, #tpu.memory_space<vmem>>, %arg13: memref<1x16x64xf32, #tpu.memory_space<vmem>>, %arg14: memref<1x1x64xf32, #tpu.memory_space<vmem>>, %arg15: memref<1x64x32xf32, #tpu.memory_space<vmem>>, %arg16: memref<1x32xf32, #tpu.memory_space<vmem>>, %arg17: memref<1x32xf32, #tpu.memory_space<vmem>>, %arg18: memref<32x64xf32, #tpu.memory_space<vmem>>, %arg19: memref<16x64xf32, #tpu.memory_space<vmem>>, %arg20: memref<16x32xf32, #tpu.memory_space<vmem>>, %arg21: memref<16x32xf32, #tpu.memory_space<vmem>>, %arg22: memref<16x64xf32, #tpu.memory_space<vmem>>) attributes {dimension_semantics = [#tpu.dimension_semantics<arbitrary>], iteration_bounds = array<i64: 2>, scalar_prefetch = 0 : i64, scratch_operands = 3 : i64, tpu.core_type = #tpu.core_type<tc>, window_params = [{pipeline_mode = #tpu.pipeline_mode<synchronous>, transform_indices = @transform_0, window_bounds = array<i64: 16, 32>}, {pipeline_mode = #tpu.pipeline_mode<synchronous>, transform_indices = @transform_1, window_bounds = array<i64: 3, 16, 16>}, {transform_indices = @transform_2, window_bounds = array<i64: 1, 1, 32>}, {transform_indices = @transform_3, window_bounds = array<i64: 1, 1, 32>}, {transform_indices = @transform_4, window_bounds = array<i64: 1, 32, 64>}, {transform_indices = @transform_5, window_bounds = array<i64: 1, 32, 64>}, {transform_indices = @transform_6, window_bounds = array<i64: 1, 4, 64>}, {transform_indices = @transform_7, window_bounds = array<i64: 1, 1, 64>}, {transform_indices = @transform_8, window_bounds = array<i64: 1, 64, 16>}, {transform_indices = @transform_9, window_bounds = array<i64: 1, 64, 16>}, {transform_indices = @transform_10, window_bounds = array<i64: 1, 64, 64>}, {transform_indices = @transform_11, window_bounds = array<i64: 1, 1, 64>}, {transform_indices = @transform_12, window_bounds = array<i64: 1, 16, 64>}, {transform_indices = @transform_13, window_bounds = array<i64: 1, 1, 64>}, {transform_indices = @transform_14, window_bounds = array<i64: 1, 64, 32>}, {pipeline_mode = #tpu.pipeline_mode<synchronous>, transform_indices = @transform_15, window_bounds = array<i64: 1, 32>}, {pipeline_mode = #tpu.pipeline_mode<synchronous>, transform_indices = @transform_16, window_bounds = array<i64: 1, 32>}, {pipeline_mode = #tpu.pipeline_mode<synchronous>, transform_indices = @transform_17, window_bounds = array<i64: 32, 64>}, {pipeline_mode = #tpu.pipeline_mode<synchronous>, transform_indices = @transform_18, window_bounds = array<i64: 16, 64>}]} {
    %c0_i32 = arith.constant 0 : i32
    %0 = arith.cmpi eq, %arg0, %c0_i32 : i32
    %1 = arith.extui %0 : i1 to i32
    %c0_i32_0 = arith.constant 0 : i32
    %2 = arith.cmpi ne, %1, %c0_i32_0 : i32
    scf.if %2 {
      %c0_111 = arith.constant 0 : index
      %c0_112 = arith.constant 0 : index
      %365 = vector.load %arg1[%c0_111, %c0_112] : memref<16x32xf32, #tpu.memory_space<vmem>>, vector<16x32xf32>
      %c0_113 = arith.constant 0 : index
      %c0_114 = arith.constant 0 : index
      %366 = vector.load %arg20[%c0_113, %c0_114] : memref<16x32xf32, #tpu.memory_space<vmem>>, vector<16x32xf32>
      tpu.vector_store %arg20[%c0_113, %c0_114], %365 {strides = array<i32>} : memref<16x32xf32, #tpu.memory_space<vmem>>, vector<16x32xf32>,
      %cst_115 = arith.constant 0.000000e+00 : f32
      %367 = vector.broadcast %cst_115 : f32 to vector<16x32xf32>
      %c0_116 = arith.constant 0 : index
      %c0_117 = arith.constant 0 : index
      %368 = vector.load %arg21[%c0_116, %c0_117] : memref<16x32xf32, #tpu.memory_space<vmem>>, vector<16x32xf32>
      tpu.vector_store %arg21[%c0_116, %c0_117], %367 {strides = array<i32>} : memref<16x32xf32, #tpu.memory_space<vmem>>, vector<16x32xf32>,
    } else {
    }
    %c0 = arith.constant 0 : index
    %c0_1 = arith.constant 0 : index
    %3 = vector.load %arg20[%c0, %c0_1] : memref<16x32xf32, #tpu.memory_space<vmem>>, vector<16x32xf32>
    %c0_2 = arith.constant 0 : index
    %c0_3 = arith.constant 0 : index
    %4 = vector.load %arg21[%c0_2, %c0_3] : memref<16x32xf32, #tpu.memory_space<vmem>>, vector<16x32xf32>
    %5 = arith.addf %3, %4 : vector<16x32xf32>
    %c0_4 = arith.constant 0 : index
    %c0_5 = arith.constant 0 : index
    %c0_6 = arith.constant 0 : index
    %6 = vector.load %arg3[%c0_4, %c0_5, %c0_6] : memref<1x1x32xf32, #tpu.memory_space<vmem>>, vector<1x1x32xf32>
    %7 = vector.shape_cast %6 : vector<1x1x32xf32> to vector<1x32xf32>
    %c0_7 = arith.constant 0 : index
    %c0_8 = arith.constant 0 : index
    %c0_9 = arith.constant 0 : index
    %8 = vector.load %arg4[%c0_7, %c0_8, %c0_9] : memref<1x1x32xf32, #tpu.memory_space<vmem>>, vector<1x1x32xf32>
    %9 = vector.shape_cast %8 : vector<1x1x32xf32> to vector<1x32xf32>
    %cst = arith.constant dense<0.000000e+00> : vector<16xf32>
    %10 = vector.multi_reduction <add>, %5, %cst [1] : vector<16x32xf32> to vector<16xf32>
    %11 = vector.shape_cast %10 : vector<16xf32> to vector<16x1xf32>
    %cst_10 = arith.constant 3.200000e+01 : f32
    %12 = vector.broadcast %cst_10 : f32 to vector<16x1xf32>
    %13 = arith.divf %11, %12 : vector<16x1xf32>
    %14 = vector.broadcast %13 : vector<16x1xf32> to vector<16x32xf32>
    %15 = arith.subf %5, %14 : vector<16x32xf32>
    %16 = arith.mulf %15, %15 : vector<16x32xf32>
    %cst_11 = arith.constant dense<0.000000e+00> : vector<16xf32>
    %17 = vector.multi_reduction <add>, %16, %cst_11 [1] : vector<16x32xf32> to vector<16xf32>
    %18 = vector.shape_cast %17 : vector<16xf32> to vector<16x1xf32>
    %cst_12 = arith.constant 3.200000e+01 : f32
    %19 = vector.broadcast %cst_12 : f32 to vector<16x1xf32>
    %20 = arith.divf %18, %19 : vector<16x1xf32>
    %21 = vector.broadcast %13 : vector<16x1xf32> to vector<16x32xf32>
    %22 = arith.subf %5, %21 : vector<16x32xf32>
    %cst_13 = arith.constant 9.99999974E-6 : f32
    %23 = vector.broadcast %cst_13 : f32 to vector<16x1xf32>
    %24 = arith.addf %20, %23 : vector<16x1xf32>
    %25 = math.rsqrt %24 : vector<16x1xf32>
    %26 = vector.broadcast %25 : vector<16x1xf32> to vector<16x32xf32>
    %27 = arith.mulf %22, %26 : vector<16x32xf32>
    %28 = vector.broadcast %7 : vector<1x32xf32> to vector<16x32xf32>
    %29 = arith.mulf %27, %28 : vector<16x32xf32>
    %30 = vector.broadcast %9 : vector<1x32xf32> to vector<16x32xf32>
    %31 = arith.addf %29, %30 : vector<16x32xf32>
    %c0_14 = arith.constant 0 : index
    %c0_15 = arith.constant 0 : index
    %c0_16 = arith.constant 0 : index
    %32 = vector.load %arg5[%c0_14, %c0_15, %c0_16] : memref<1x32x64xf32, #tpu.memory_space<vmem>>, vector<1x32x64xf32>
    %33 = vector.shape_cast %32 : vector<1x32x64xf32> to vector<32x64xf32>
    %cst_17 = arith.constant dense<0.000000e+00> : vector<16x64xf32>
    %34 = tpu.matmul %31, %33, %cst_17 {dimension_numbers = #tpu.dot_dimension_numbers<[1], [0], [0], [1], [0, 0, 1, 1], [], []>} : vector<16x32xf32>, vector<32x64xf32>, vector<16x64xf32> -> vector<16x64xf32>
    %c0_18 = arith.constant 0 : index
    %c0_19 = arith.constant 0 : index
    %c0_20 = arith.constant 0 : index
    %35 = vector.load %arg6[%c0_18, %c0_19, %c0_20] : memref<1x32x64xf32, #tpu.memory_space<vmem>>, vector<1x32x64xf32>
    %36 = vector.shape_cast %35 : vector<1x32x64xf32> to vector<32x64xf32>
    %cst_21 = arith.constant dense<0.000000e+00> : vector<16x64xf32>
    %37 = tpu.matmul %31, %36, %cst_21 {dimension_numbers = #tpu.dot_dimension_numbers<[1], [0], [0], [1], [0, 0, 1, 1], [], []>} : vector<16x32xf32>, vector<32x64xf32>, vector<16x64xf32> -> vector<16x64xf32>
    %c0_22 = arith.constant 0 : index
    %c0_23 = arith.constant 0 : index
    %c0_24 = arith.constant 0 : index
    %38 = vector.load %arg7[%c0_22, %c0_23, %c0_24] : memref<1x4x64xf32, #tpu.memory_space<vmem>>, vector<1x4x64xf32>
    %39 = vector.shape_cast %38 : vector<1x4x64xf32> to vector<4x64xf32>
    %40 = vector.extract_strided_slice %39 {offsets = [3, 0], sizes = [1, 64], strides = [1, 1]} : vector<4x64xf32> to vector<1x64xf32>
    %41 = vector.shape_cast %40 : vector<1x64xf32> to vector<64xf32>
    %42 = vector.shape_cast %41 : vector<64xf32> to vector<1x64xf32>
    %43 = vector.broadcast %42 : vector<1x64xf32> to vector<16x64xf32>
    %44 = arith.mulf %34, %43 : vector<16x64xf32>
    %c0_25 = arith.constant 0 : index
    %c0_26 = arith.constant 0 : index
    %c0_27 = arith.constant 0 : index
    %45 = vector.load %arg2[%c0_25, %c0_26, %c0_27] : memref<3x16x16xf32, #tpu.memory_space<vmem>>, vector<1x16x16xf32>
    %46 = vector.shape_cast %45 : vector<1x16x16xf32> to vector<16x16xf32>
    %cst_28 = arith.constant dense<0.000000e+00> : vector<16x64xf32>
    %47 = tpu.matmul %46, %34, %cst_28 {dimension_numbers = #tpu.dot_dimension_numbers<[1], [0], [0], [1], [0, 0, 1, 1], [], []>} : vector<16x16xf32>, vector<16x64xf32>, vector<16x64xf32> -> vector<16x64xf32>
    %48 = vector.extract_strided_slice %39 {offsets = [2, 0], sizes = [1, 64], strides = [1, 1]} : vector<4x64xf32> to vector<1x64xf32>
    %49 = vector.shape_cast %48 : vector<1x64xf32> to vector<64xf32>
    %50 = vector.shape_cast %49 : vector<64xf32> to vector<1x64xf32>
    %51 = vector.broadcast %50 : vector<1x64xf32> to vector<16x64xf32>
    %52 = arith.mulf %47, %51 : vector<16x64xf32>
    %53 = arith.addf %44, %52 : vector<16x64xf32>
    %c1 = arith.constant 1 : index
    %c0_29 = arith.constant 0 : index
    %c0_30 = arith.constant 0 : index
    %54 = vector.load %arg2[%c1, %c0_29, %c0_30] : memref<3x16x16xf32, #tpu.memory_space<vmem>>, vector<1x16x16xf32>
    %55 = vector.shape_cast %54 : vector<1x16x16xf32> to vector<16x16xf32>
    %cst_31 = arith.constant dense<0.000000e+00> : vector<16x64xf32>
    %56 = tpu.matmul %55, %34, %cst_31 {dimension_numbers = #tpu.dot_dimension_numbers<[1], [0], [0], [1], [0, 0, 1, 1], [], []>} : vector<16x16xf32>, vector<16x64xf32>, vector<16x64xf32> -> vector<16x64xf32>
    %57 = vector.extract_strided_slice %39 {offsets = [1, 0], sizes = [1, 64], strides = [1, 1]} : vector<4x64xf32> to vector<1x64xf32>
    %58 = vector.shape_cast %57 : vector<1x64xf32> to vector<64xf32>
    %59 = vector.shape_cast %58 : vector<64xf32> to vector<1x64xf32>
    %60 = vector.broadcast %59 : vector<1x64xf32> to vector<16x64xf32>
    %61 = arith.mulf %56, %60 : vector<16x64xf32>
    %62 = arith.addf %53, %61 : vector<16x64xf32>
    %c2 = arith.constant 2 : index
    %c0_32 = arith.constant 0 : index
    %c0_33 = arith.constant 0 : index
    %63 = vector.load %arg2[%c2, %c0_32, %c0_33] : memref<3x16x16xf32, #tpu.memory_space<vmem>>, vector<1x16x16xf32>
    %64 = vector.shape_cast %63 : vector<1x16x16xf32> to vector<16x16xf32>
    %cst_34 = arith.constant dense<0.000000e+00> : vector<16x64xf32>
    %65 = tpu.matmul %64, %34, %cst_34 {dimension_numbers = #tpu.dot_dimension_numbers<[1], [0], [0], [1], [0, 0, 1, 1], [], []>} : vector<16x16xf32>, vector<16x64xf32>, vector<16x64xf32> -> vector<16x64xf32>
    %66 = vector.extract_strided_slice %39 {offsets = [0, 0], sizes = [1, 64], strides = [1, 1]} : vector<4x64xf32> to vector<1x64xf32>
    %67 = vector.shape_cast %66 : vector<1x64xf32> to vector<64xf32>
    %68 = vector.shape_cast %67 : vector<64xf32> to vector<1x64xf32>
    %69 = vector.broadcast %68 : vector<1x64xf32> to vector<16x64xf32>
    %70 = arith.mulf %65, %69 : vector<16x64xf32>
    %71 = arith.addf %62, %70 : vector<16x64xf32>
    %c0_35 = arith.constant 0 : index
    %c0_36 = arith.constant 0 : index
    %c0_37 = arith.constant 0 : index
    %72 = vector.load %arg8[%c0_35, %c0_36, %c0_37] : memref<1x1x64xf32, #tpu.memory_space<vmem>>, vector<1x1x64xf32>
    %73 = vector.shape_cast %72 : vector<1x1x64xf32> to vector<1x64xf32>
    %74 = vector.broadcast %73 : vector<1x64xf32> to vector<16x64xf32>
    %75 = arith.addf %71, %74 : vector<16x64xf32>
    %76 = arith.negf %75 : vector<16x64xf32>
    %77 = math.exp %76 : vector<16x64xf32>
    %cst_38 = arith.constant 1.000000e+00 : f32
    %78 = vector.broadcast %cst_38 : f32 to vector<16x64xf32>
    %79 = arith.addf %78, %77 : vector<16x64xf32>
    %80 = arith.divf %78, %79 : vector<16x64xf32>
    %81 = arith.mulf %75, %80 : vector<16x64xf32>
    %c0_39 = arith.constant 0 : index
    %c0_40 = arith.constant 0 : index
    %c0_41 = arith.constant 0 : index
    %82 = vector.load %arg9[%c0_39, %c0_40, %c0_41] : memref<1x64x16xf32, #tpu.memory_space<vmem>>, vector<1x64x16xf32>
    %83 = vector.shape_cast %82 : vector<1x64x16xf32> to vector<64x16xf32>
    %cst_42 = arith.constant dense<0.000000e+00> : vector<16x16xf32>
    %84 = tpu.matmul %81, %83, %cst_42 {dimension_numbers = #tpu.dot_dimension_numbers<[1], [0], [0], [1], [0, 0, 1, 1], [], []>} : vector<16x64xf32>, vector<64x16xf32>, vector<16x16xf32> -> vector<16x16xf32>
    %c0_43 = arith.constant 0 : index
    %c0_44 = arith.constant 0 : index
    %c0_45 = arith.constant 0 : index
    %85 = vector.load %arg10[%c0_43, %c0_44, %c0_45] : memref<1x64x16xf32, #tpu.memory_space<vmem>>, vector<1x64x16xf32>
    %86 = vector.shape_cast %85 : vector<1x64x16xf32> to vector<64x16xf32>
    %cst_46 = arith.constant dense<0.000000e+00> : vector<16x16xf32>
    %87 = tpu.matmul %81, %86, %cst_46 {dimension_numbers = #tpu.dot_dimension_numbers<[1], [0], [0], [1], [0, 0, 1, 1], [], []>} : vector<16x64xf32>, vector<64x16xf32>, vector<16x16xf32> -> vector<16x16xf32>
    %c0_47 = arith.constant 0 : index
    %c0_48 = arith.constant 0 : index
    %c0_49 = arith.constant 0 : index
    %88 = vector.load %arg11[%c0_47, %c0_48, %c0_49] : memref<1x64x64xf32, #tpu.memory_space<vmem>>, vector<1x64x64xf32>
    %89 = vector.shape_cast %88 : vector<1x64x64xf32> to vector<64x64xf32>
    %cst_50 = arith.constant dense<0.000000e+00> : vector<16x64xf32>
    %90 = tpu.matmul %81, %89, %cst_50 {dimension_numbers = #tpu.dot_dimension_numbers<[1], [0], [0], [1], [0, 0, 1, 1], [], []>} : vector<16x64xf32>, vector<64x64xf32>, vector<16x64xf32> -> vector<16x64xf32>
    %c0_51 = arith.constant 0 : index
    %c0_52 = arith.constant 0 : index
    %c0_53 = arith.constant 0 : index
    %91 = vector.load %arg12[%c0_51, %c0_52, %c0_53] : memref<1x1x64xf32, #tpu.memory_space<vmem>>, vector<1x1x64xf32>
    %92 = vector.shape_cast %91 : vector<1x1x64xf32> to vector<1x64xf32>
    %93 = vector.broadcast %92 : vector<1x64xf32> to vector<16x64xf32>
    %94 = arith.addf %90, %93 : vector<16x64xf32>
    %cst_54 = arith.constant 2.000000e+01 : f32
    %95 = vector.broadcast %cst_54 : f32 to vector<16x64xf32>
    %96 = arith.cmpf ogt, %94, %95 : vector<16x64xf32>
    %97 = math.exp %94 : vector<16x64xf32>
    %98 = math.log1p %97 : vector<16x64xf32>
    %99 = arith.select %96, %94, %98 : vector<16x64xi1>, vector<16x64xf32>
    %c0_55 = arith.constant 0 : index
    %c0_56 = arith.constant 0 : index
    %c0_57 = arith.constant 0 : index
    %100 = vector.load %arg13[%c0_55, %c0_56, %c0_57] : memref<1x16x64xf32, #tpu.memory_space<vmem>>, vector<1x16x64xf32>
    %101 = vector.shape_cast %100 : vector<1x16x64xf32> to vector<16x64xf32>
    %102 = math.exp %101 : vector<16x64xf32>
    %cst_58 = arith.constant 0.000000e+00 : f32
    %103 = vector.broadcast %cst_58 : f32 to vector<16x64xf32>
    %104 = arith.subf %103, %102 : vector<16x64xf32>
    %105 = vector.shape_cast %99 : vector<16x64xf32> to vector<16x1x64xf32>
    %106 = vector.shape_cast %104 : vector<16x64xf32> to vector<1x16x64xf32>
    %107 = vector.broadcast %105 : vector<16x1x64xf32> to vector<16x16x64xf32>
    %108 = vector.broadcast %106 : vector<1x16x64xf32> to vector<16x16x64xf32>
    %109 = arith.mulf %107, %108 : vector<16x16x64xf32>
    %110 = math.exp %109 : vector<16x16x64xf32>
    %111 = vector.shape_cast %84 : vector<16x16xf32> to vector<16x16x1xf32>
    %112 = arith.mulf %99, %81 : vector<16x64xf32>
    %113 = vector.shape_cast %112 : vector<16x64xf32> to vector<16x1x64xf32>
    %114 = vector.broadcast %111 : vector<16x16x1xf32> to vector<16x16x64xf32>
    %115 = vector.broadcast %113 : vector<16x1x64xf32> to vector<16x16x64xf32>
    %116 = arith.mulf %114, %115 : vector<16x16x64xf32>
    %117 = vector.shape_cast %87 : vector<16x16xf32> to vector<16x16x1xf32>
    %cst_59 = arith.constant 0.000000e+00 : f32
    %118 = vector.broadcast %cst_59 : f32 to vector<16x64xf32>
    %cst_60 = arith.constant 0.000000e+00 : f32
    %119 = vector.broadcast %cst_60 : f32 to vector<16x64xf32>
    %120 = vector.extract_strided_slice %110 {offsets = [0, 0, 0], sizes = [1, 16, 64], strides = [1, 1, 1]} : vector<16x16x64xf32> to vector<1x16x64xf32>
    %121 = vector.shape_cast %120 : vector<1x16x64xf32> to vector<16x64xf32>
    %122 = arith.mulf %121, %118 : vector<16x64xf32>
    %123 = vector.extract_strided_slice %116 {offsets = [0, 0, 0], sizes = [1, 16, 64], strides = [1, 1, 1]} : vector<16x16x64xf32> to vector<1x16x64xf32>
    %124 = vector.shape_cast %123 : vector<1x16x64xf32> to vector<16x64xf32>
    %125 = arith.addf %122, %124 : vector<16x64xf32>
    %126 = vector.extract_strided_slice %117 {offsets = [0, 0, 0], sizes = [1, 16, 1], strides = [1, 1, 1]} : vector<16x16x1xf32> to vector<1x16x1xf32>
    %127 = vector.shape_cast %126 : vector<1x16x1xf32> to vector<16x1xf32>
    %128 = vector.broadcast %127 : vector<16x1xf32> to vector<16x64xf32>
    %129 = arith.mulf %125, %128 : vector<16x64xf32>
    %cst_61 = arith.constant dense<0.000000e+00> : vector<64xf32>
    %130 = vector.multi_reduction <add>, %129, %cst_61 [0] : vector<16x64xf32> to vector<64xf32>
    %c0_62 = arith.constant 0 : index
    %c0_63 = arith.constant 0 : index
    %131 = vector.load %arg22[%c0_62, %c0_63] : memref<16x64xf32, #tpu.memory_space<vmem>>, vector<1x64xf32>
    %132 = vector.shape_cast %131 : vector<1x64xf32> to vector<64xf32>
    %133 = vector.shape_cast %130 : vector<64xf32> to vector<1x64xf32>
    tpu.vector_store %arg22[%c0_62, %c0_63], %133 {strides = array<i32>} : memref<16x64xf32, #tpu.memory_space<vmem>>, vector<1x64xf32>,
    %134 = vector.extract_strided_slice %110 {offsets = [8, 0, 0], sizes = [1, 16, 64], strides = [1, 1, 1]} : vector<16x16x64xf32> to vector<1x16x64xf32>
    %135 = vector.shape_cast %134 : vector<1x16x64xf32> to vector<16x64xf32>
    %136 = arith.mulf %135, %119 : vector<16x64xf32>
    %137 = vector.extract_strided_slice %116 {offsets = [8, 0, 0], sizes = [1, 16, 64], strides = [1, 1, 1]} : vector<16x16x64xf32> to vector<1x16x64xf32>
    %138 = vector.shape_cast %137 : vector<1x16x64xf32> to vector<16x64xf32>
    %139 = arith.addf %136, %138 : vector<16x64xf32>
    %140 = vector.extract_strided_slice %117 {offsets = [8, 0, 0], sizes = [1, 16, 1], strides = [1, 1, 1]} : vector<16x16x1xf32> to vector<1x16x1xf32>
    %141 = vector.shape_cast %140 : vector<1x16x1xf32> to vector<16x1xf32>
    %142 = vector.broadcast %141 : vector<16x1xf32> to vector<16x64xf32>
    %143 = arith.mulf %139, %142 : vector<16x64xf32>
    %cst_64 = arith.constant dense<0.000000e+00> : vector<64xf32>
    %144 = vector.multi_reduction <add>, %143, %cst_64 [0] : vector<16x64xf32> to vector<64xf32>
    %c8 = arith.constant 8 : index
    %c0_65 = arith.constant 0 : index
    %145 = vector.load %arg22[%c8, %c0_65] : memref<16x64xf32, #tpu.memory_space<vmem>>, vector<1x64xf32>
    %146 = vector.shape_cast %145 : vector<1x64xf32> to vector<64xf32>
    %147 = vector.shape_cast %144 : vector<64xf32> to vector<1x64xf32>
    tpu.vector_store %arg22[%c8, %c0_65], %147 {strides = array<i32>} : memref<16x64xf32, #tpu.memory_space<vmem>>, vector<1x64xf32>,
    %148 = vector.extract_strided_slice %110 {offsets = [1, 0, 0], sizes = [1, 16, 64], strides = [1, 1, 1]} : vector<16x16x64xf32> to vector<1x16x64xf32>
    %149 = vector.shape_cast %148 : vector<1x16x64xf32> to vector<16x64xf32>
    %150 = arith.mulf %149, %125 : vector<16x64xf32>
    %151 = vector.extract_strided_slice %116 {offsets = [1, 0, 0], sizes = [1, 16, 64], strides = [1, 1, 1]} : vector<16x16x64xf32> to vector<1x16x64xf32>
    %152 = vector.shape_cast %151 : vector<1x16x64xf32> to vector<16x64xf32>
    %153 = arith.addf %150, %152 : vector<16x64xf32>
    %154 = vector.extract_strided_slice %117 {offsets = [1, 0, 0], sizes = [1, 16, 1], strides = [1, 1, 1]} : vector<16x16x1xf32> to vector<1x16x1xf32>
    %155 = vector.shape_cast %154 : vector<1x16x1xf32> to vector<16x1xf32>
    %156 = vector.broadcast %155 : vector<16x1xf32> to vector<16x64xf32>
    %157 = arith.mulf %153, %156 : vector<16x64xf32>
    %cst_66 = arith.constant dense<0.000000e+00> : vector<64xf32>
    %158 = vector.multi_reduction <add>, %157, %cst_66 [0] : vector<16x64xf32> to vector<64xf32>
    %c1_67 = arith.constant 1 : index
    %c0_68 = arith.constant 0 : index
    %159 = vector.load %arg22[%c1_67, %c0_68] : memref<16x64xf32, #tpu.memory_space<vmem>>, vector<1x64xf32>
    %160 = vector.shape_cast %159 : vector<1x64xf32> to vector<64xf32>
    %161 = vector.shape_cast %158 : vector<64xf32> to vector<1x64xf32>
    tpu.vector_store %arg22[%c1_67, %c0_68], %161 {strides = array<i32>} : memref<16x64xf32, #tpu.memory_space<vmem>>, vector<1x64xf32>,
    %162 = vector.extract_strided_slice %110 {offsets = [9, 0, 0], sizes = [1, 16, 64], strides = [1, 1, 1]} : vector<16x16x64xf32> to vector<1x16x64xf32>
    %163 = vector.shape_cast %162 : vector<1x16x64xf32> to vector<16x64xf32>
    %164 = arith.mulf %163, %139 : vector<16x64xf32>
    %165 = vector.extract_strided_slice %116 {offsets = [9, 0, 0], sizes = [1, 16, 64], strides = [1, 1, 1]} : vector<16x16x64xf32> to vector<1x16x64xf32>
    %166 = vector.shape_cast %165 : vector<1x16x64xf32> to vector<16x64xf32>
    %167 = arith.addf %164, %166 : vector<16x64xf32>
    %168 = vector.extract_strided_slice %117 {offsets = [9, 0, 0], sizes = [1, 16, 1], strides = [1, 1, 1]} : vector<16x16x1xf32> to vector<1x16x1xf32>
    %169 = vector.shape_cast %168 : vector<1x16x1xf32> to vector<16x1xf32>
    %170 = vector.broadcast %169 : vector<16x1xf32> to vector<16x64xf32>
    %171 = arith.mulf %167, %170 : vector<16x64xf32>
    %cst_69 = arith.constant dense<0.000000e+00> : vector<64xf32>
    %172 = vector.multi_reduction <add>, %171, %cst_69 [0] : vector<16x64xf32> to vector<64xf32>
    %c9 = arith.constant 9 : index
    %c0_70 = arith.constant 0 : index
    %173 = vector.load %arg22[%c9, %c0_70] : memref<16x64xf32, #tpu.memory_space<vmem>>, vector<1x64xf32>
    %174 = vector.shape_cast %173 : vector<1x64xf32> to vector<64xf32>
    %175 = vector.shape_cast %172 : vector<64xf32> to vector<1x64xf32>
    tpu.vector_store %arg22[%c9, %c0_70], %175 {strides = array<i32>} : memref<16x64xf32, #tpu.memory_space<vmem>>, vector<1x64xf32>,
    %176 = vector.extract_strided_slice %110 {offsets = [2, 0, 0], sizes = [1, 16, 64], strides = [1, 1, 1]} : vector<16x16x64xf32> to vector<1x16x64xf32>
    %177 = vector.shape_cast %176 : vector<1x16x64xf32> to vector<16x64xf32>
    %178 = arith.mulf %177, %153 : vector<16x64xf32>
    %179 = vector.extract_strided_slice %116 {offsets = [2, 0, 0], sizes = [1, 16, 64], strides = [1, 1, 1]} : vector<16x16x64xf32> to vector<1x16x64xf32>
    %180 = vector.shape_cast %179 : vector<1x16x64xf32> to vector<16x64xf32>
    %181 = arith.addf %178, %180 : vector<16x64xf32>
    %182 = vector.extract_strided_slice %117 {offsets = [2, 0, 0], sizes = [1, 16, 1], strides = [1, 1, 1]} : vector<16x16x1xf32> to vector<1x16x1xf32>
    %183 = vector.shape_cast %182 : vector<1x16x1xf32> to vector<16x1xf32>
    %184 = vector.broadcast %183 : vector<16x1xf32> to vector<16x64xf32>
    %185 = arith.mulf %181, %184 : vector<16x64xf32>
    %cst_71 = arith.constant dense<0.000000e+00> : vector<64xf32>
    %186 = vector.multi_reduction <add>, %185, %cst_71 [0] : vector<16x64xf32> to vector<64xf32>
    %c2_72 = arith.constant 2 : index
    %c0_73 = arith.constant 0 : index
    %187 = vector.load %arg22[%c2_72, %c0_73] : memref<16x64xf32, #tpu.memory_space<vmem>>, vector<1x64xf32>
    %188 = vector.shape_cast %187 : vector<1x64xf32> to vector<64xf32>
    %189 = vector.shape_cast %186 : vector<64xf32> to vector<1x64xf32>
    tpu.vector_store %arg22[%c2_72, %c0_73], %189 {strides = array<i32>} : memref<16x64xf32, #tpu.memory_space<vmem>>, vector<1x64xf32>,
    %190 = vector.extract_strided_slice %110 {offsets = [10, 0, 0], sizes = [1, 16, 64], strides = [1, 1, 1]} : vector<16x16x64xf32> to vector<1x16x64xf32>
    %191 = vector.shape_cast %190 : vector<1x16x64xf32> to vector<16x64xf32>
    %192 = arith.mulf %191, %167 : vector<16x64xf32>
    %193 = vector.extract_strided_slice %116 {offsets = [10, 0, 0], sizes = [1, 16, 64], strides = [1, 1, 1]} : vector<16x16x64xf32> to vector<1x16x64xf32>
    %194 = vector.shape_cast %193 : vector<1x16x64xf32> to vector<16x64xf32>
    %195 = arith.addf %192, %194 : vector<16x64xf32>
    %196 = vector.extract_strided_slice %117 {offsets = [10, 0, 0], sizes = [1, 16, 1], strides = [1, 1, 1]} : vector<16x16x1xf32> to vector<1x16x1xf32>
    %197 = vector.shape_cast %196 : vector<1x16x1xf32> to vector<16x1xf32>
    %198 = vector.broadcast %197 : vector<16x1xf32> to vector<16x64xf32>
    %199 = arith.mulf %195, %198 : vector<16x64xf32>
    %cst_74 = arith.constant dense<0.000000e+00> : vector<64xf32>
    %200 = vector.multi_reduction <add>, %199, %cst_74 [0] : vector<16x64xf32> to vector<64xf32>
    %c10 = arith.constant 10 : index
    %c0_75 = arith.constant 0 : index
    %201 = vector.load %arg22[%c10, %c0_75] : memref<16x64xf32, #tpu.memory_space<vmem>>, vector<1x64xf32>
    %202 = vector.shape_cast %201 : vector<1x64xf32> to vector<64xf32>
    %203 = vector.shape_cast %200 : vector<64xf32> to vector<1x64xf32>
    tpu.vector_store %arg22[%c10, %c0_75], %203 {strides = array<i32>} : memref<16x64xf32, #tpu.memory_space<vmem>>, vector<1x64xf32>,
    %204 = vector.extract_strided_slice %110 {offsets = [3, 0, 0], sizes = [1, 16, 64], strides = [1, 1, 1]} : vector<16x16x64xf32> to vector<1x16x64xf32>
    %205 = vector.shape_cast %204 : vector<1x16x64xf32> to vector<16x64xf32>
    %206 = arith.mulf %205, %181 : vector<16x64xf32>
    %207 = vector.extract_strided_slice %116 {offsets = [3, 0, 0], sizes = [1, 16, 64], strides = [1, 1, 1]} : vector<16x16x64xf32> to vector<1x16x64xf32>
    %208 = vector.shape_cast %207 : vector<1x16x64xf32> to vector<16x64xf32>
    %209 = arith.addf %206, %208 : vector<16x64xf32>
    %210 = vector.extract_strided_slice %117 {offsets = [3, 0, 0], sizes = [1, 16, 1], strides = [1, 1, 1]} : vector<16x16x1xf32> to vector<1x16x1xf32>
    %211 = vector.shape_cast %210 : vector<1x16x1xf32> to vector<16x1xf32>
    %212 = vector.broadcast %211 : vector<16x1xf32> to vector<16x64xf32>
    %213 = arith.mulf %209, %212 : vector<16x64xf32>
    %cst_76 = arith.constant dense<0.000000e+00> : vector<64xf32>
    %214 = vector.multi_reduction <add>, %213, %cst_76 [0] : vector<16x64xf32> to vector<64xf32>
    %c3 = arith.constant 3 : index
    %c0_77 = arith.constant 0 : index
    %215 = vector.load %arg22[%c3, %c0_77] : memref<16x64xf32, #tpu.memory_space<vmem>>, vector<1x64xf32>
    %216 = vector.shape_cast %215 : vector<1x64xf32> to vector<64xf32>
    %217 = vector.shape_cast %214 : vector<64xf32> to vector<1x64xf32>
    tpu.vector_store %arg22[%c3, %c0_77], %217 {strides = array<i32>} : memref<16x64xf32, #tpu.memory_space<vmem>>, vector<1x64xf32>,
    %218 = vector.extract_strided_slice %110 {offsets = [11, 0, 0], sizes = [1, 16, 64], strides = [1, 1, 1]} : vector<16x16x64xf32> to vector<1x16x64xf32>
    %219 = vector.shape_cast %218 : vector<1x16x64xf32> to vector<16x64xf32>
    %220 = arith.mulf %219, %195 : vector<16x64xf32>
    %221 = vector.extract_strided_slice %116 {offsets = [11, 0, 0], sizes = [1, 16, 64], strides = [1, 1, 1]} : vector<16x16x64xf32> to vector<1x16x64xf32>
    %222 = vector.shape_cast %221 : vector<1x16x64xf32> to vector<16x64xf32>
    %223 = arith.addf %220, %222 : vector<16x64xf32>
    %224 = vector.extract_strided_slice %117 {offsets = [11, 0, 0], sizes = [1, 16, 1], strides = [1, 1, 1]} : vector<16x16x1xf32> to vector<1x16x1xf32>
    %225 = vector.shape_cast %224 : vector<1x16x1xf32> to vector<16x1xf32>
    %226 = vector.broadcast %225 : vector<16x1xf32> to vector<16x64xf32>
    %227 = arith.mulf %223, %226 : vector<16x64xf32>
    %cst_78 = arith.constant dense<0.000000e+00> : vector<64xf32>
    %228 = vector.multi_reduction <add>, %227, %cst_78 [0] : vector<16x64xf32> to vector<64xf32>
    %c11 = arith.constant 11 : index
    %c0_79 = arith.constant 0 : index
    %229 = vector.load %arg22[%c11, %c0_79] : memref<16x64xf32, #tpu.memory_space<vmem>>, vector<1x64xf32>
    %230 = vector.shape_cast %229 : vector<1x64xf32> to vector<64xf32>
    %231 = vector.shape_cast %228 : vector<64xf32> to vector<1x64xf32>
    tpu.vector_store %arg22[%c11, %c0_79], %231 {strides = array<i32>} : memref<16x64xf32, #tpu.memory_space<vmem>>, vector<1x64xf32>,
    %232 = vector.extract_strided_slice %110 {offsets = [4, 0, 0], sizes = [1, 16, 64], strides = [1, 1, 1]} : vector<16x16x64xf32> to vector<1x16x64xf32>
    %233 = vector.shape_cast %232 : vector<1x16x64xf32> to vector<16x64xf32>
    %234 = arith.mulf %233, %209 : vector<16x64xf32>
    %235 = vector.extract_strided_slice %116 {offsets = [4, 0, 0], sizes = [1, 16, 64], strides = [1, 1, 1]} : vector<16x16x64xf32> to vector<1x16x64xf32>
    %236 = vector.shape_cast %235 : vector<1x16x64xf32> to vector<16x64xf32>
    %237 = arith.addf %234, %236 : vector<16x64xf32>
    %238 = vector.extract_strided_slice %117 {offsets = [4, 0, 0], sizes = [1, 16, 1], strides = [1, 1, 1]} : vector<16x16x1xf32> to vector<1x16x1xf32>
    %239 = vector.shape_cast %238 : vector<1x16x1xf32> to vector<16x1xf32>
    %240 = vector.broadcast %239 : vector<16x1xf32> to vector<16x64xf32>
    %241 = arith.mulf %237, %240 : vector<16x64xf32>
    %cst_80 = arith.constant dense<0.000000e+00> : vector<64xf32>
    %242 = vector.multi_reduction <add>, %241, %cst_80 [0] : vector<16x64xf32> to vector<64xf32>
    %c4 = arith.constant 4 : index
    %c0_81 = arith.constant 0 : index
    %243 = vector.load %arg22[%c4, %c0_81] : memref<16x64xf32, #tpu.memory_space<vmem>>, vector<1x64xf32>
    %244 = vector.shape_cast %243 : vector<1x64xf32> to vector<64xf32>
    %245 = vector.shape_cast %242 : vector<64xf32> to vector<1x64xf32>
    tpu.vector_store %arg22[%c4, %c0_81], %245 {strides = array<i32>} : memref<16x64xf32, #tpu.memory_space<vmem>>, vector<1x64xf32>,
    %246 = vector.extract_strided_slice %110 {offsets = [12, 0, 0], sizes = [1, 16, 64], strides = [1, 1, 1]} : vector<16x16x64xf32> to vector<1x16x64xf32>
    %247 = vector.shape_cast %246 : vector<1x16x64xf32> to vector<16x64xf32>
    %248 = arith.mulf %247, %223 : vector<16x64xf32>
    %249 = vector.extract_strided_slice %116 {offsets = [12, 0, 0], sizes = [1, 16, 64], strides = [1, 1, 1]} : vector<16x16x64xf32> to vector<1x16x64xf32>
    %250 = vector.shape_cast %249 : vector<1x16x64xf32> to vector<16x64xf32>
    %251 = arith.addf %248, %250 : vector<16x64xf32>
    %252 = vector.extract_strided_slice %117 {offsets = [12, 0, 0], sizes = [1, 16, 1], strides = [1, 1, 1]} : vector<16x16x1xf32> to vector<1x16x1xf32>
    %253 = vector.shape_cast %252 : vector<1x16x1xf32> to vector<16x1xf32>
    %254 = vector.broadcast %253 : vector<16x1xf32> to vector<16x64xf32>
    %255 = arith.mulf %251, %254 : vector<16x64xf32>
    %cst_82 = arith.constant dense<0.000000e+00> : vector<64xf32>
    %256 = vector.multi_reduction <add>, %255, %cst_82 [0] : vector<16x64xf32> to vector<64xf32>
    %c12 = arith.constant 12 : index
    %c0_83 = arith.constant 0 : index
    %257 = vector.load %arg22[%c12, %c0_83] : memref<16x64xf32, #tpu.memory_space<vmem>>, vector<1x64xf32>
    %258 = vector.shape_cast %257 : vector<1x64xf32> to vector<64xf32>
    %259 = vector.shape_cast %256 : vector<64xf32> to vector<1x64xf32>
    tpu.vector_store %arg22[%c12, %c0_83], %259 {strides = array<i32>} : memref<16x64xf32, #tpu.memory_space<vmem>>, vector<1x64xf32>,
    %260 = vector.extract_strided_slice %110 {offsets = [5, 0, 0], sizes = [1, 16, 64], strides = [1, 1, 1]} : vector<16x16x64xf32> to vector<1x16x64xf32>
    %261 = vector.shape_cast %260 : vector<1x16x64xf32> to vector<16x64xf32>
    %262 = arith.mulf %261, %237 : vector<16x64xf32>
    %263 = vector.extract_strided_slice %116 {offsets = [5, 0, 0], sizes = [1, 16, 64], strides = [1, 1, 1]} : vector<16x16x64xf32> to vector<1x16x64xf32>
    %264 = vector.shape_cast %263 : vector<1x16x64xf32> to vector<16x64xf32>
    %265 = arith.addf %262, %264 : vector<16x64xf32>
    %266 = vector.extract_strided_slice %117 {offsets = [5, 0, 0], sizes = [1, 16, 1], strides = [1, 1, 1]} : vector<16x16x1xf32> to vector<1x16x1xf32>
    %267 = vector.shape_cast %266 : vector<1x16x1xf32> to vector<16x1xf32>
    %268 = vector.broadcast %267 : vector<16x1xf32> to vector<16x64xf32>
    %269 = arith.mulf %265, %268 : vector<16x64xf32>
    %cst_84 = arith.constant dense<0.000000e+00> : vector<64xf32>
    %270 = vector.multi_reduction <add>, %269, %cst_84 [0] : vector<16x64xf32> to vector<64xf32>
    %c5 = arith.constant 5 : index
    %c0_85 = arith.constant 0 : index
    %271 = vector.load %arg22[%c5, %c0_85] : memref<16x64xf32, #tpu.memory_space<vmem>>, vector<1x64xf32>
    %272 = vector.shape_cast %271 : vector<1x64xf32> to vector<64xf32>
    %273 = vector.shape_cast %270 : vector<64xf32> to vector<1x64xf32>
    tpu.vector_store %arg22[%c5, %c0_85], %273 {strides = array<i32>} : memref<16x64xf32, #tpu.memory_space<vmem>>, vector<1x64xf32>,
    %274 = vector.extract_strided_slice %110 {offsets = [13, 0, 0], sizes = [1, 16, 64], strides = [1, 1, 1]} : vector<16x16x64xf32> to vector<1x16x64xf32>
    %275 = vector.shape_cast %274 : vector<1x16x64xf32> to vector<16x64xf32>
    %276 = arith.mulf %275, %251 : vector<16x64xf32>
    %277 = vector.extract_strided_slice %116 {offsets = [13, 0, 0], sizes = [1, 16, 64], strides = [1, 1, 1]} : vector<16x16x64xf32> to vector<1x16x64xf32>
    %278 = vector.shape_cast %277 : vector<1x16x64xf32> to vector<16x64xf32>
    %279 = arith.addf %276, %278 : vector<16x64xf32>
    %280 = vector.extract_strided_slice %117 {offsets = [13, 0, 0], sizes = [1, 16, 1], strides = [1, 1, 1]} : vector<16x16x1xf32> to vector<1x16x1xf32>
    %281 = vector.shape_cast %280 : vector<1x16x1xf32> to vector<16x1xf32>
    %282 = vector.broadcast %281 : vector<16x1xf32> to vector<16x64xf32>
    %283 = arith.mulf %279, %282 : vector<16x64xf32>
    %cst_86 = arith.constant dense<0.000000e+00> : vector<64xf32>
    %284 = vector.multi_reduction <add>, %283, %cst_86 [0] : vector<16x64xf32> to vector<64xf32>
    %c13 = arith.constant 13 : index
    %c0_87 = arith.constant 0 : index
    %285 = vector.load %arg22[%c13, %c0_87] : memref<16x64xf32, #tpu.memory_space<vmem>>, vector<1x64xf32>
    %286 = vector.shape_cast %285 : vector<1x64xf32> to vector<64xf32>
    %287 = vector.shape_cast %284 : vector<64xf32> to vector<1x64xf32>
    tpu.vector_store %arg22[%c13, %c0_87], %287 {strides = array<i32>} : memref<16x64xf32, #tpu.memory_space<vmem>>, vector<1x64xf32>,
    %288 = vector.extract_strided_slice %110 {offsets = [6, 0, 0], sizes = [1, 16, 64], strides = [1, 1, 1]} : vector<16x16x64xf32> to vector<1x16x64xf32>
    %289 = vector.shape_cast %288 : vector<1x16x64xf32> to vector<16x64xf32>
    %290 = arith.mulf %289, %265 : vector<16x64xf32>
    %291 = vector.extract_strided_slice %116 {offsets = [6, 0, 0], sizes = [1, 16, 64], strides = [1, 1, 1]} : vector<16x16x64xf32> to vector<1x16x64xf32>
    %292 = vector.shape_cast %291 : vector<1x16x64xf32> to vector<16x64xf32>
    %293 = arith.addf %290, %292 : vector<16x64xf32>
    %294 = vector.extract_strided_slice %117 {offsets = [6, 0, 0], sizes = [1, 16, 1], strides = [1, 1, 1]} : vector<16x16x1xf32> to vector<1x16x1xf32>
    %295 = vector.shape_cast %294 : vector<1x16x1xf32> to vector<16x1xf32>
    %296 = vector.broadcast %295 : vector<16x1xf32> to vector<16x64xf32>
    %297 = arith.mulf %293, %296 : vector<16x64xf32>
    %cst_88 = arith.constant dense<0.000000e+00> : vector<64xf32>
    %298 = vector.multi_reduction <add>, %297, %cst_88 [0] : vector<16x64xf32> to vector<64xf32>
    %c6 = arith.constant 6 : index
    %c0_89 = arith.constant 0 : index
    %299 = vector.load %arg22[%c6, %c0_89] : memref<16x64xf32, #tpu.memory_space<vmem>>, vector<1x64xf32>
    %300 = vector.shape_cast %299 : vector<1x64xf32> to vector<64xf32>
    %301 = vector.shape_cast %298 : vector<64xf32> to vector<1x64xf32>
    tpu.vector_store %arg22[%c6, %c0_89], %301 {strides = array<i32>} : memref<16x64xf32, #tpu.memory_space<vmem>>, vector<1x64xf32>,
    %302 = vector.extract_strided_slice %110 {offsets = [14, 0, 0], sizes = [1, 16, 64], strides = [1, 1, 1]} : vector<16x16x64xf32> to vector<1x16x64xf32>
    %303 = vector.shape_cast %302 : vector<1x16x64xf32> to vector<16x64xf32>
    %304 = arith.mulf %303, %279 : vector<16x64xf32>
    %305 = vector.extract_strided_slice %116 {offsets = [14, 0, 0], sizes = [1, 16, 64], strides = [1, 1, 1]} : vector<16x16x64xf32> to vector<1x16x64xf32>
    %306 = vector.shape_cast %305 : vector<1x16x64xf32> to vector<16x64xf32>
    %307 = arith.addf %304, %306 : vector<16x64xf32>
    %308 = vector.extract_strided_slice %117 {offsets = [14, 0, 0], sizes = [1, 16, 1], strides = [1, 1, 1]} : vector<16x16x1xf32> to vector<1x16x1xf32>
    %309 = vector.shape_cast %308 : vector<1x16x1xf32> to vector<16x1xf32>
    %310 = vector.broadcast %309 : vector<16x1xf32> to vector<16x64xf32>
    %311 = arith.mulf %307, %310 : vector<16x64xf32>
    %cst_90 = arith.constant dense<0.000000e+00> : vector<64xf32>
    %312 = vector.multi_reduction <add>, %311, %cst_90 [0] : vector<16x64xf32> to vector<64xf32>
    %c14 = arith.constant 14 : index
    %c0_91 = arith.constant 0 : index
    %313 = vector.load %arg22[%c14, %c0_91] : memref<16x64xf32, #tpu.memory_space<vmem>>, vector<1x64xf32>
    %314 = vector.shape_cast %313 : vector<1x64xf32> to vector<64xf32>
    %315 = vector.shape_cast %312 : vector<64xf32> to vector<1x64xf32>
    tpu.vector_store %arg22[%c14, %c0_91], %315 {strides = array<i32>} : memref<16x64xf32, #tpu.memory_space<vmem>>, vector<1x64xf32>,
    %316 = vector.extract_strided_slice %110 {offsets = [7, 0, 0], sizes = [1, 16, 64], strides = [1, 1, 1]} : vector<16x16x64xf32> to vector<1x16x64xf32>
    %317 = vector.shape_cast %316 : vector<1x16x64xf32> to vector<16x64xf32>
    %318 = arith.mulf %317, %293 : vector<16x64xf32>
    %319 = vector.extract_strided_slice %116 {offsets = [7, 0, 0], sizes = [1, 16, 64], strides = [1, 1, 1]} : vector<16x16x64xf32> to vector<1x16x64xf32>
    %320 = vector.shape_cast %319 : vector<1x16x64xf32> to vector<16x64xf32>
    %321 = arith.addf %318, %320 : vector<16x64xf32>
    %322 = vector.extract_strided_slice %117 {offsets = [7, 0, 0], sizes = [1, 16, 1], strides = [1, 1, 1]} : vector<16x16x1xf32> to vector<1x16x1xf32>
    %323 = vector.shape_cast %322 : vector<1x16x1xf32> to vector<16x1xf32>
    %324 = vector.broadcast %323 : vector<16x1xf32> to vector<16x64xf32>
    %325 = arith.mulf %321, %324 : vector<16x64xf32>
    %cst_92 = arith.constant dense<0.000000e+00> : vector<64xf32>
    %326 = vector.multi_reduction <add>, %325, %cst_92 [0] : vector<16x64xf32> to vector<64xf32>
    %c7 = arith.constant 7 : index
    %c0_93 = arith.constant 0 : index
    %327 = vector.load %arg22[%c7, %c0_93] : memref<16x64xf32, #tpu.memory_space<vmem>>, vector<1x64xf32>
    %328 = vector.shape_cast %327 : vector<1x64xf32> to vector<64xf32>
    %329 = vector.shape_cast %326 : vector<64xf32> to vector<1x64xf32>
    tpu.vector_store %arg22[%c7, %c0_93], %329 {strides = array<i32>} : memref<16x64xf32, #tpu.memory_space<vmem>>, vector<1x64xf32>,
    %330 = vector.extract_strided_slice %110 {offsets = [15, 0, 0], sizes = [1, 16, 64], strides = [1, 1, 1]} : vector<16x16x64xf32> to vector<1x16x64xf32>
    %331 = vector.shape_cast %330 : vector<1x16x64xf32> to vector<16x64xf32>
    %332 = arith.mulf %331, %307 : vector<16x64xf32>
    %333 = vector.extract_strided_slice %116 {offsets = [15, 0, 0], sizes = [1, 16, 64], strides = [1, 1, 1]} : vector<16x16x64xf32> to vector<1x16x64xf32>
    %334 = vector.shape_cast %333 : vector<1x16x64xf32> to vector<16x64xf32>
    %335 = arith.addf %332, %334 : vector<16x64xf32>
    %336 = vector.extract_strided_slice %117 {offsets = [15, 0, 0], sizes = [1, 16, 1], strides = [1, 1, 1]} : vector<16x16x1xf32> to vector<1x16x1xf32>
    %337 = vector.shape_cast %336 : vector<1x16x1xf32> to vector<16x1xf32>
    %338 = vector.broadcast %337 : vector<16x1xf32> to vector<16x64xf32>
    %339 = arith.mulf %335, %338 : vector<16x64xf32>
    %cst_94 = arith.constant dense<0.000000e+00> : vector<64xf32>
    %340 = vector.multi_reduction <add>, %339, %cst_94 [0] : vector<16x64xf32> to vector<64xf32>
    %c15 = arith.constant 15 : index
    %c0_95 = arith.constant 0 : index
    %341 = vector.load %arg22[%c15, %c0_95] : memref<16x64xf32, #tpu.memory_space<vmem>>, vector<1x64xf32>
    %342 = vector.shape_cast %341 : vector<1x64xf32> to vector<64xf32>
    %343 = vector.shape_cast %340 : vector<64xf32> to vector<1x64xf32>
    tpu.vector_store %arg22[%c15, %c0_95], %343 {strides = array<i32>} : memref<16x64xf32, #tpu.memory_space<vmem>>, vector<1x64xf32>,
    %c0_96 = arith.constant 0 : index
    %c0_97 = arith.constant 0 : index
    %344 = vector.load %arg22[%c0_96, %c0_97] : memref<16x64xf32, #tpu.memory_space<vmem>>, vector<16x64xf32>
    %c0_98 = arith.constant 0 : index
    %c0_99 = arith.constant 0 : index
    %c0_100 = arith.constant 0 : index
    %345 = vector.load %arg14[%c0_98, %c0_99, %c0_100] : memref<1x1x64xf32, #tpu.memory_space<vmem>>, vector<1x1x64xf32>
    %346 = vector.shape_cast %345 : vector<1x1x64xf32> to vector<1x64xf32>
    %347 = vector.broadcast %346 : vector<1x64xf32> to vector<16x64xf32>
    %348 = arith.mulf %81, %347 : vector<16x64xf32>
    %349 = arith.addf %344, %348 : vector<16x64xf32>
    %350 = arith.negf %37 : vector<16x64xf32>
    %351 = math.exp %350 : vector<16x64xf32>
    %cst_101 = arith.constant 1.000000e+00 : f32
    %352 = vector.broadcast %cst_101 : f32 to vector<16x64xf32>
    %353 = arith.addf %352, %351 : vector<16x64xf32>
    %354 = arith.divf %352, %353 : vector<16x64xf32>
    %355 = arith.mulf %37, %354 : vector<16x64xf32>
    %356 = arith.mulf %349, %355 : vector<16x64xf32>
    %c0_102 = arith.constant 0 : index
    %c0_103 = arith.constant 0 : index
    %c0_104 = arith.constant 0 : index
    %357 = vector.load %arg15[%c0_102, %c0_103, %c0_104] : memref<1x64x32xf32, #tpu.memory_space<vmem>>, vector<1x64x32xf32>
    %358 = vector.shape_cast %357 : vector<1x64x32xf32> to vector<64x32xf32>
    %cst_105 = arith.constant dense<0.000000e+00> : vector<16x32xf32>
    %359 = tpu.matmul %356, %358, %cst_105 {dimension_numbers = #tpu.dot_dimension_numbers<[1], [0], [0], [1], [0, 0, 1, 1], [], []>} : vector<16x64xf32>, vector<64x32xf32>, vector<16x32xf32> -> vector<16x32xf32>
    %c0_106 = arith.constant 0 : index
    %c0_107 = arith.constant 0 : index
    %360 = vector.load %arg20[%c0_106, %c0_107] : memref<16x32xf32, #tpu.memory_space<vmem>>, vector<16x32xf32>
    tpu.vector_store %arg20[%c0_106, %c0_107], %359 {strides = array<i32>} : memref<16x32xf32, #tpu.memory_space<vmem>>, vector<16x32xf32>,
    %c0_108 = arith.constant 0 : index
    %c0_109 = arith.constant 0 : index
    %361 = vector.load %arg21[%c0_108, %c0_109] : memref<16x32xf32, #tpu.memory_space<vmem>>, vector<16x32xf32>
    tpu.vector_store %arg21[%c0_108, %c0_109], %5 {strides = array<i32>} : memref<16x32xf32, #tpu.memory_space<vmem>>, vector<16x32xf32>,
    %c1_i32 = arith.constant 1 : i32
    %362 = arith.cmpi eq, %arg0, %c1_i32 : i32
    %363 = arith.extui %362 : i1 to i32
    %c0_i32_110 = arith.constant 0 : i32
    %364 = arith.cmpi ne, %363, %c0_i32_110 : i32
    scf.if %364 {
      %365 = arith.addf %359, %5 : vector<16x32xf32>
      %c0_111 = arith.constant 0 : index
      %c0_112 = arith.constant 0 : index
      %366 = vector.load %arg16[%c0_111, %c0_112] : memref<1x32xf32, #tpu.memory_space<vmem>>, vector<1x32xf32>
      %c0_113 = arith.constant 0 : index
      %c0_114 = arith.constant 0 : index
      %367 = vector.load %arg17[%c0_113, %c0_114] : memref<1x32xf32, #tpu.memory_space<vmem>>, vector<1x32xf32>
      %cst_115 = arith.constant dense<0.000000e+00> : vector<16xf32>
      %368 = vector.multi_reduction <add>, %365, %cst_115 [1] : vector<16x32xf32> to vector<16xf32>
      %369 = vector.shape_cast %368 : vector<16xf32> to vector<16x1xf32>
      %cst_116 = arith.constant 3.200000e+01 : f32
      %370 = vector.broadcast %cst_116 : f32 to vector<16x1xf32>
      %371 = arith.divf %369, %370 : vector<16x1xf32>
      %372 = vector.broadcast %371 : vector<16x1xf32> to vector<16x32xf32>
      %373 = arith.subf %365, %372 : vector<16x32xf32>
      %374 = arith.mulf %373, %373 : vector<16x32xf32>
      %cst_117 = arith.constant dense<0.000000e+00> : vector<16xf32>
      %375 = vector.multi_reduction <add>, %374, %cst_117 [1] : vector<16x32xf32> to vector<16xf32>
      %376 = vector.shape_cast %375 : vector<16xf32> to vector<16x1xf32>
      %cst_118 = arith.constant 3.200000e+01 : f32
      %377 = vector.broadcast %cst_118 : f32 to vector<16x1xf32>
      %378 = arith.divf %376, %377 : vector<16x1xf32>
      %379 = vector.broadcast %371 : vector<16x1xf32> to vector<16x32xf32>
      %380 = arith.subf %365, %379 : vector<16x32xf32>
      %cst_119 = arith.constant 9.99999974E-6 : f32
      %381 = vector.broadcast %cst_119 : f32 to vector<16x1xf32>
      %382 = arith.addf %378, %381 : vector<16x1xf32>
      %383 = math.rsqrt %382 : vector<16x1xf32>
      %384 = vector.broadcast %383 : vector<16x1xf32> to vector<16x32xf32>
      %385 = arith.mulf %380, %384 : vector<16x32xf32>
      %386 = vector.broadcast %366 : vector<1x32xf32> to vector<16x32xf32>
      %387 = arith.mulf %385, %386 : vector<16x32xf32>
      %388 = vector.broadcast %367 : vector<1x32xf32> to vector<16x32xf32>
      %389 = arith.addf %387, %388 : vector<16x32xf32>
      %c0_120 = arith.constant 0 : index
      %c0_121 = arith.constant 0 : index
      %390 = vector.load %arg18[%c0_120, %c0_121] : memref<32x64xf32, #tpu.memory_space<vmem>>, vector<32x64xf32>
      %cst_122 = arith.constant dense<0.000000e+00> : vector<16x64xf32>
      %391 = tpu.matmul %389, %390, %cst_122 {dimension_numbers = #tpu.dot_dimension_numbers<[1], [0], [0], [1], [0, 0, 1, 1], [], []>} : vector<16x32xf32>, vector<32x64xf32>, vector<16x64xf32> -> vector<16x64xf32>
      %c0_123 = arith.constant 0 : index
      %c0_124 = arith.constant 0 : index
      %392 = vector.load %arg19[%c0_123, %c0_124] : memref<16x64xf32, #tpu.memory_space<vmem>>, vector<16x64xf32>
      tpu.vector_store %arg19[%c0_123, %c0_124], %391 {strides = array<i32>} : memref<16x64xf32, #tpu.memory_space<vmem>>, vector<16x64xf32>,
    } else {
    }
    return
  }
  func.func @transform_0(%arg0: i32) -> (i32, i32) {
    %c0_i32 = arith.constant 0 : i32
    %c0_i32_0 = arith.constant 0 : i32
    %c0_i32_1 = arith.constant 0 : i32
    return %c0_i32, %c0_i32_0 : i32, i32
  }
  func.func @transform_1(%arg0: i32) -> (i32, i32, i32) {
    %c0_i32 = arith.constant 0 : i32
    %c0_i32_0 = arith.constant 0 : i32
    %c0_i32_1 = arith.constant 0 : i32
    %c0_i32_2 = arith.constant 0 : i32
    return %c0_i32, %c0_i32_0, %c0_i32_1 : i32, i32, i32
  }
  func.func @transform_2(%arg0: i32) -> (i32, i32, i32) {
    %c0_i32 = arith.constant 0 : i32
    %c0_i32_0 = arith.constant 0 : i32
    %c0_i32_1 = arith.constant 0 : i32
    return %arg0, %c0_i32, %c0_i32_0 : i32, i32, i32
  }
  func.func @transform_3(%arg0: i32) -> (i32, i32, i32) {
    %c0_i32 = arith.constant 0 : i32
    %c0_i32_0 = arith.constant 0 : i32
    %c0_i32_1 = arith.constant 0 : i32
    return %arg0, %c0_i32, %c0_i32_0 : i32, i32, i32
  }
  func.func @transform_4(%arg0: i32) -> (i32, i32, i32) {
    %c0_i32 = arith.constant 0 : i32
    %c0_i32_0 = arith.constant 0 : i32
    %c0_i32_1 = arith.constant 0 : i32
    return %arg0, %c0_i32, %c0_i32_0 : i32, i32, i32
  }
  func.func @transform_5(%arg0: i32) -> (i32, i32, i32) {
    %c0_i32 = arith.constant 0 : i32
    %c0_i32_0 = arith.constant 0 : i32
    %c0_i32_1 = arith.constant 0 : i32
    return %arg0, %c0_i32, %c0_i32_0 : i32, i32, i32
  }
  func.func @transform_6(%arg0: i32) -> (i32, i32, i32) {
    %c0_i32 = arith.constant 0 : i32
    %c0_i32_0 = arith.constant 0 : i32
    %c0_i32_1 = arith.constant 0 : i32
    return %arg0, %c0_i32, %c0_i32_0 : i32, i32, i32
  }
  func.func @transform_7(%arg0: i32) -> (i32, i32, i32) {
    %c0_i32 = arith.constant 0 : i32
    %c0_i32_0 = arith.constant 0 : i32
    %c0_i32_1 = arith.constant 0 : i32
    return %arg0, %c0_i32, %c0_i32_0 : i32, i32, i32
  }
  func.func @transform_8(%arg0: i32) -> (i32, i32, i32) {
    %c0_i32 = arith.constant 0 : i32
    %c0_i32_0 = arith.constant 0 : i32
    %c0_i32_1 = arith.constant 0 : i32
    return %arg0, %c0_i32, %c0_i32_0 : i32, i32, i32
  }
  func.func @transform_9(%arg0: i32) -> (i32, i32, i32) {
    %c0_i32 = arith.constant 0 : i32
    %c0_i32_0 = arith.constant 0 : i32
    %c0_i32_1 = arith.constant 0 : i32
    return %arg0, %c0_i32, %c0_i32_0 : i32, i32, i32
  }
  func.func @transform_10(%arg0: i32) -> (i32, i32, i32) {
    %c0_i32 = arith.constant 0 : i32
    %c0_i32_0 = arith.constant 0 : i32
    %c0_i32_1 = arith.constant 0 : i32
    return %arg0, %c0_i32, %c0_i32_0 : i32, i32, i32
  }
  func.func @transform_11(%arg0: i32) -> (i32, i32, i32) {
    %c0_i32 = arith.constant 0 : i32
    %c0_i32_0 = arith.constant 0 : i32
    %c0_i32_1 = arith.constant 0 : i32
    return %arg0, %c0_i32, %c0_i32_0 : i32, i32, i32
  }
  func.func @transform_12(%arg0: i32) -> (i32, i32, i32) {
    %c0_i32 = arith.constant 0 : i32
    %c0_i32_0 = arith.constant 0 : i32
    %c0_i32_1 = arith.constant 0 : i32
    return %arg0, %c0_i32, %c0_i32_0 : i32, i32, i32
  }
  func.func @transform_13(%arg0: i32) -> (i32, i32, i32) {
    %c0_i32 = arith.constant 0 : i32
    %c0_i32_0 = arith.constant 0 : i32
    %c0_i32_1 = arith.constant 0 : i32
    return %arg0, %c0_i32, %c0_i32_0 : i32, i32, i32
  }
  func.func @transform_14(%arg0: i32) -> (i32, i32, i32) {
    %c0_i32 = arith.constant 0 : i32
    %c0_i32_0 = arith.constant 0 : i32
    %c0_i32_1 = arith.constant 0 : i32
    return %arg0, %c0_i32, %c0_i32_0 : i32, i32, i32
  }
  func.func @transform_15(%arg0: i32) -> (i32, i32) {
    %c0_i32 = arith.constant 0 : i32
    %c0_i32_0 = arith.constant 0 : i32
    %c0_i32_1 = arith.constant 0 : i32
    return %c0_i32, %c0_i32_0 : i32, i32
  }
  func.func @transform_16(%arg0: i32) -> (i32, i32) {
    %c0_i32 = arith.constant 0 : i32
    %c0_i32_0 = arith.constant 0 : i32
    %c0_i32_1 = arith.constant 0 : i32
    return %c0_i32, %c0_i32_0 : i32, i32
  }
  func.func @transform_17(%arg0: i32) -> (i32, i32) {
    %c0_i32 = arith.constant 0 : i32
    %c0_i32_0 = arith.constant 0 : i32
    %c0_i32_1 = arith.constant 0 : i32
    return %c0_i32, %c0_i32_0 : i32, i32
  }
  func.func @transform_18(%arg0: i32) -> (i32, i32) {
    %c0_i32 = arith.constant 0 : i32
    %c0_i32_0 = arith.constant 0 : i32
    %c0_i32_1 = arith.constant 0 : i32
    return %c0_i32, %c0_i32_0 : i32, i32
  }
}

</mosaic_0001>

<llo_original>
// kernel: mamba_lm_forward.1
$region0: #{mamba_lm_forward.1}
  #allocation0 [shape = 'u32[]', space=smem, size = 0x4, offset = 0x4, fixed_abs, tag = 'smem constant byte address 0x4 - core index']
  #allocation1 [shape = 'u32[144,128]{1,0:T(1,128)}', space=vmem, size = 0x12000, scoped, tag = 'internal scratch']
  #allocation2 [shape = 'f32[16,32]{1,0:T(8,128)}', space=vmem, size = 0x2000, scoped, tag = 'scratch operand']
  #allocation3 [shape = 'f32[16,32]{1,0:T(8,128)}', space=vmem, size = 0x2000, scoped, tag = 'scratch operand']
  #allocation4 [shape = 'f32[16,64]{1,0:T(8,128)}', space=vmem, size = 0x2000, scoped, tag = 'scratch operand']
  %s0 = inlined_call_operand.vmem [shape: f32[16,32], index: 0, kind: input, shape index: {}]
  %s1 = inlined_call_operand.vmem [shape: f32[3,16,16], index: 1, kind: input, shape index: {}]
  %s2 = inlined_call_operand.vmem [shape: f32[2,1,32], index: 2, kind: input, shape index: {}]
  %s3 = inlined_call_operand.vmem [shape: f32[2,1,32], index: 3, kind: input, shape index: {}]
  %s4 = inlined_call_operand.vmem [shape: f32[2,32,64], index: 4, kind: input, shape index: {}]
  %s5 = inlined_call_operand.vmem [shape: f32[2,32,64], index: 5, kind: input, shape index: {}]
  %s6 = inlined_call_operand.vmem [shape: f32[2,4,64], index: 6, kind: input, shape index: {}]
  %s7 = inlined_call_operand.vmem [shape: f32[2,1,64], index: 7, kind: input, shape index: {}]
  %s8 = inlined_call_operand.vmem [shape: f32[2,64,16], index: 8, kind: input, shape index: {}]
  %s9 = inlined_call_operand.vmem [shape: f32[2,64,16], index: 9, kind: input, shape index: {}]
  %s10 = inlined_call_operand.vmem [shape: f32[2,64,64], index: 10, kind: input, shape index: {}]
  %s11 = inlined_call_operand.vmem [shape: f32[2,1,64], index: 11, kind: input, shape index: {}]
  %s12 = inlined_call_operand.vmem [shape: f32[2,16,64], index: 12, kind: input, shape index: {}]
  %s13 = inlined_call_operand.vmem [shape: f32[2,1,64], index: 13, kind: input, shape index: {}]
  %s14 = inlined_call_operand.vmem [shape: f32[2,64,32], index: 14, kind: input, shape index: {}]
  %s15 = inlined_call_operand.vmem [shape: f32[1,32], index: 15, kind: input, shape index: {}]
  %s16 = inlined_call_operand.vmem [shape: f32[1,32], index: 16, kind: input, shape index: {}]
  %s17 = inlined_call_operand.vmem [shape: f32[32,64], index: 17, kind: input, shape index: {}]
  %s18 = inlined_call_operand.hbm [shape: f32[16,64], index: 18, kind: output, shape index: {}]
  %s19 = sld [smem:[#allocation0]]
  $region113: #{mamba_lm_forward.1} parent=0
    _
  %s21 = ssub.s32 1, %s19
  %s22 = scalar_select 0, %s21, %s19
  $region1: #{mamba_lm_forward.1} parent=0
    #allocation5 [shape = 'u8[8192]{0}', space=vmem, size = 0x2000, scoped, tag = 'output window, operand 0, single buffered']
    #allocation6 [shape = 's32[2]{0}', space=sflag, size = 0x8, scoped, tag = 'scoped memory for mamba_lm_forward.1']
    %23 = vsyncpa [#allocation6], 0
    loop: start=0, step=1, limit=4
    $region2: #{mamba_lm_forward.1} parent=1 // loop_pre_header
      _
    $region3: #{mamba_lm_forward.1} parent=1 // loop_header
      %s25 = sphi 0, %s29
      %p26 = scmp.ge.s32.totalorder %s25, 4
      %s33 = sphi 0, %s33
      %s35 = sphi 0, %s33
      %s36 = sphi 0, %s35
      %s50 = sphi 0, %s36
      %s54 = sphi 0, %s54
      %s56 = sphi 0, %s54
      %s57 = sphi 0, %s56
      %s71 = sphi 0, %s57
      %s77 = sphi 0, %s79
      %s80 = sphi 0, %s77
      %s81 = sphi 0, %s80
      %s97 = sphi 0, %s81
      %s103 = sphi 0, %s105
      %s106 = sphi 0, %s103
      %s107 = sphi 0, %s106
      %s123 = sphi 0, %s107
      %s129 = sphi 0, %s131
      %s132 = sphi 0, %s129
      %s133 = sphi 0, %s132
      %s149 = sphi 0, %s133
      %s155 = sphi 0, %s157
      %s158 = sphi 0, %s155
      %s159 = sphi 0, %s158
      %s175 = sphi 0, %s159
      %s181 = sphi 0, %s183
      %s184 = sphi 0, %s181
      %s185 = sphi 0, %s184
      %s201 = sphi 0, %s185
      %s207 = sphi 0, %s209
      %s210 = sphi 0, %s207
      %s211 = sphi 0, %s210
      %s227 = sphi 0, %s211
      %s233 = sphi 0, %s235
      %s236 = sphi 0, %s233
      %s237 = sphi 0, %s236
      %s253 = sphi 0, %s237
      %s259 = sphi 0, %s261
      %s262 = sphi 0, %s259
      %s263 = sphi 0, %s262
      %s279 = sphi 0, %s263
      %s285 = sphi 0, %s287
      %s288 = sphi 0, %s285
      %s289 = sphi 0, %s288
      %s305 = sphi 0, %s289
      %s311 = sphi 0, %s313
      %s314 = sphi 0, %s311
      %s315 = sphi 0, %s314
      %s331 = sphi 0, %s315
      %s337 = sphi 0, %s339
      %s340 = sphi 0, %s337
      %s341 = sphi 0, %s340
      %s357 = sphi 0, %s341
      %s363 = sphi 0, %s365
      %s366 = sphi 0, %s363
      %s367 = sphi 0, %s366
      %s383 = sphi 0, %s367
      %s389 = sphi 0, %s391
      %s392 = sphi 0, %s389
      %s393 = sphi 0, %s392
      %s409 = sphi 0, %s393
      %s413 = sphi 0, %s413
      %s415 = sphi 0, %s413
      %s416 = sphi 0, %s415
      %s430 = sphi 0, %s416
      %s434 = sphi 0, %s434
      %s436 = sphi 0, %s434
      %s437 = sphi 0, %s436
      %s451 = sphi 0, %s437
      %s455 = sphi 0, %s455
      %s457 = sphi 0, %s455
      %s458 = sphi 0, %s457
      %s472 = sphi 0, %s458
      %s476 = sphi 0, %s476
      %s478 = sphi 0, %s476
      %s479 = sphi 0, %s478
      %s493 = sphi 0, %s479
    $region4: #{mamba_lm_forward.1} parent=1 // loop_header_branch
      %28 = sbr.rel (%p26) target = $region8
    $region5: #{mamba_lm_forward.1} parent=1 // loop_body
      %s30 = ssub.s32 %s25, 1
      %s31 = ssub.s32 %s25, 2
      %s32 = sadd.s32 %s25, 1
      %s34 = sadd.s32 %s33, 1
      %p37 = scmp.eq.s32.totalorder %s25, 1
      %p38 = scmp.ne.s32.totalorder %s33, %s35
      %p39 = scmp.eq.s32.totalorder %s25, 0
      %p40 = por %p38, %p39
      %p41 = scmp.ne.s32.totalorder %s33, %s35
      %p42 = scmp.eq.s32.totalorder %s30, 1
      %p43 = por %p41, %p42
      %p44 = scmp.ne.s32.totalorder %s35, %s36
      %p45 = scmp.eq.s32.totalorder %s30, 0
      %p46 = por %p44, %p45
      %p47 = scmp.ne.s32.totalorder %s35, %s36
      %p48 = scmp.eq.s32.totalorder %s31, 1
      %p49 = por %p47, %p48
      %p51 = scmp.ne.s32.totalorder %s36, %s50
      %p52 = scmp.eq.s32.totalorder %s31, 0
      %p53 = por %p51, %p52
      %s55 = sadd.s32 %s54, 1
      %p58 = scmp.eq.s32.totalorder %s25, 1
      %p59 = scmp.ne.s32.totalorder %s54, %s56
      %p60 = scmp.eq.s32.totalorder %s25, 0
      %p61 = por %p59, %p60
      %p62 = scmp.ne.s32.totalorder %s54, %s56
      %p63 = scmp.eq.s32.totalorder %s30, 1
      %p64 = por %p62, %p63
      %p65 = scmp.ne.s32.totalorder %s56, %s57
      %p66 = scmp.eq.s32.totalorder %s30, 0
      %p67 = por %p65, %p66
      %p68 = scmp.ne.s32.totalorder %s56, %s57
      %p69 = scmp.eq.s32.totalorder %s31, 1
      %p70 = por %p68, %p69
      %p72 = scmp.ne.s32.totalorder %s57, %s71
      %p73 = scmp.eq.s32.totalorder %s31, 0
      %p74 = por %p72, %p73
      %s75 = ssub.s32 %s25, %s32
      %p76 = scmp.eq.s32.totalorder %s75, 0
      %s78 = sadd.s32 %s77, 1
      %s79 = scalar_select %p76, %s77, %s78
      %p82 = pneg %p76
      %p83 = scmp.eq.s32.totalorder %s25, 1
      %p84 = por %p82, %p83
      %p85 = scmp.ne.s32.totalorder %s77, %s80
      %p86 = scmp.eq.s32.totalorder %s25, 0
      %p87 = por %p85, %p86
      %p88 = scmp.ne.s32.totalorder %s77, %s80
      %p89 = scmp.eq.s32.totalorder %s30, 1
      %p90 = por %p88, %p89
      %p91 = scmp.ne.s32.totalorder %s80, %s81
      %p92 = scmp.eq.s32.totalorder %s30, 0
      %p93 = por %p91, %p92
      %p94 = scmp.ne.s32.totalorder %s80, %s81
      %p95 = scmp.eq.s32.totalorder %s31, 1
      %p96 = por %p94, %p95
      %p98 = scmp.ne.s32.totalorder %s81, %s97
      %p99 = scmp.eq.s32.totalorder %s31, 0
      %p100 = por %p98, %p99
      %s101 = ssub.s32 %s25, %s32
      %p102 = scmp.eq.s32.totalorder %s101, 0
      %s104 = sadd.s32 %s103, 1
      %s105 = scalar_select %p102, %s103, %s104
      %p108 = pneg %p102
      %p109 = scmp.eq.s32.totalorder %s25, 1
      %p110 = por %p108, %p109
      %p111 = scmp.ne.s32.totalorder %s103, %s106
      %p112 = scmp.eq.s32.totalorder %s25, 0
      %p113 = por %p111, %p112
      %p114 = scmp.ne.s32.totalorder %s103, %s106
      %p115 = scmp.eq.s32.totalorder %s30, 1
      %p116 = por %p114, %p115
      %p117 = scmp.ne.s32.totalorder %s106, %s107
      %p118 = scmp.eq.s32.totalorder %s30, 0
      %p119 = por %p117, %p118
      %p120 = scmp.ne.s32.totalorder %s106, %s107
      %p121 = scmp.eq.s32.totalorder %s31, 1
      %p122 = por %p120, %p121
      %p124 = scmp.ne.s32.totalorder %s107, %s123
      %p125 = scmp.eq.s32.totalorder %s31, 0
      %p126 = por %p124, %p125
      %s127 = ssub.s32 %s25, %s32
      %p128 = scmp.eq.s32.totalorder %s127, 0
      %s130 = sadd.s32 %s129, 1
      %s131 = scalar_select %p128, %s129, %s130
      %p134 = pneg %p128
      %p135 = scmp.eq.s32.totalorder %s25, 1
      %p136 = por %p134, %p135
      %p137 = scmp.ne.s32.totalorder %s129, %s132
      %p138 = scmp.eq.s32.totalorder %s25, 0
      %p139 = por %p137, %p138
      %p140 = scmp.ne.s32.totalorder %s129, %s132
      %p141 = scmp.eq.s32.totalorder %s30, 1
      %p142 = por %p140, %p141
      %p143 = scmp.ne.s32.totalorder %s132, %s133
      %p144 = scmp.eq.s32.totalorder %s30, 0
      %p145 = por %p143, %p144
      %p146 = scmp.ne.s32.totalorder %s132, %s133
      %p147 = scmp.eq.s32.totalorder %s31, 1
      %p148 = por %p146, %p147
      %p150 = scmp.ne.s32.totalorder %s133, %s149
      %p151 = scmp.eq.s32.totalorder %s31, 0
      %p152 = por %p150, %p151
      %s153 = ssub.s32 %s25, %s32
      %p154 = scmp.eq.s32.totalorder %s153, 0
      %s156 = sadd.s32 %s155, 1
      %s157 = scalar_select %p154, %s155, %s156
      %p160 = pneg %p154
      %p161 = scmp.eq.s32.totalorder %s25, 1
      %p162 = por %p160, %p161
      %p163 = scmp.ne.s32.totalorder %s155, %s158
      %p164 = scmp.eq.s32.totalorder %s25, 0
      %p165 = por %p163, %p164
      %p166 = scmp.ne.s32.totalorder %s155, %s158
      %p167 = scmp.eq.s32.totalorder %s30, 1
      %p168 = por %p166, %p167
      %p169 = scmp.ne.s32.totalorder %s158, %s159
      %p170 = scmp.eq.s32.totalorder %s30, 0
      %p171 = por %p169, %p170
      %p172 = scmp.ne.s32.totalorder %s158, %s159
      %p173 = scmp.eq.s32.totalorder %s31, 1
      %p174 = por %p172, %p173
      %p176 = scmp.ne.s32.totalorder %s159, %s175
      %p177 = scmp.eq.s32.totalorder %s31, 0
      %p178 = por %p176, %p177
      %s179 = ssub.s32 %s25, %s32
      %p180 = scmp.eq.s32.totalorder %s179, 0
      %s182 = sadd.s32 %s181, 1
      %s183 = scalar_select %p180, %s181, %s182
      %p186 = pneg %p180
      %p187 = scmp.eq.s32.totalorder %s25, 1
      %p188 = por %p186, %p187
      %p189 = scmp.ne.s32.totalorder %s181, %s184
      %p190 = scmp.eq.s32.totalorder %s25, 0
      %p191 = por %p189, %p190
      %p192 = scmp.ne.s32.totalorder %s181, %s184
      %p193 = scmp.eq.s32.totalorder %s30, 1
      %p194 = por %p192, %p193
      %p195 = scmp.ne.s32.totalorder %s184, %s185
      %p196 = scmp.eq.s32.totalorder %s30, 0
      %p197 = por %p195, %p196
      %p198 = scmp.ne.s32.totalorder %s184, %s185
      %p199 = scmp.eq.s32.totalorder %s31, 1
      %p200 = por %p198, %p199
      %p202 = scmp.ne.s32.totalorder %s185, %s201
      %p203 = scmp.eq.s32.totalorder %s31, 0
      %p204 = por %p202, %p203
      %s205 = ssub.s32 %s25, %s32
      %p206 = scmp.eq.s32.totalorder %s205, 0
      %s208 = sadd.s32 %s207, 1
      %s209 = scalar_select %p206, %s207, %s208
      %p212 = pneg %p206
      %p213 = scmp.eq.s32.totalorder %s25, 1
      %p214 = por %p212, %p213
      %p215 = scmp.ne.s32.totalorder %s207, %s210
      %p216 = scmp.eq.s32.totalorder %s25, 0
      %p217 = por %p215, %p216
      %p218 = scmp.ne.s32.totalorder %s207, %s210
      %p219 = scmp.eq.s32.totalorder %s30, 1
      %p220 = por %p218, %p219
      %p221 = scmp.ne.s32.totalorder %s210, %s211
      %p222 = scmp.eq.s32.totalorder %s30, 0
      %p223 = por %p221, %p222
      %p224 = scmp.ne.s32.totalorder %s210, %s211
      %p225 = scmp.eq.s32.totalorder %s31, 1
      %p226 = por %p224, %p225
      %p228 = scmp.ne.s32.totalorder %s211, %s227
      %p229 = scmp.eq.s32.totalorder %s31, 0
      %p230 = por %p228, %p229
      %s231 = ssub.s32 %s25, %s32
      %p232 = scmp.eq.s32.totalorder %s231, 0
      %s234 = sadd.s32 %s233, 1
      %s235 = scalar_select %p232, %s233, %s234
      %p238 = pneg %p232
      %p239 = scmp.eq.s32.totalorder %s25, 1
      %p240 = por %p238, %p239
      %p241 = scmp.ne.s32.totalorder %s233, %s236
      %p242 = scmp.eq.s32.totalorder %s25, 0
      %p243 = por %p241, %p242
      %p244 = scmp.ne.s32.totalorder %s233, %s236
      %p245 = scmp.eq.s32.totalorder %s30, 1
      %p246 = por %p244, %p245
      %p247 = scmp.ne.s32.totalorder %s236, %s237
      %p248 = scmp.eq.s32.totalorder %s30, 0
      %p249 = por %p247, %p248
      %p250 = scmp.ne.s32.totalorder %s236, %s237
      %p251 = scmp.eq.s32.totalorder %s31, 1
      %p252 = por %p250, %p251
      %p254 = scmp.ne.s32.totalorder %s237, %s253
      %p255 = scmp.eq.s32.totalorder %s31, 0
      %p256 = por %p254, %p255
      %s257 = ssub.s32 %s25, %s32
      %p258 = scmp.eq.s32.totalorder %s257, 0
      %s260 = sadd.s32 %s259, 1
      %s261 = scalar_select %p258, %s259, %s260
      %p264 = pneg %p258
      %p265 = scmp.eq.s32.totalorder %s25, 1
      %p266 = por %p264, %p265
      %p267 = scmp.ne.s32.totalorder %s259, %s262
      %p268 = scmp.eq.s32.totalorder %s25, 0
      %p269 = por %p267, %p268
      %p270 = scmp.ne.s32.totalorder %s259, %s262
      %p271 = scmp.eq.s32.totalorder %s30, 1
      %p272 = por %p270, %p271
      %p273 = scmp.ne.s32.totalorder %s262, %s263
      %p274 = scmp.eq.s32.totalorder %s30, 0
      %p275 = por %p273, %p274
      %p276 = scmp.ne.s32.totalorder %s262, %s263
      %p277 = scmp.eq.s32.totalorder %s31, 1
      %p278 = por %p276, %p277
      %p280 = scmp.ne.s32.totalorder %s263, %s279
      %p281 = scmp.eq.s32.totalorder %s31, 0
      %p282 = por %p280, %p281
      %s283 = ssub.s32 %s25, %s32
      %p284 = scmp.eq.s32.totalorder %s283, 0
      %s286 = sadd.s32 %s285, 1
      %s287 = scalar_select %p284, %s285, %s286
      %p290 = pneg %p284
      %p291 = scmp.eq.s32.totalorder %s25, 1
      %p292 = por %p290, %p291
      %p293 = scmp.ne.s32.totalorder %s285, %s288
      %p294 = scmp.eq.s32.totalorder %s25, 0
      %p295 = por %p293, %p294
      %p296 = scmp.ne.s32.totalorder %s285, %s288
      %p297 = scmp.eq.s32.totalorder %s30, 1
      %p298 = por %p296, %p297
      %p299 = scmp.ne.s32.totalorder %s288, %s289
      %p300 = scmp.eq.s32.totalorder %s30, 0
      %p301 = por %p299, %p300
      %p302 = scmp.ne.s32.totalorder %s288, %s289
      %p303 = scmp.eq.s32.totalorder %s31, 1
      %p304 = por %p302, %p303
      %p306 = scmp.ne.s32.totalorder %s289, %s305
      %p307 = scmp.eq.s32.totalorder %s31, 0
      %p308 = por %p306, %p307
      %s309 = ssub.s32 %s25, %s32
      %p310 = scmp.eq.s32.totalorder %s309, 0
      %s312 = sadd.s32 %s311, 1
      %s313 = scalar_select %p310, %s311, %s312
      %p316 = pneg %p310
      %p317 = scmp.eq.s32.totalorder %s25, 1
      %p318 = por %p316, %p317
      %p319 = scmp.ne.s32.totalorder %s311, %s314
      %p320 = scmp.eq.s32.totalorder %s25, 0
      %p321 = por %p319, %p320
      %p322 = scmp.ne.s32.totalorder %s311, %s314
      %p323 = scmp.eq.s32.totalorder %s30, 1
      %p324 = por %p322, %p323
      %p325 = scmp.ne.s32.totalorder %s314, %s315
      %p326 = scmp.eq.s32.totalorder %s30, 0
      %p327 = por %p325, %p326
      %p328 = scmp.ne.s32.totalorder %s314, %s315
      %p329 = scmp.eq.s32.totalorder %s31, 1
      %p330 = por %p328, %p329
      %p332 = scmp.ne.s32.totalorder %s315, %s331
      %p333 = scmp.eq.s32.totalorder %s31, 0
      %p334 = por %p332, %p333
      %s335 = ssub.s32 %s25, %s32
      %p336 = scmp.eq.s32.totalorder %s335, 0
      %s338 = sadd.s32 %s337, 1
      %s339 = scalar_select %p336, %s337, %s338
      %p342 = pneg %p336
      %p343 = scmp.eq.s32.totalorder %s25, 1
      %p344 = por %p342, %p343
      %p345 = scmp.ne.s32.totalorder %s337, %s340
      %p346 = scmp.eq.s32.totalorder %s25, 0
      %p347 = por %p345, %p346
      %p348 = scmp.ne.s32.totalorder %s337, %s340
      %p349 = scmp.eq.s32.totalorder %s30, 1
      %p350 = por %p348, %p349
      %p351 = scmp.ne.s32.totalorder %s340, %s341
      %p352 = scmp.eq.s32.totalorder %s30, 0
      %p353 = por %p351, %p352
      %p354 = scmp.ne.s32.totalorder %s340, %s341
      %p355 = scmp.eq.s32.totalorder %s31, 1
      %p356 = por %p354, %p355
      %p358 = scmp.ne.s32.totalorder %s341, %s357
      %p359 = scmp.eq.s32.totalorder %s31, 0
      %p360 = por %p358, %p359
      %s361 = ssub.s32 %s25, %s32
      %p362 = scmp.eq.s32.totalorder %s361, 0
      %s364 = sadd.s32 %s363, 1
      %s365 = scalar_select %p362, %s363, %s364
      %p368 = pneg %p362
      %p369 = scmp.eq.s32.totalorder %s25, 1
      %p370 = por %p368, %p369
      %p371 = scmp.ne.s32.totalorder %s363, %s366
      %p372 = scmp.eq.s32.totalorder %s25, 0
      %p373 = por %p371, %p372
      %p374 = scmp.ne.s32.totalorder %s363, %s366
      %p375 = scmp.eq.s32.totalorder %s30, 1
      %p376 = por %p374, %p375
      %p377 = scmp.ne.s32.totalorder %s366, %s367
      %p378 = scmp.eq.s32.totalorder %s30, 0
      %p379 = por %p377, %p378
      %p380 = scmp.ne.s32.totalorder %s366, %s367
      %p381 = scmp.eq.s32.totalorder %s31, 1
      %p382 = por %p380, %p381
      %p384 = scmp.ne.s32.totalorder %s367, %s383
      %p385 = scmp.eq.s32.totalorder %s31, 0
      %p386 = por %p384, %p385
      %s387 = ssub.s32 %s25, %s32
      %p388 = scmp.eq.s32.totalorder %s387, 0
      %s390 = sadd.s32 %s389, 1
      %s391 = scalar_select %p388, %s389, %s390
      %p394 = pneg %p388
      %p395 = scmp.eq.s32.totalorder %s25, 1
      %p396 = por %p394, %p395
      %p397 = scmp.ne.s32.totalorder %s389, %s392
      %p398 = scmp.eq.s32.totalorder %s25, 0
      %p399 = por %p397, %p398
      %p400 = scmp.ne.s32.totalorder %s389, %s392
      %p401 = scmp.eq.s32.totalorder %s30, 1
      %p402 = por %p400, %p401
      %p403 = scmp.ne.s32.totalorder %s392, %s393
      %p404 = scmp.eq.s32.totalorder %s30, 0
      %p405 = por %p403, %p404
      %p406 = scmp.ne.s32.totalorder %s392, %s393
      %p407 = scmp.eq.s32.totalorder %s31, 1
      %p408 = por %p406, %p407
      %p410 = scmp.ne.s32.totalorder %s393, %s409
      %p411 = scmp.eq.s32.totalorder %s31, 0
      %p412 = por %p410, %p411
      %s414 = sadd.s32 %s413, 1
      %p417 = scmp.eq.s32.totalorder %s25, 1
      %p418 = scmp.ne.s32.totalorder %s413, %s415
      %p419 = scmp.eq.s32.totalorder %s25, 0
      %p420 = por %p418, %p419
      %p421 = scmp.ne.s32.totalorder %s413, %s415
      %p422 = scmp.eq.s32.totalorder %s30, 1
      %p423 = por %p421, %p422
      %p424 = scmp.ne.s32.totalorder %s415, %s416
      %p425 = scmp.eq.s32.totalorder %s30, 0
      %p426 = por %p424, %p425
      %p427 = scmp.ne.s32.totalorder %s415, %s416
      %p428 = scmp.eq.s32.totalorder %s31, 1
      %p429 = por %p427, %p428
      %p431 = scmp.ne.s32.totalorder %s416, %s430
      %p432 = scmp.eq.s32.totalorder %s31, 0
      %p433 = por %p431, %p432
      %s435 = sadd.s32 %s434, 1
      %p438 = scmp.eq.s32.totalorder %s25, 1
      %p439 = scmp.ne.s32.totalorder %s434, %s436
      %p440 = scmp.eq.s32.totalorder %s25, 0
      %p441 = por %p439, %p440
      %p442 = scmp.ne.s32.totalorder %s434, %s436
      %p443 = scmp.eq.s32.totalorder %s30, 1
      %p444 = por %p442, %p443
      %p445 = scmp.ne.s32.totalorder %s436, %s437
      %p446 = scmp.eq.s32.totalorder %s30, 0
      %p447 = por %p445, %p446
      %p448 = scmp.ne.s32.totalorder %s436, %s437
      %p449 = scmp.eq.s32.totalorder %s31, 1
      %p450 = por %p448, %p449
      %p452 = scmp.ne.s32.totalorder %s437, %s451
      %p453 = scmp.eq.s32.totalorder %s31, 0
      %p454 = por %p452, %p453
      %s456 = sadd.s32 %s455, 1
      %p459 = scmp.eq.s32.totalorder %s25, 1
      %p460 = scmp.ne.s32.totalorder %s455, %s457
      %p461 = scmp.eq.s32.totalorder %s25, 0
      %p462 = por %p460, %p461
      %p463 = scmp.ne.s32.totalorder %s455, %s457
      %p464 = scmp.eq.s32.totalorder %s30, 1
      %p465 = por %p463, %p464
      %p466 = scmp.ne.s32.totalorder %s457, %s458
      %p467 = scmp.eq.s32.totalorder %s30, 0
      %p468 = por %p466, %p467
      %p469 = scmp.ne.s32.totalorder %s457, %s458
      %p470 = scmp.eq.s32.totalorder %s31, 1
      %p471 = por %p469, %p470
      %p473 = scmp.ne.s32.totalorder %s458, %s472
      %p474 = scmp.eq.s32.totalorder %s31, 0
      %p475 = por %p473, %p474
      %s477 = sadd.s32 %s476, 1
      %p480 = scmp.eq.s32.totalorder %s25, 1
      %p481 = scmp.ne.s32.totalorder %s476, %s478
      %p482 = scmp.eq.s32.totalorder %s25, 0
      %p483 = por %p481, %p482
      %p484 = scmp.ne.s32.totalorder %s476, %s478
      %p485 = scmp.eq.s32.totalorder %s30, 1
      %p486 = por %p484, %p485
      %p487 = scmp.ne.s32.totalorder %s478, %s479
      %p488 = scmp.eq.s32.totalorder %s30, 0
      %p489 = por %p487, %p488
      %p490 = scmp.ne.s32.totalorder %s478, %s479
      %p491 = scmp.eq.s32.totalorder %s31, 1
      %p492 = por %p490, %p491
      %p494 = scmp.ne.s32.totalorder %s479, %s493
      %p495 = scmp.eq.s32.totalorder %s31, 0
      %p496 = por %p494, %p495
      %p497 = scmp.le.s32.totalorder 1, %s25
      %p498 = scmp.lt.s32.totalorder %s25, 3
      %p499 = pnand %p497, %p498
      %p500 = pneg %p499
      // Predicated region
      $region9: #{mamba_lm_forward.1} parent=5 // pred_check
        _
      $region10: #{mamba_lm_forward.1} parent=5 // pred_check_branch
        %502 = sbr.rel (%p499) target = $region12
      $region11: #{mamba_lm_forward.1} parent=5 // pred_region
        %s503 = ssub.s32 %s25, 1
        // Predicated region
        $region13: #{mamba_lm_forward.1} parent=11 // pred_check
          %p504 = pneg %p46
        $region14: #{mamba_lm_forward.1} parent=11 // pred_check_branch
          %506 = sbr.rel (%p504) target = $region16
        $region15: #{mamba_lm_forward.1} parent=11 // pred_region
          _
        $region16: #{mamba_lm_forward.1} parent=11 // pred_fallthru
          _
        // Predicated region
        $region17: #{mamba_lm_forward.1} parent=11 // pred_check
          %p507 = pneg %p67
        $region18: #{mamba_lm_forward.1} parent=11 // pred_check_branch
          %509 = sbr.rel (%p507) target = $region20
        $region19: #{mamba_lm_forward.1} parent=11 // pred_region
          _
        $region20: #{mamba_lm_forward.1} parent=11 // pred_fallthru
          _
        // Predicated region
        $region21: #{mamba_lm_forward.1} parent=11 // pred_check
          %p510 = pneg %p426
        $region22: #{mamba_lm_forward.1} parent=11 // pred_check_branch
          %512 = sbr.rel (%p510) target = $region24
        $region23: #{mamba_lm_forward.1} parent=11 // pred_region
          _
        $region24: #{mamba_lm_forward.1} parent=11 // pred_fallthru
          _
        // Predicated region
        $region25: #{mamba_lm_forward.1} parent=11 // pred_check
          %p513 = pneg %p447
        $region26: #{mamba_lm_forward.1} parent=11 // pred_check_branch
          %515 = sbr.rel (%p513) target = $region28
        $region27: #{mamba_lm_forward.1} parent=11 // pred_region
          _
        $region28: #{mamba_lm_forward.1} parent=11 // pred_fallthru
          _
        // Predicated region
        $region29: #{mamba_lm_forward.1} parent=11 // pred_check
          %p516 = pneg %p468
        $region30: #{mamba_lm_forward.1} parent=11 // pred_check_branch
          %518 = sbr.rel (%p516) target = $region32
        $region31: #{mamba_lm_forward.1} parent=11 // pred_region
          _
        $region32: #{mamba_lm_forward.1} parent=11 // pred_fallthru
          _
      $region12: #{mamba_lm_forward.1} parent=5 // pred_fallthru
        _
      %p519 = scmp.lt.s32.totalorder %s25, 2
      // Predicated region
      $region33: #{mamba_lm_forward.1} parent=5 // pred_check
        %p520 = pneg %p519
      $region34: #{mamba_lm_forward.1} parent=5 // pred_check_branch
        %522 = sbr.rel (%p520) target = $region36
      $region35: #{mamba_lm_forward.1} parent=5 // pred_region
        // Predicated region
        $region37: #{mamba_lm_forward.1} parent=35 // pred_check
          %p523 = pneg %p87
        $region38: #{mamba_lm_forward.1} parent=35 // pred_check_branch
          %525 = sbr.rel (%p523) target = $region40
        $region39: #{mamba_lm_forward.1} parent=35 // pred_region
          %p526 = scmp.lt.s32.totalorder %s25, 1
          %s527 = scalar_select %p526, %s25, 1
          %s528 = scalar_lea.vmem %s2, %s527
        $region40: #{mamba_lm_forward.1} parent=35 // pred_fallthru
          _
        // Predicated region
        $region41: #{mamba_lm_forward.1} parent=35 // pred_check
          %p529 = pneg %p113
        $region42: #{mamba_lm_forward.1} parent=35 // pred_check_branch
          %531 = sbr.rel (%p529) target = $region44
        $region43: #{mamba_lm_forward.1} parent=35 // pred_region
          %p532 = scmp.lt.s32.totalorder %s25, 1
          %s533 = scalar_select %p532, %s25, 1
          %s534 = scalar_lea.vmem %s3, %s533
        $region44: #{mamba_lm_forward.1} parent=35 // pred_fallthru
          _
        // Predicated region
        $region45: #{mamba_lm_forward.1} parent=35 // pred_check
          %p535 = pneg %p139
        $region46: #{mamba_lm_forward.1} parent=35 // pred_check_branch
          %537 = sbr.rel (%p535) target = $region48
        $region47: #{mamba_lm_forward.1} parent=35 // pred_region
          %p538 = scmp.lt.s32.totalorder %s25, 1
          %s539 = scalar_select %p538, %s25, 1
          %s540 = smul.addr %s539, 4
          %s541 = smul.addr %s540, 8
          %s542 = scalar_lea.vmem %s4, %s541
        $region48: #{mamba_lm_forward.1} parent=35 // pred_fallthru
          _
        // Predicated region
        $region49: #{mamba_lm_forward.1} parent=35 // pred_check
          %p543 = pneg %p165
        $region50: #{mamba_lm_forward.1} parent=35 // pred_check_branch
          %545 = sbr.rel (%p543) target = $region52
        $region51: #{mamba_lm_forward.1} parent=35 // pred_region
          %p546 = scmp.lt.s32.totalorder %s25, 1
          %s547 = scalar_select %p546, %s25, 1
          %s548 = smul.addr %s547, 4
          %s549 = smul.addr %s548, 8
          %s550 = scalar_lea.vmem %s5, %s549
        $region52: #{mamba_lm_forward.1} parent=35 // pred_fallthru
          _
        // Predicated region
        $region53: #{mamba_lm_forward.1} parent=35 // pred_check
          %p551 = pneg %p191
        $region54: #{mamba_lm_forward.1} parent=35 // pred_check_branch
          %553 = sbr.rel (%p551) target = $region56
        $region55: #{mamba_lm_forward.1} parent=35 // pred_region
          %p554 = scmp.lt.s32.totalorder %s25, 1
          %s555 = scalar_select %p554, %s25, 1
          %s556 = smul.addr %s555, 4
          %s557 = scalar_lea.vmem %s6, %s556
        $region56: #{mamba_lm_forward.1} parent=35 // pred_fallthru
          _
        // Predicated region
        $region57: #{mamba_lm_forward.1} parent=35 // pred_check
          %p558 = pneg %p217
        $region58: #{mamba_lm_forward.1} parent=35 // pred_check_branch
          %560 = sbr.rel (%p558) target = $region60
        $region59: #{mamba_lm_forward.1} parent=35 // pred_region
          %p561 = scmp.lt.s32.totalorder %s25, 1
          %s562 = scalar_select %p561, %s25, 1
          %s563 = scalar_lea.vmem %s7, %s562
        $region60: #{mamba_lm_forward.1} parent=35 // pred_fallthru
          _
        // Predicated region
        $region61: #{mamba_lm_forward.1} parent=35 // pred_check
          %p564 = pneg %p243
        $region62: #{mamba_lm_forward.1} parent=35 // pred_check_branch
          %566 = sbr.rel (%p564) target = $region64
        $region63: #{mamba_lm_forward.1} parent=35 // pred_region
          %p567 = scmp.lt.s32.totalorder %s25, 1
          %s568 = scalar_select %p567, %s25, 1
          %s569 = smul.addr %s568, 8
          %s570 = smul.addr %s569, 8
          %s571 = scalar_lea.vmem %s8, %s570
        $region64: #{mamba_lm_forward.1} parent=35 // pred_fallthru
          _
        // Predicated region
        $region65: #{mamba_lm_forward.1} parent=35 // pred_check
          %p572 = pneg %p269
        $region66: #{mamba_lm_forward.1} parent=35 // pred_check_branch
          %574 = sbr.rel (%p572) target = $region68
        $region67: #{mamba_lm_forward.1} parent=35 // pred_region
          %p575 = scmp.lt.s32.totalorder %s25, 1
          %s576 = scalar_select %p575, %s25, 1
          %s577 = smul.addr %s576, 8
          %s578 = smul.addr %s577, 8
          %s579 = scalar_lea.vmem %s9, %s578
        $region68: #{mamba_lm_forward.1} parent=35 // pred_fallthru
          _
        // Predicated region
        $region69: #{mamba_lm_forward.1} parent=35 // pred_check
          %p580 = pneg %p295
        $region70: #{mamba_lm_forward.1} parent=35 // pred_check_branch
          %582 = sbr.rel (%p580) target = $region72
        $region71: #{mamba_lm_forward.1} parent=35 // pred_region
          %p583 = scmp.lt.s32.totalorder %s25, 1
          %s584 = scalar_select %p583, %s25, 1
          %s585 = smul.addr %s584, 8
          %s586 = smul.addr %s585, 8
          %s587 = scalar_lea.vmem %s10, %s586
        $region72: #{mamba_lm_forward.1} parent=35 // pred_fallthru
          _
        // Predicated region
        $region73: #{mamba_lm_forward.1} parent=35 // pred_check
          %p588 = pneg %p321
        $region74: #{mamba_lm_forward.1} parent=35 // pred_check_branch
          %590 = sbr.rel (%p588) target = $region76
        $region75: #{mamba_lm_forward.1} parent=35 // pred_region
          %p591 = scmp.lt.s32.totalorder %s25, 1
          %s592 = scalar_select %p591, %s25, 1
          %s593 = scalar_lea.vmem %s11, %s592
        $region76: #{mamba_lm_forward.1} parent=35 // pred_fallthru
          _
        // Predicated region
        $region77: #{mamba_lm_forward.1} parent=35 // pred_check
          %p594 = pneg %p347
        $region78: #{mamba_lm_forward.1} parent=35 // pred_check_branch
          %596 = sbr.rel (%p594) target = $region80
        $region79: #{mamba_lm_forward.1} parent=35 // pred_region
          %p597 = scmp.lt.s32.totalorder %s25, 1
          %s598 = scalar_select %p597, %s25, 1
          %s599 = smul.addr %s598, 2
          %s600 = smul.addr %s599, 8
          %s601 = scalar_lea.vmem %s12, %s600
        $region80: #{mamba_lm_forward.1} parent=35 // pred_fallthru
          _
        // Predicated region
        $region81: #{mamba_lm_forward.1} parent=35 // pred_check
          %p602 = pneg %p373
        $region82: #{mamba_lm_forward.1} parent=35 // pred_check_branch
          %604 = sbr.rel (%p602) target = $region84
        $region83: #{mamba_lm_forward.1} parent=35 // pred_region
          %p605 = scmp.lt.s32.totalorder %s25, 1
          %s606 = scalar_select %p605, %s25, 1
          %s607 = scalar_lea.vmem %s13, %s606
        $region84: #{mamba_lm_forward.1} parent=35 // pred_fallthru
          _
        // Predicated region
        $region85: #{mamba_lm_forward.1} parent=35 // pred_check
          %p608 = pneg %p399
        $region86: #{mamba_lm_forward.1} parent=35 // pred_check_branch
          %610 = sbr.rel (%p608) target = $region88
        $region87: #{mamba_lm_forward.1} parent=35 // pred_region
          %p611 = scmp.lt.s32.totalorder %s25, 1
          %s612 = scalar_select %p611, %s25, 1
          %s613 = smul.addr %s612, 8
          %s614 = smul.addr %s613, 8
          %s615 = scalar_lea.vmem %s14, %s614
        $region88: #{mamba_lm_forward.1} parent=35 // pred_fallthru
          _
      $region36: #{mamba_lm_forward.1} parent=5 // pred_fallthru
        _
      %p616 = scmp.le.s32.totalorder 1, %s25
      %p617 = scmp.lt.s32.totalorder %s25, 3
      %p618 = pnand %p616, %p617
      %p619 = pneg %p618
      // Predicated region
      $region89: #{mamba_lm_forward.1} parent=5 // pred_check
        _
      $region90: #{mamba_lm_forward.1} parent=5 // pred_check_branch
        %621 = sbr.rel (%p618) target = $region92
      $region91: #{mamba_lm_forward.1} parent=5 // pred_region
        %s622 = ssub.s32 %s25, 1
        %p623 = pneg %p46
        %p624 = pneg %p43
        %p625 = pneg %p67
        %p626 = pneg %p64
        %p627 = scmp.lt.s32.totalorder %s30, 1
        %s628 = scalar_select %p627, %s30, 1
        %s629 = scalar_lea.vmem %s2, %s628
        %p630 = pneg %p93
        %p631 = pneg %p90
        %p632 = scmp.lt.s32.totalorder %s30, 1
        %s633 = scalar_select %p632, %s30, 1
        %s634 = scalar_lea.vmem %s3, %s633
        %p635 = pneg %p119
        %p636 = pneg %p116
        %p637 = scmp.lt.s32.totalorder %s30, 1
        %s638 = scalar_select %p637, %s30, 1
        %s639 = smul.addr %s638, 4
        %s640 = smul.addr %s639, 8
        %s641 = scalar_lea.vmem %s4, %s640
        %p642 = pneg %p145
        %p643 = pneg %p142
        %p644 = scmp.lt.s32.totalorder %s30, 1
        %s645 = scalar_select %p644, %s30, 1
        %s646 = smul.addr %s645, 4
        %s647 = smul.addr %s646, 8
        %s648 = scalar_lea.vmem %s5, %s647
        %p649 = pneg %p171
        %p650 = pneg %p168
        %p651 = scmp.lt.s32.totalorder %s30, 1
        %s652 = scalar_select %p651, %s30, 1
        %s653 = smul.addr %s652, 4
        %s654 = scalar_lea.vmem %s6, %s653
        %p655 = pneg %p197
        %p656 = pneg %p194
        %p657 = scmp.lt.s32.totalorder %s30, 1
        %s658 = scalar_select %p657, %s30, 1
        %s659 = scalar_lea.vmem %s7, %s658
        %p660 = pneg %p223
        %p661 = pneg %p220
        %p662 = scmp.lt.s32.totalorder %s30, 1
        %s663 = scalar_select %p662, %s30, 1
        %s664 = smul.addr %s663, 8
        %s665 = smul.addr %s664, 8
        %s666 = scalar_lea.vmem %s8, %s665
        %p667 = pneg %p249
        %p668 = pneg %p246
        %p669 = scmp.lt.s32.totalorder %s30, 1
        %s670 = scalar_select %p669, %s30, 1
        %s671 = smul.addr %s670, 8
        %s672 = smul.addr %s671, 8
        %s673 = scalar_lea.vmem %s9, %s672
        %p674 = pneg %p275
        %p675 = pneg %p272
        %p676 = scmp.lt.s32.totalorder %s30, 1
        %s677 = scalar_select %p676, %s30, 1
        %s678 = smul.addr %s677, 8
        %s679 = smul.addr %s678, 8
        %s680 = scalar_lea.vmem %s10, %s679
        %p681 = pneg %p301
        %p682 = pneg %p298
        %p683 = scmp.lt.s32.totalorder %s30, 1
        %s684 = scalar_select %p683, %s30, 1
        %s685 = scalar_lea.vmem %s11, %s684
        %p686 = pneg %p327
        %p687 = pneg %p324
        %p688 = scmp.lt.s32.totalorder %s30, 1
        %s689 = scalar_select %p688, %s30, 1
        %s690 = smul.addr %s689, 2
        %s691 = smul.addr %s690, 8
        %s692 = scalar_lea.vmem %s12, %s691
        %p693 = pneg %p353
        %p694 = pneg %p350
        %p695 = scmp.lt.s32.totalorder %s30, 1
        %s696 = scalar_select %p695, %s30, 1
        %s697 = scalar_lea.vmem %s13, %s696
        %p698 = pneg %p379
        %p699 = pneg %p376
        %p700 = scmp.lt.s32.totalorder %s30, 1
        %s701 = scalar_select %p700, %s30, 1
        %s702 = smul.addr %s701, 8
        %s703 = smul.addr %s702, 8
        %s704 = scalar_lea.vmem %s14, %s703
        %p705 = pneg %p405
        %p706 = pneg %p402
        %p707 = pneg %p426
        %p708 = pneg %p423
        %p709 = pneg %p447
        %p710 = pneg %p444
        %p711 = pneg %p468
        %p712 = pneg %p465
        %p713 = pneg %p489
        %p714 = pneg %p486
        %p715 = scmp.lt.s32.totalorder %s30, 1
        %s716 = scalar_select %p715, %s30, 1
        %s717 = scalar_lea.vmem %s2, %s716
        %p718 = scmp.lt.s32.totalorder %s30, 1
        %s719 = scalar_select %p718, %s30, 1
        %s720 = scalar_lea.vmem %s3, %s719
        %p721 = scmp.lt.s32.totalorder %s30, 1
        %s722 = scalar_select %p721, %s30, 1
        %s723 = smul.addr %s722, 4
        %s724 = smul.addr %s723, 8
        %s725 = scalar_lea.vmem %s4, %s724
        %p726 = scmp.lt.s32.totalorder %s30, 1
        %s727 = scalar_select %p726, %s30, 1
        %s728 = smul.addr %s727, 4
        %s729 = smul.addr %s728, 8
        %s730 = scalar_lea.vmem %s5, %s729
        %p731 = scmp.lt.s32.totalorder %s30, 1
        %s732 = scalar_select %p731, %s30, 1
        %s733 = smul.addr %s732, 4
        %s734 = scalar_lea.vmem %s6, %s733
        %p735 = scmp.lt.s32.totalorder %s30, 1
        %s736 = scalar_select %p735, %s30, 1
        %s737 = scalar_lea.vmem %s7, %s736
        %p738 = scmp.lt.s32.totalorder %s30, 1
        %s739 = scalar_select %p738, %s30, 1
        %s740 = smul.addr %s739, 8
        %s741 = smul.addr %s740, 8
        %s742 = scalar_lea.vmem %s8, %s741
        %p743 = scmp.lt.s32.totalorder %s30, 1
        %s744 = scalar_select %p743, %s30, 1
        %s745 = smul.addr %s744, 8
        %s746 = smul.addr %s745, 8
        %s747 = scalar_lea.vmem %s9, %s746
        %p748 = scmp.lt.s32.totalorder %s30, 1
        %s749 = scalar_select %p748, %s30, 1
        %s750 = smul.addr %s749, 8
        %s751 = smul.addr %s750, 8
        %s752 = scalar_lea.vmem %s10, %s751
        %p753 = scmp.lt.s32.totalorder %s30, 1
        %s754 = scalar_select %p753, %s30, 1
        %s755 = scalar_lea.vmem %s11, %s754
        %p756 = scmp.lt.s32.totalorder %s30, 1
        %s757 = scalar_select %p756, %s30, 1
        %s758 = smul.addr %s757, 2
        %s759 = smul.addr %s758, 8
        %s760 = scalar_lea.vmem %s12, %s759
        %p761 = scmp.lt.s32.totalorder %s30, 1
        %s762 = scalar_select %p761, %s30, 1
        %s763 = scalar_lea.vmem %s13, %s762
        %p764 = scmp.lt.s32.totalorder %s30, 1
        %s765 = scalar_select %p764, %s30, 1
        %s766 = smul.addr %s765, 8
        %s767 = smul.addr %s766, 8
        %s768 = scalar_lea.vmem %s14, %s767
        %p769 = scmp.eq.s32.totalorder %s30, 0
        // Predicated region
        $region93: #{mamba_lm_forward.1} parent=91 // pred_check
          %p770 = pneg %p769
        $region94: #{mamba_lm_forward.1} parent=91 // pred_check_branch
          %772 = sbr.rel (%p770) target = $region96
        $region95: #{mamba_lm_forward.1} parent=91 // pred_region
          %v773 = vld [vmem:[%s0] sm:$0xff]
          %v774 = vld [vmem:[%s0 + $0x8] sm:$0xff]
          %vm775 = vcmask 261120
          %776 = vst.msk [vmem:[#allocation2] sm:$0xff] %vm775, %v773
          %777 = vst.msk [vmem:[#allocation2 + $0x8] sm:$0xff] %vm775, %v774
          %778 = vst.msk [vmem:[#allocation3] sm:$0xff] %vm775, 0.0
          %779 = vst.msk [vmem:[#allocation3 + $0x8] sm:$0xff] %vm775, 0.0
        $region96: #{mamba_lm_forward.1} parent=91 // pred_fallthru
          _
        %v780 = vld [vmem:[#allocation2] sm:$0xff]
        %v781 = vld [vmem:[#allocation2 + $0x8] sm:$0xff]
        %v782 = vld [vmem:[#allocation3] sm:$0xff]
        %v783 = vld [vmem:[#allocation3 + $0x8] sm:$0xff]
        %v784 = vadd.f32 %v780, %v782
        %v785 = vadd.f32 %v781, %v783
        %v786 = vld [vmem:[%s717] sm:$0x1]
        %v787 = vld [vmem:[%s720] sm:$0x1]
        %vm788 = vcmask 261120
        %v789 = vsel %vm788, %v784, 0.0
        %790 = vadd.xlane.f32.xlu0 %v789
        %v791 = vpop.xlane.xlu0 %790
        %v792 = vsel %vm788, %v785, 0.0
        %793 = vadd.xlane.f32.xlu0 %v792
        %v794 = vpop.xlane.xlu0 %793
        %v795 = vrcp.pop 32.0
        %v796 = vmul.f32 %v791, %v795
        %v797 = vmul.f32 %v794, %v795
        %v798 = vsub.f32 %v784, %v796
        %v799 = vsub.f32 %v785, %v797
        %v800 = vmul.f32 %v798, %v798
        %v801 = vmul.f32 %v799, %v799
        %v802 = vsel %vm788, %v800, 0.0
        %803 = vadd.xlane.f32.xlu0 %v802
        %v804 = vpop.xlane.xlu0 %803
        %v805 = vsel %vm788, %v801, 0.0
        %806 = vadd.xlane.f32.xlu0 %v805
        %v807 = vpop.xlane.xlu0 %806
        %v808 = vmul.f32 %v804, %v795
        %v809 = vmul.f32 %v807, %v795
        %v810 = vadd.f32 %v808, 1e-05
        %v811 = vadd.f32 %v809, 1e-05
        %v812 = vrsqrt.pop %v810
        %v813 = vrsqrt.pop %v811
        %v814 = vmul.f32 %v798, %v812
        %v815 = vmul.f32 %v799, %v813
        %v817 = vlaneseq
        %v818 = vshrl.u32 %v817, 7
        %v819 = vsub.s32 0, %v818
        %v820 = vrot.slane %v786, %v819
        %v822 = vmul.f32 %v814, %v820
        %v823 = vmul.f32 %v815, %v820
        %v825 = vlaneseq
        %v826 = vshrl.u32 %v825, 7
        %v827 = vsub.s32 0, %v826
        %v828 = vrot.slane %v787, %v827
        %v830 = vadd.f32 %v822, %v828
        %v831 = vadd.f32 %v823, %v828
        %v832 = vld [vmem:[%s725] sm:$0xff]
        %v833 = vld [vmem:[%s725 + $0x8] sm:$0xff]
        %v834 = vld [vmem:[%s725 + $0x10] sm:$0xff]
        %v835 = vld [vmem:[%s725 + $0x18] sm:$0xff]
        %v837 = vsel %vm788, %v830, 0
        %v840 = vsel %vm788, %v831, 0
        %842 = vmatprep.subr.mxu0 0.0
        %843 = vmatpush1.msra.mxu0 %v832
        %844 = vmatprep.subr.mxu0 0.0
        %845 = vmatpush1.msra.mxu0 %v833
        %846 = vmatprep.subr.mxu0 0.0
        %847 = vmatpush1.msra.mxu0 %v834
        %848 = vmatprep.subr.mxu0 0.0
        %849 = vmatpush1.msra.mxu0 %v835
        %850 = vmatprep.subr.mxu0 0.0
        %851 = vmatpush1.msra.mxu0 0.0
        %852 = vmatprep.subr.mxu0 0.0
        %853 = vmatpush1.msra.mxu0 0.0
        %854 = vmatprep.subr.mxu0 0.0
        %855 = vmatpush1.msra.mxu0 0.0
        %856 = vmatprep.subr.mxu0 0.0
        %857 = vmatpush1.msra.mxu0 0.0
        %858 = vmatprep.subr.mxu0 0.0
        %859 = vmatpush1.msra.mxu0 0.0
        %860 = vmatprep.subr.mxu0 0.0
        %861 = vmatpush1.msra.mxu0 0.0
        %862 = vmatprep.subr.mxu0 0.0
        %863 = vmatpush1.msra.mxu0 0.0
        %864 = vmatprep.subr.mxu0 0.0
        %865 = vmatpush1.msra.mxu0 0.0
        %866 = vmatprep.subr.mxu0 0.0
        %867 = vmatpush1.msra.mxu0 0.0
        %868 = vmatprep.subr.mxu0 0.0
        %869 = vmatpush1.msra.mxu0 0.0
        %870 = vmatprep.subr.mxu0 0.0
        %871 = vmatpush1.msra.mxu0 0.0
        %872 = vmatprep.subr.mxu0 0.0
        %873 = vmatpush1.msra.mxu0 0.0
        %874 = vmatprep.subr.mxu0 0.0
        %875 = vmatpush1.msra.mxu0 0.0
        %876 = vmatprep.subr.mxu0 0.0
        %877 = vmatpush1.msra.mxu0 0.0
        %878 = vmatprep.subr.mxu0 0.0
        %879 = vmatpush1.msra.mxu0 0.0
        %880 = vmatprep.subr.mxu0 0.0
        %881 = vmatpush1.msra.mxu0 0.0
        %882 = vmatprep.subr.mxu0 0.0
        %883 = vmatpush1.msra.mxu0 0.0
        %884 = vmatprep.subr.mxu0 0.0
        %885 = vmatpush1.msra.mxu0 0.0
        %886 = vmatprep.subr.mxu0 0.0
        %887 = vmatpush1.msra.mxu0 0.0
        %888 = vmatprep.subr.mxu0 0.0
        %889 = vmatpush1.msra.mxu0 0.0
        %890 = vmatprep.subr.mxu0 0.0
        %891 = vmatpush1.msra.mxu0 0.0
        %892 = vmatprep.subr.mxu0 0.0
        %893 = vmatpush1.msra.mxu0 0.0
        %894 = vmatprep.subr.mxu0 0.0
        %895 = vmatpush1.msra.mxu0 0.0
        %896 = vmatprep.subr.mxu0 0.0
        %897 = vmatpush1.msra.mxu0 0.0
        %898 = vmatprep.subr.mxu0 0.0
        %899 = vmatpush1.msra.mxu0 0.0
        %900 = vmatprep.subr.mxu0 0.0
        %901 = vmatpush1.msra.mxu0 0.0
        %902 = vmatprep.subr.mxu0 0.0
        %903 = vmatpush1.msra.mxu0 0.0
        %904 = vmatprep.subr.mxu0 0.0
        %905 = vmatpush1.msra.mxu0 0.0
        %906 = vmatprep.mubr.f32.mxu0 0.0
        %907 = vmatmul.mubr.f32.gmra.mrb[0].mxu0 %v837
        %v908 = vpop.f32.mrb[0].mxu0
        %v909 = vadd.f32 0.0, %v908
        %v910 = vpop.f32.mrb[0].mxu0
        %911 = vmatprep.mubr.f32.mxu0 0.0
        %912 = vmatmul.mubr.f32.gmra.mrb[0].mxu0 %v840
        %v913 = vpop.f32.mrb[0].mxu0
        %v914 = vadd.f32 0.0, %v913
        %v915 = vpop.f32.mrb[0].mxu0
        %916 = vdwg.mxu0
        %v917 = vld [vmem:[%s730] sm:$0xff]
        %v918 = vld [vmem:[%s730 + $0x8] sm:$0xff]
        %v919 = vld [vmem:[%s730 + $0x10] sm:$0xff]
        %v920 = vld [vmem:[%s730 + $0x18] sm:$0xff]
        %921 = vmatprep.subr.mxu0 0.0
        %922 = vmatpush1.msra.mxu0 %v917
        %923 = vmatprep.subr.mxu0 0.0
        %924 = vmatpush1.msra.mxu0 %v918
        %925 = vmatprep.subr.mxu0 0.0
        %926 = vmatpush1.msra.mxu0 %v919
        %927 = vmatprep.subr.mxu0 0.0
        %928 = vmatpush1.msra.mxu0 %v920
        %929 = vmatprep.subr.mxu0 0.0
        %930 = vmatpush1.msra.mxu0 0.0
        %931 = vmatprep.subr.mxu0 0.0
        %932 = vmatpush1.msra.mxu0 0.0
        %933 = vmatprep.subr.mxu0 0.0
        %934 = vmatpush1.msra.mxu0 0.0
        %935 = vmatprep.subr.mxu0 0.0
        %936 = vmatpush1.msra.mxu0 0.0
        %937 = vmatprep.subr.mxu0 0.0
        %938 = vmatpush1.msra.mxu0 0.0
        %939 = vmatprep.subr.mxu0 0.0
        %940 = vmatpush1.msra.mxu0 0.0
        %941 = vmatprep.subr.mxu0 0.0
        %942 = vmatpush1.msra.mxu0 0.0
        %943 = vmatprep.subr.mxu0 0.0
        %944 = vmatpush1.msra.mxu0 0.0
        %945 = vmatprep.subr.mxu0 0.0
        %946 = vmatpush1.msra.mxu0 0.0
        %947 = vmatprep.subr.mxu0 0.0
        %948 = vmatpush1.msra.mxu0 0.0
        %949 = vmatprep.subr.mxu0 0.0
        %950 = vmatpush1.msra.mxu0 0.0
        %951 = vmatprep.subr.mxu0 0.0
        %952 = vmatpush1.msra.mxu0 0.0
        %953 = vmatprep.subr.mxu0 0.0
        %954 = vmatpush1.msra.mxu0 0.0
        %955 = vmatprep.subr.mxu0 0.0
        %956 = vmatpush1.msra.mxu0 0.0
        %957 = vmatprep.subr.mxu0 0.0
        %958 = vmatpush1.msra.mxu0 0.0
        %959 = vmatprep.subr.mxu0 0.0
        %960 = vmatpush1.msra.mxu0 0.0
        %961 = vmatprep.subr.mxu0 0.0
        %962 = vmatpush1.msra.mxu0 0.0
        %963 = vmatprep.subr.mxu0 0.0
        %964 = vmatpush1.msra.mxu0 0.0
        %965 = vmatprep.subr.mxu0 0.0
        %966 = vmatpush1.msra.mxu0 0.0
        %967 = vmatprep.subr.mxu0 0.0
        %968 = vmatpush1.msra.mxu0 0.0
        %969 = vmatprep.subr.mxu0 0.0
        %970 = vmatpush1.msra.mxu0 0.0
        %971 = vmatprep.subr.mxu0 0.0
        %972 = vmatpush1.msra.mxu0 0.0
        %973 = vmatprep.subr.mxu0 0.0
        %974 = vmatpush1.msra.mxu0 0.0
        %975 = vmatprep.subr.mxu0 0.0
        %976 = vmatpush1.msra.mxu0 0.0
        %977 = vmatprep.subr.mxu0 0.0
        %978 = vmatpush1.msra.mxu0 0.0
        %979 = vmatprep.subr.mxu0 0.0
        %980 = vmatpush1.msra.mxu0 0.0
        %981 = vmatprep.subr.mxu0 0.0
        %982 = vmatpush1.msra.mxu0 0.0
        %983 = vmatprep.subr.mxu0 0.0
        %984 = vmatpush1.msra.mxu0 0.0
        %985 = vmatprep.mubr.f32.mxu0 0.0
        %986 = vmatmul.mubr.f32.gmra.mrb[0].mxu0 %v837
        %v987 = vpop.f32.mrb[0].mxu0
        %v988 = vadd.f32 0.0, %v987
        %v989 = vpop.f32.mrb[0].mxu0
        %990 = vmatprep.mubr.f32.mxu0 0.0
        %991 = vmatmul.mubr.f32.gmra.mrb[0].mxu0 %v840
        %v992 = vpop.f32.mrb[0].mxu0
        %v993 = vadd.f32 0.0, %v992
        %v994 = vpop.f32.mrb[0].mxu0
        %995 = vdwg.mxu0
        %v996 = vld [vmem:[%s734] sm:$0xf]
        %v997 = vlaneseq
        %v998 = vshrl.u32 %v997, 7
        %v999 = vsub.s32 3, %v998
        %v1000 = vrot.slane %v996, %v999
        %v1001 = vmul.f32 %v909, %v1000
        %v1002 = vmul.f32 %v914, %v1000
        %v1003 = vld [vmem:[%s1] sm:$0xff]
        %v1004 = vld [vmem:[%s1 + $0x8] sm:$0xff]
        %vm1005 = vcmask 130048
        %v1007 = vsel %vm1005, %v1003, 0
        %v1010 = vsel %vm1005, %v1004, 0
        %1012 = vmatprep.subr.mxu0 0.0
        %1013 = vmatpush1.msra.mxu0 %v909
        %1014 = vmatprep.subr.mxu0 0.0
        %1015 = vmatpush1.msra.mxu0 %v914
        %1016 = vmatprep.subr.mxu0 0.0
        %1017 = vmatpush1.msra.mxu0 0.0
        %1018 = vmatprep.subr.mxu0 0.0
        %1019 = vmatpush1.msra.mxu0 0.0
        %1020 = vmatprep.subr.mxu0 0.0
        %1021 = vmatpush1.msra.mxu0 0.0
        %1022 = vmatprep.subr.mxu0 0.0
        %1023 = vmatpush1.msra.mxu0 0.0
        %1024 = vmatprep.subr.mxu0 0.0
        %1025 = vmatpush1.msra.mxu0 0.0
        %1026 = vmatprep.subr.mxu0 0.0
        %1027 = vmatpush1.msra.mxu0 0.0
        %1028 = vmatprep.subr.mxu0 0.0
        %1029 = vmatpush1.msra.mxu0 0.0
        %1030 = vmatprep.subr.mxu0 0.0
        %1031 = vmatpush1.msra.mxu0 0.0
        %1032 = vmatprep.subr.mxu0 0.0
        %1033 = vmatpush1.msra.mxu0 0.0
        %1034 = vmatprep.subr.mxu0 0.0
        %1035 = vmatpush1.msra.mxu0 0.0
        %1036 = vmatprep.subr.mxu0 0.0
        %1037 = vmatpush1.msra.mxu0 0.0
        %1038 = vmatprep.subr.mxu0 0.0
        %1039 = vmatpush1.msra.mxu0 0.0
        %1040 = vmatprep.subr.mxu0 0.0
        %1041 = vmatpush1.msra.mxu0 0.0
        %1042 = vmatprep.subr.mxu0 0.0
        %1043 = vmatpush1.msra.mxu0 0.0
        %1044 = vmatprep.subr.mxu0 0.0
        %1045 = vmatpush1.msra.mxu0 0.0
        %1046 = vmatprep.subr.mxu0 0.0
        %1047 = vmatpush1.msra.mxu0 0.0
        %1048 = vmatprep.subr.mxu0 0.0
        %1049 = vmatpush1.msra.mxu0 0.0
        %1050 = vmatprep.subr.mxu0 0.0
        %1051 = vmatpush1.msra.mxu0 0.0
        %1052 = vmatprep.subr.mxu0 0.0
        %1053 = vmatpush1.msra.mxu0 0.0
        %1054 = vmatprep.subr.mxu0 0.0
        %1055 = vmatpush1.msra.mxu0 0.0
        %1056 = vmatprep.subr.mxu0 0.0
        %1057 = vmatpush1.msra.mxu0 0.0
        %1058 = vmatprep.subr.mxu0 0.0
        %1059 = vmatpush1.msra.mxu0 0.0
        %1060 = vmatprep.subr.mxu0 0.0
        %1061 = vmatpush1.msra.mxu0 0.0
        %1062 = vmatprep.subr.mxu0 0.0
        %1063 = vmatpush1.msra.mxu0 0.0
        %1064 = vmatprep.subr.mxu0 0.0
        %1065 = vmatpush1.msra.mxu0 0.0
        %1066 = vmatprep.subr.mxu0 0.0
        %1067 = vmatpush1.msra.mxu0 0.0
        %1068 = vmatprep.subr.mxu0 0.0
        %1069 = vmatpush1.msra.mxu0 0.0
        %1070 = vmatprep.subr.mxu0 0.0
        %1071 = vmatpush1.msra.mxu0 0.0
        %1072 = vmatprep.subr.mxu0 0.0
        %1073 = vmatpush1.msra.mxu0 0.0
        %1074 = vmatprep.subr.mxu0 0.0
        %1075 = vmatpush1.msra.mxu0 0.0
        %1076 = vmatprep.mubr.f32.mxu0 0.0
        %1077 = vmatmul.mubr.f32.gmra.mrb[0].mxu0 %v1007
        %v1078 = vpop.f32.mrb[0].mxu0
        %v1079 = vadd.f32 0.0, %v1078
        %v1080 = vpop.f32.mrb[0].mxu0
        %1081 = vmatprep.mubr.f32.mxu0 0.0
        %1082 = vmatmul.mubr.f32.gmra.mrb[0].mxu0 %v1010
        %v1083 = vpop.f32.mrb[0].mxu0
        %v1084 = vadd.f32 0.0, %v1083
        %v1085 = vpop.f32.mrb[0].mxu0
        %1086 = vdwg.mxu0
        %v1087 = vlaneseq
        %v1088 = vshrl.u32 %v1087, 7
        %v1089 = vsub.s32 2, %v1088
        %v1090 = vrot.slane %v996, %v1089
        %v1091 = vmul.f32 %v1079, %v1090
        %v1092 = vmul.f32 %v1084, %v1090
        %v1093 = vadd.f32 %v1001, %v1091
        %v1094 = vadd.f32 %v1002, %v1092
        %s1095 = scalar_lea.vmem %s1, 16
        %v1096 = vld [vmem:[%s1095] sm:$0xff]
        %v1097 = vld [vmem:[%s1095 + $0x8] sm:$0xff]
        %v1099 = vsel %vm1005, %v1096, 0
        %v1102 = vsel %vm1005, %v1097, 0
        %1104 = vmatprep.subr.mxu0 0.0
        %1105 = vmatpush1.msra.mxu0 %v909
        %1106 = vmatprep.subr.mxu0 0.0
        %1107 = vmatpush1.msra.mxu0 %v914
        %1108 = vmatprep.subr.mxu0 0.0
        %1109 = vmatpush1.msra.mxu0 0.0
        %1110 = vmatprep.subr.mxu0 0.0
        %1111 = vmatpush1.msra.mxu0 0.0
        %1112 = vmatprep.subr.mxu0 0.0
        %1113 = vmatpush1.msra.mxu0 0.0
        %1114 = vmatprep.subr.mxu0 0.0
        %1115 = vmatpush1.msra.mxu0 0.0
        %1116 = vmatprep.subr.mxu0 0.0
        %1117 = vmatpush1.msra.mxu0 0.0
        %1118 = vmatprep.subr.mxu0 0.0
        %1119 = vmatpush1.msra.mxu0 0.0
        %1120 = vmatprep.subr.mxu0 0.0
        %1121 = vmatpush1.msra.mxu0 0.0
        %1122 = vmatprep.subr.mxu0 0.0
        %1123 = vmatpush1.msra.mxu0 0.0
        %1124 = vmatprep.subr.mxu0 0.0
        %1125 = vmatpush1.msra.mxu0 0.0
        %1126 = vmatprep.subr.mxu0 0.0
        %1127 = vmatpush1.msra.mxu0 0.0
        %1128 = vmatprep.subr.mxu0 0.0
        %1129 = vmatpush1.msra.mxu0 0.0
        %1130 = vmatprep.subr.mxu0 0.0
        %1131 = vmatpush1.msra.mxu0 0.0
        %1132 = vmatprep.subr.mxu0 0.0
        %1133 = vmatpush1.msra.mxu0 0.0
        %1134 = vmatprep.subr.mxu0 0.0
        %1135 = vmatpush1.msra.mxu0 0.0
        %1136 = vmatprep.subr.mxu0 0.0
        %1137 = vmatpush1.msra.mxu0 0.0
        %1138 = vmatprep.subr.mxu0 0.0
        %1139 = vmatpush1.msra.mxu0 0.0
        %1140 = vmatprep.subr.mxu0 0.0
        %1141 = vmatpush1.msra.mxu0 0.0
        %1142 = vmatprep.subr.mxu0 0.0
        %1143 = vmatpush1.msra.mxu0 0.0
        %1144 = vmatprep.subr.mxu0 0.0
        %1145 = vmatpush1.msra.mxu0 0.0
        %1146 = vmatprep.subr.mxu0 0.0
        %1147 = vmatpush1.msra.mxu0 0.0
        %1148 = vmatprep.subr.mxu0 0.0
        %1149 = vmatpush1.msra.mxu0 0.0
        %1150 = vmatprep.subr.mxu0 0.0
        %1151 = vmatpush1.msra.mxu0 0.0
        %1152 = vmatprep.subr.mxu0 0.0
        %1153 = vmatpush1.msra.mxu0 0.0
        %1154 = vmatprep.subr.mxu0 0.0
        %1155 = vmatpush1.msra.mxu0 0.0
        %1156 = vmatprep.subr.mxu0 0.0
        %1157 = vmatpush1.msra.mxu0 0.0
        %1158 = vmatprep.subr.mxu0 0.0
        %1159 = vmatpush1.msra.mxu0 0.0
        %1160 = vmatprep.subr.mxu0 0.0
        %1161 = vmatpush1.msra.mxu0 0.0
        %1162 = vmatprep.subr.mxu0 0.0
        %1163 = vmatpush1.msra.mxu0 0.0
        %1164 = vmatprep.subr.mxu0 0.0
        %1165 = vmatpush1.msra.mxu0 0.0
        %1166 = vmatprep.subr.mxu0 0.0
        %1167 = vmatpush1.msra.mxu0 0.0
        %1168 = vmatprep.mubr.f32.mxu0 0.0
        %1169 = vmatmul.mubr.f32.gmra.mrb[0].mxu0 %v1099
        %v1170 = vpop.f32.mrb[0].mxu0
        %v1171 = vadd.f32 0.0, %v1170
        %v1172 = vpop.f32.mrb[0].mxu0
        %1173 = vmatprep.mubr.f32.mxu0 0.0
        %1174 = vmatmul.mubr.f32.gmra.mrb[0].mxu0 %v1102
        %v1175 = vpop.f32.mrb[0].mxu0
        %v1176 = vadd.f32 0.0, %v1175
        %v1177 = vpop.f32.mrb[0].mxu0
        %1178 = vdwg.mxu0
        %v1179 = vlaneseq
        %v1180 = vshrl.u32 %v1179, 7
        %v1181 = vsub.s32 1, %v1180
        %v1182 = vrot.slane %v996, %v1181
        %v1183 = vmul.f32 %v1171, %v1182
        %v1184 = vmul.f32 %v1176, %v1182
        %v1185 = vadd.f32 %v1093, %v1183
        %v1186 = vadd.f32 %v1094, %v1184
        %s1187 = scalar_lea.vmem %s1, 32
        %v1188 = vld [vmem:[%s1187] sm:$0xff]
        %v1189 = vld [vmem:[%s1187 + $0x8] sm:$0xff]
        %v1191 = vsel %vm1005, %v1188, 0
        %v1194 = vsel %vm1005, %v1189, 0
        %1196 = vmatprep.subr.mxu0 0.0
        %1197 = vmatpush1.msra.mxu0 %v909
        %1198 = vmatprep.subr.mxu0 0.0
        %1199 = vmatpush1.msra.mxu0 %v914
        %1200 = vmatprep.subr.mxu0 0.0
        %1201 = vmatpush1.msra.mxu0 0.0
        %1202 = vmatprep.subr.mxu0 0.0
        %1203 = vmatpush1.msra.mxu0 0.0
        %1204 = vmatprep.subr.mxu0 0.0
        %1205 = vmatpush1.msra.mxu0 0.0
        %1206 = vmatprep.subr.mxu0 0.0
        %1207 = vmatpush1.msra.mxu0 0.0
        %1208 = vmatprep.subr.mxu0 0.0
        %1209 = vmatpush1.msra.mxu0 0.0
        %1210 = vmatprep.subr.mxu0 0.0
        %1211 = vmatpush1.msra.mxu0 0.0
        %1212 = vmatprep.subr.mxu0 0.0
        %1213 = vmatpush1.msra.mxu0 0.0
        %1214 = vmatprep.subr.mxu0 0.0
        %1215 = vmatpush1.msra.mxu0 0.0
        %1216 = vmatprep.subr.mxu0 0.0
        %1217 = vmatpush1.msra.mxu0 0.0
        %1218 = vmatprep.subr.mxu0 0.0
        %1219 = vmatpush1.msra.mxu0 0.0
        %1220 = vmatprep.subr.mxu0 0.0
        %1221 = vmatpush1.msra.mxu0 0.0
        %1222 = vmatprep.subr.mxu0 0.0
        %1223 = vmatpush1.msra.mxu0 0.0
        %1224 = vmatprep.subr.mxu0 0.0
        %1225 = vmatpush1.msra.mxu0 0.0
        %1226 = vmatprep.subr.mxu0 0.0
        %1227 = vmatpush1.msra.mxu0 0.0
        %1228 = vmatprep.subr.mxu0 0.0
        %1229 = vmatpush1.msra.mxu0 0.0
        %1230 = vmatprep.subr.mxu0 0.0
        %1231 = vmatpush1.msra.mxu0 0.0
        %1232 = vmatprep.subr.mxu0 0.0
        %1233 = vmatpush1.msra.mxu0 0.0
        %1234 = vmatprep.subr.mxu0 0.0
        %1235 = vmatpush1.msra.mxu0 0.0
        %1236 = vmatprep.subr.mxu0 0.0
        %1237 = vmatpush1.msra.mxu0 0.0
        %1238 = vmatprep.subr.mxu0 0.0
        %1239 = vmatpush1.msra.mxu0 0.0
        %1240 = vmatprep.subr.mxu0 0.0
        %1241 = vmatpush1.msra.mxu0 0.0
        %1242 = vmatprep.subr.mxu0 0.0
        %1243 = vmatpush1.msra.mxu0 0.0
        %1244 = vmatprep.subr.mxu0 0.0
        %1245 = vmatpush1.msra.mxu0 0.0
        %1246 = vmatprep.subr.mxu0 0.0
        %1247 = vmatpush1.msra.mxu0 0.0
        %1248 = vmatprep.subr.mxu0 0.0
        %1249 = vmatpush1.msra.mxu0 0.0
        %1250 = vmatprep.subr.mxu0 0.0
        %1251 = vmatpush1.msra.mxu0 0.0
        %1252 = vmatprep.subr.mxu0 0.0
        %1253 = vmatpush1.msra.mxu0 0.0
        %1254 = vmatprep.subr.mxu0 0.0
        %1255 = vmatpush1.msra.mxu0 0.0
        %1256 = vmatprep.subr.mxu0 0.0
        %1257 = vmatpush1.msra.mxu0 0.0
        %1258 = vmatprep.subr.mxu0 0.0
        %1259 = vmatpush1.msra.mxu0 0.0
        %1260 = vmatprep.mubr.f32.mxu0 0.0
        %1261 = vmatmul.mubr.f32.gmra.mrb[0].mxu0 %v1191
        %v1262 = vpop.f32.mrb[0].mxu0
        %v1263 = vadd.f32 0.0, %v1262
        %v1264 = vpop.f32.mrb[0].mxu0
        %1265 = vmatprep.mubr.f32.mxu0 0.0
        %1266 = vmatmul.mubr.f32.gmra.mrb[0].mxu0 %v1194
        %v1267 = vpop.f32.mrb[0].mxu0
        %v1268 = vadd.f32 0.0, %v1267
        %v1269 = vpop.f32.mrb[0].mxu0
        %1270 = vdwg.mxu0
        %v1271 = vlaneseq
        %v1272 = vshrl.u32 %v1271, 7
        %v1273 = vsub.s32 0, %v1272
        %v1274 = vrot.slane %v996, %v1273
        %v1275 = vmul.f32 %v1263, %v1274
        %v1276 = vmul.f32 %v1268, %v1274
        %v1277 = vadd.f32 %v1185, %v1275
        %v1278 = vadd.f32 %v1186, %v1276
        %v1279 = vld [vmem:[%s737] sm:$0x1]
        %v1281 = vlaneseq
        %v1282 = vshrl.u32 %v1281, 7
        %v1283 = vsub.s32 0, %v1282
        %v1284 = vrot.slane %v1279, %v1283
        %v1286 = vadd.f32 %v1277, %v1284
        %v1287 = vadd.f32 %v1278, %v1284
        %v1288 = vxor.u32 %v1286, 2147483648
        %v1289 = vxor.u32 %v1287, 2147483648
        %v1290 = vmul.f32 %v1288, 1.442695
        %v1291 = vpow.pop %v1290
        %v1292 = vmul.f32 %v1289, 1.442695
        %v1293 = vpow.pop %v1292
        %v1294 = vadd.f32 %v1291, 1.0
        %v1295 = vadd.f32 %v1293, 1.0
        %v1296 = vrcp.pop %v1294
        %v1297 = vmul.f32 1.0, %v1296
        %v1298 = vrcp.pop %v1295
        %v1299 = vmul.f32 1.0, %v1298
        %v1300 = vmul.f32 %v1286, %v1297
        %v1301 = vmul.f32 %v1287, %v1299
        %v1302 = vld [vmem:[%s742] sm:$0xff]
        %v1303 = vld [vmem:[%s742 + $0x8] sm:$0xff]
        %v1304 = vld [vmem:[%s742 + $0x10] sm:$0xff]
        %v1305 = vld [vmem:[%s742 + $0x18] sm:$0xff]
        %v1306 = vld [vmem:[%s742 + $0x20] sm:$0xff]
        %v1307 = vld [vmem:[%s742 + $0x28] sm:$0xff]
        %v1308 = vld [vmem:[%s742 + $0x30] sm:$0xff]
        %v1309 = vld [vmem:[%s742 + $0x38] sm:$0xff]
        %vm1310 = vcmask 523264
        %v1312 = vsel %vm1310, %v1300, 0
        %v1315 = vsel %vm1310, %v1301, 0
        %1317 = vmatprep.subr.mxu0 0.0
        %1318 = vmatpush1.msra.mxu0 %v1302
        %1319 = vmatprep.subr.mxu0 0.0
        %1320 = vmatpush1.msra.mxu0 %v1303
        %1321 = vmatprep.subr.mxu0 0.0
        %1322 = vmatpush1.msra.mxu0 %v1304
        %1323 = vmatprep.subr.mxu0 0.0
        %1324 = vmatpush1.msra.mxu0 %v1305
        %1325 = vmatprep.subr.mxu0 0.0
        %1326 = vmatpush1.msra.mxu0 %v1306
        %1327 = vmatprep.subr.mxu0 0.0
        %1328 = vmatpush1.msra.mxu0 %v1307
        %1329 = vmatprep.subr.mxu0 0.0
        %1330 = vmatpush1.msra.mxu0 %v1308
        %1331 = vmatprep.subr.mxu0 0.0
        %1332 = vmatpush1.msra.mxu0 %v1309
        %1333 = vmatprep.subr.mxu0 0.0
        %1334 = vmatpush1.msra.mxu0 0.0
        %1335 = vmatprep.subr.mxu0 0.0
        %1336 = vmatpush1.msra.mxu0 0.0
        %1337 = vmatprep.subr.mxu0 0.0
        %1338 = vmatpush1.msra.mxu0 0.0
        %1339 = vmatprep.subr.mxu0 0.0
        %1340 = vmatpush1.msra.mxu0 0.0
        %1341 = vmatprep.subr.mxu0 0.0
        %1342 = vmatpush1.msra.mxu0 0.0
        %1343 = vmatprep.subr.mxu0 0.0
        %1344 = vmatpush1.msra.mxu0 0.0
        %1345 = vmatprep.subr.mxu0 0.0
        %1346 = vmatpush1.msra.mxu0 0.0
        %1347 = vmatprep.subr.mxu0 0.0
        %1348 = vmatpush1.msra.mxu0 0.0
        %1349 = vmatprep.subr.mxu0 0.0
        %1350 = vmatpush1.msra.mxu0 0.0
        %1351 = vmatprep.subr.mxu0 0.0
        %1352 = vmatpush1.msra.mxu0 0.0
        %1353 = vmatprep.subr.mxu0 0.0
        %1354 = vmatpush1.msra.mxu0 0.0
        %1355 = vmatprep.subr.mxu0 0.0
        %1356 = vmatpush1.msra.mxu0 0.0
        %1357 = vmatprep.subr.mxu0 0.0
        %1358 = vmatpush1.msra.mxu0 0.0
        %1359 = vmatprep.subr.mxu0 0.0
        %1360 = vmatpush1.msra.mxu0 0.0
        %1361 = vmatprep.subr.mxu0 0.0
        %1362 = vmatpush1.msra.mxu0 0.0
        %1363 = vmatprep.subr.mxu0 0.0
        %1364 = vmatpush1.msra.mxu0 0.0
        %1365 = vmatprep.subr.mxu0 0.0
        %1366 = vmatpush1.msra.mxu0 0.0
        %1367 = vmatprep.subr.mxu0 0.0
        %1368 = vmatpush1.msra.mxu0 0.0
        %1369 = vmatprep.subr.mxu0 0.0
        %1370 = vmatpush1.msra.mxu0 0.0
        %1371 = vmatprep.subr.mxu0 0.0
        %1372 = vmatpush1.msra.mxu0 0.0
        %1373 = vmatprep.subr.mxu0 0.0
        %1374 = vmatpush1.msra.mxu0 0.0
        %1375 = vmatprep.subr.mxu0 0.0
        %1376 = vmatpush1.msra.mxu0 0.0
        %1377 = vmatprep.subr.mxu0 0.0
        %1378 = vmatpush1.msra.mxu0 0.0
        %1379 = vmatprep.subr.mxu0 0.0
        %1380 = vmatpush1.msra.mxu0 0.0
        %1381 = vmatprep.mubr.f32.mxu0 0.0
        %1382 = vmatmul.mubr.f32.gmra.mrb[0].mxu0 %v1312
        %v1383 = vpop.f32.mrb[0].mxu0
        %v1384 = vadd.f32 0.0, %v1383
        %v1385 = vpop.f32.mrb[0].mxu0
        %1386 = vmatprep.mubr.f32.mxu0 0.0
        %1387 = vmatmul.mubr.f32.gmra.mrb[0].mxu0 %v1315
        %v1388 = vpop.f32.mrb[0].mxu0
        %v1389 = vadd.f32 0.0, %v1388
        %v1390 = vpop.f32.mrb[0].mxu0
        %1391 = vdwg.mxu0
        %v1392 = vld [vmem:[%s747] sm:$0xff]
        %v1393 = vld [vmem:[%s747 + $0x8] sm:$0xff]
        %v1394 = vld [vmem:[%s747 + $0x10] sm:$0xff]
        %v1395 = vld [vmem:[%s747 + $0x18] sm:$0xff]
        %v1396 = vld [vmem:[%s747 + $0x20] sm:$0xff]
        %v1397 = vld [vmem:[%s747 + $0x28] sm:$0xff]
        %v1398 = vld [vmem:[%s747 + $0x30] sm:$0xff]
        %v1399 = vld [vmem:[%s747 + $0x38] sm:$0xff]
        %1400 = vmatprep.subr.mxu0 0.0
        %1401 = vmatpush1.msra.mxu0 %v1392
        %1402 = vmatprep.subr.mxu0 0.0
        %1403 = vmatpush1.msra.mxu0 %v1393
        %1404 = vmatprep.subr.mxu0 0.0
        %1405 = vmatpush1.msra.mxu0 %v1394
        %1406 = vmatprep.subr.mxu0 0.0
        %1407 = vmatpush1.msra.mxu0 %v1395
        %1408 = vmatprep.subr.mxu0 0.0
        %1409 = vmatpush1.msra.mxu0 %v1396
        %1410 = vmatprep.subr.mxu0 0.0
        %1411 = vmatpush1.msra.mxu0 %v1397
        %1412 = vmatprep.subr.mxu0 0.0
        %1413 = vmatpush1.msra.mxu0 %v1398
        %1414 = vmatprep.subr.mxu0 0.0
        %1415 = vmatpush1.msra.mxu0 %v1399
        %1416 = vmatprep.subr.mxu0 0.0
        %1417 = vmatpush1.msra.mxu0 0.0
        %1418 = vmatprep.subr.mxu0 0.0
        %1419 = vmatpush1.msra.mxu0 0.0
        %1420 = vmatprep.subr.mxu0 0.0
        %1421 = vmatpush1.msra.mxu0 0.0
        %1422 = vmatprep.subr.mxu0 0.0
        %1423 = vmatpush1.msra.mxu0 0.0
        %1424 = vmatprep.subr.mxu0 0.0
        %1425 = vmatpush1.msra.mxu0 0.0
        %1426 = vmatprep.subr.mxu0 0.0
        %1427 = vmatpush1.msra.mxu0 0.0
        %1428 = vmatprep.subr.mxu0 0.0
        %1429 = vmatpush1.msra.mxu0 0.0
        %1430 = vmatprep.subr.mxu0 0.0
        %1431 = vmatpush1.msra.mxu0 0.0
        %1432 = vmatprep.subr.mxu0 0.0
        %1433 = vmatpush1.msra.mxu0 0.0
        %1434 = vmatprep.subr.mxu0 0.0
        %1435 = vmatpush1.msra.mxu0 0.0
        %1436 = vmatprep.subr.mxu0 0.0
        %1437 = vmatpush1.msra.mxu0 0.0
        %1438 = vmatprep.subr.mxu0 0.0
        %1439 = vmatpush1.msra.mxu0 0.0
        %1440 = vmatprep.subr.mxu0 0.0
        %1441 = vmatpush1.msra.mxu0 0.0
        %1442 = vmatprep.subr.mxu0 0.0
        %1443 = vmatpush1.msra.mxu0 0.0
        %1444 = vmatprep.subr.mxu0 0.0
        %1445 = vmatpush1.msra.mxu0 0.0
        %1446 = vmatprep.subr.mxu0 0.0
        %1447 = vmatpush1.msra.mxu0 0.0
        %1448 = vmatprep.subr.mxu0 0.0
        %1449 = vmatpush1.msra.mxu0 0.0
        %1450 = vmatprep.subr.mxu0 0.0
        %1451 = vmatpush1.msra.mxu0 0.0
        %1452 = vmatprep.subr.mxu0 0.0
        %1453 = vmatpush1.msra.mxu0 0.0
        %1454 = vmatprep.subr.mxu0 0.0
        %1455 = vmatpush1.msra.mxu0 0.0
        %1456 = vmatprep.subr.mxu0 0.0
        %1457 = vmatpush1.msra.mxu0 0.0
        %1458 = vmatprep.subr.mxu0 0.0
        %1459 = vmatpush1.msra.mxu0 0.0
        %1460 = vmatprep.subr.mxu0 0.0
        %1461 = vmatpush1.msra.mxu0 0.0
        %1462 = vmatprep.subr.mxu0 0.0
        %1463 = vmatpush1.msra.mxu0 0.0
        %1464 = vmatprep.mubr.f32.mxu0 0.0
        %1465 = vmatmul.mubr.f32.gmra.mrb[0].mxu0 %v1312
        %v1466 = vpop.f32.mrb[0].mxu0
        %v1467 = vadd.f32 0.0, %v1466
        %v1468 = vpop.f32.mrb[0].mxu0
        %1469 = vmatprep.mubr.f32.mxu0 0.0
        %1470 = vmatmul.mubr.f32.gmra.mrb[0].mxu0 %v1315
        %v1471 = vpop.f32.mrb[0].mxu0
        %v1472 = vadd.f32 0.0, %v1471
        %v1473 = vpop.f32.mrb[0].mxu0
        %1474 = vdwg.mxu0
        %v1475 = vld [vmem:[%s752] sm:$0xff]
        %v1476 = vld [vmem:[%s752 + $0x8] sm:$0xff]
        %v1477 = vld [vmem:[%s752 + $0x10] sm:$0xff]
        %v1478 = vld [vmem:[%s752 + $0x18] sm:$0xff]
        %v1479 = vld [vmem:[%s752 + $0x20] sm:$0xff]
        %v1480 = vld [vmem:[%s752 + $0x28] sm:$0xff]
        %v1481 = vld [vmem:[%s752 + $0x30] sm:$0xff]
        %v1482 = vld [vmem:[%s752 + $0x38] sm:$0xff]
        %v1483 = vld [vmem:[%s755] sm:$0x1]
        %v1485 = vlaneseq
        %v1486 = vshrl.u32 %v1485, 7
        %v1487 = vsub.s32 0, %v1486
        %v1488 = vrot.slane %v1483, %v1487
        %1490 = vmatprep.subr.mxu0 0.0
        %1491 = vmatpush1.msra.mxu0 %v1475
        %1492 = vmatprep.subr.mxu0 0.0
        %1493 = vmatpush1.msra.mxu0 %v1476
        %1494 = vmatprep.subr.mxu0 0.0
        %1495 = vmatpush1.msra.mxu0 %v1477
        %1496 = vmatprep.subr.mxu0 0.0
        %1497 = vmatpush1.msra.mxu0 %v1478
        %1498 = vmatprep.subr.mxu0 0.0
        %1499 = vmatpush1.msra.mxu0 %v1479
        %1500 = vmatprep.subr.mxu0 0.0
        %1501 = vmatpush1.msra.mxu0 %v1480
        %1502 = vmatprep.subr.mxu0 0.0
        %1503 = vmatpush1.msra.mxu0 %v1481
        %1504 = vmatprep.subr.mxu0 0.0
        %1505 = vmatpush1.msra.mxu0 %v1482
        %1506 = vmatprep.subr.mxu0 0.0
        %1507 = vmatpush1.msra.mxu0 0.0
        %1508 = vmatprep.subr.mxu0 0.0
        %1509 = vmatpush1.msra.mxu0 0.0
        %1510 = vmatprep.subr.mxu0 0.0
        %1511 = vmatpush1.msra.mxu0 0.0
        %1512 = vmatprep.subr.mxu0 0.0
        %1513 = vmatpush1.msra.mxu0 0.0
        %1514 = vmatprep.subr.mxu0 0.0
        %1515 = vmatpush1.msra.mxu0 0.0
        %1516 = vmatprep.subr.mxu0 0.0
        %1517 = vmatpush1.msra.mxu0 0.0
        %1518 = vmatprep.subr.mxu0 0.0
        %1519 = vmatpush1.msra.mxu0 0.0
        %1520 = vmatprep.subr.mxu0 0.0
        %1521 = vmatpush1.msra.mxu0 0.0
        %1522 = vmatprep.subr.mxu0 0.0
        %1523 = vmatpush1.msra.mxu0 0.0
        %1524 = vmatprep.subr.mxu0 0.0
        %1525 = vmatpush1.msra.mxu0 0.0
        %1526 = vmatprep.subr.mxu0 0.0
        %1527 = vmatpush1.msra.mxu0 0.0
        %1528 = vmatprep.subr.mxu0 0.0
        %1529 = vmatpush1.msra.mxu0 0.0
        %1530 = vmatprep.subr.mxu0 0.0
        %1531 = vmatpush1.msra.mxu0 0.0
        %1532 = vmatprep.subr.mxu0 0.0
        %1533 = vmatpush1.msra.mxu0 0.0
        %1534 = vmatprep.subr.mxu0 0.0
        %1535 = vmatpush1.msra.mxu0 0.0
        %1536 = vmatprep.subr.mxu0 0.0
        %1537 = vmatpush1.msra.mxu0 0.0
        %1538 = vmatprep.subr.mxu0 0.0
        %1539 = vmatpush1.msra.mxu0 0.0
        %1540 = vmatprep.subr.mxu0 0.0
        %1541 = vmatpush1.msra.mxu0 0.0
        %1542 = vmatprep.subr.mxu0 0.0
        %1543 = vmatpush1.msra.mxu0 0.0
        %1544 = vmatprep.subr.mxu0 0.0
        %1545 = vmatpush1.msra.mxu0 0.0
        %1546 = vmatprep.subr.mxu0 0.0
        %1547 = vmatpush1.msra.mxu0 0.0
        %1548 = vmatprep.subr.mxu0 0.0
        %1549 = vmatpush1.msra.mxu0 0.0
        %1550 = vmatprep.subr.mxu0 0.0
        %1551 = vmatpush1.msra.mxu0 0.0
        %1552 = vmatprep.subr.mxu0 0.0
        %1553 = vmatpush1.msra.mxu0 0.0
        %1554 = vmatprep.mubr.f32.mxu0 0.0
        %1555 = vmatmul.mubr.f32.gmra.mrb[0].mxu0 %v1312
        %v1556 = vpop.f32.mrb[0].mxu0
        %v1557 = vadd.f32 %v1488, %v1556
        %v1558 = vpop.f32.mrb[0].mxu0
        %1559 = vmatprep.mubr.f32.mxu0 0.0
        %1560 = vmatmul.mubr.f32.gmra.mrb[0].mxu0 %v1315
        %v1561 = vpop.f32.mrb[0].mxu0
        %v1562 = vadd.f32 %v1488, %v1561
        %v1563 = vpop.f32.mrb[0].mxu0
        %1564 = vdwg.mxu0
        %vm1565 = vcmp.gt.f32.partialorder %v1557, 20.0
        %vm1566 = vcmp.gt.f32.partialorder %v1562, 20.0
        %v1567 = vmul.f32 %v1557, 1.442695
        %v1568 = vpow.pop %v1567
        %v1569 = vmul.f32 %v1562, 1.442695
        %v1570 = vpow.pop %v1569
        %v1571 = vadd.f32 %v1568, 1.0
        %v1572 = vlog2.pop %v1571
        %v1573 = vmul.f32 %v1572, 0.6931472
        %v1574 = vmul.f32 -0.5, %v1568
        %v1575 = vadd.f32 %v1574, 1.0
        %v1576 = vmul.f32 %v1575, %v1568
        %v1577 = vand.u32 2147483647, %v1568
        %vm1578 = vcmp.lt.f32.partialorder %v1577, 0.0004427343
        %v1579 = vsel %vm1578, %v1576, %v1573
        %v1580 = vadd.f32 %v1570, 1.0
        %v1581 = vlog2.pop %v1580
        %v1582 = vmul.f32 %v1581, 0.6931472
        %v1583 = vmul.f32 -0.5, %v1570
        %v1584 = vadd.f32 %v1583, 1.0
        %v1585 = vmul.f32 %v1584, %v1570
        %v1586 = vand.u32 2147483647, %v1570
        %vm1587 = vcmp.lt.f32.partialorder %v1586, 0.0004427343
        %v1588 = vsel %vm1587, %v1585, %v1582
        %v1589 = vsel %vm1565, %v1557, %v1579
        %v1590 = vsel %vm1566, %v1562, %v1588
        %v1591 = vld [vmem:[%s760] sm:$0xff]
        %v1592 = vld [vmem:[%s760 + $0x8] sm:$0xff]
        %v1593 = vmul.f32 %v1591, 1.442695
        %v1594 = vpow.pop %v1593
        %v1595 = vmul.f32 %v1592, 1.442695
        %v1596 = vpow.pop %v1595
        %v1597 = vsub.f32 0.0, %v1594
        %v1598 = vsub.f32 0.0, %v1596
        %v1601 = vcombine.high %v1589, %v1589
        %v1603 = vunpack.c.l.s4 1966171168
        %v1604 = vunpack.c.0.s8 %v1603
        %v1605 = vlaneseq
        %v1606 = vshrl.u32 %v1605, 7
        %v1607 = vsub.s32 %v1604, %v1606
        %v1608 = vrot.slane %v1589, %v1607
        %v1610 = vunpack.c.l.s4 1966171168
        %v1611 = vunpack.c.0.s8 %v1610
        %v1612 = vlaneseq
        %v1613 = vshrl.u32 %v1612, 7
        %v1614 = vsub.s32 %v1611, %v1613
        %v1615 = vrot.slane %v1601, %v1614
        %v1616 = vcombine.high %v1608, %v1608
        %v1617 = vcombine.high %v1615, %v1615
        %v1619 = vunpack.c.l.s4 1966171168
        %v1620 = vunpack.c.0.s8 %v1619
        %v1621 = vlaneseq
        %v1622 = vshrl.u32 %v1621, 7
        %v1623 = vsub.s32 %v1620, %v1622
        %v1624 = vrot.slane %v1608, %v1623
        %v1626 = vunpack.c.l.s4 1966171168
        %v1627 = vunpack.c.0.s8 %v1626
        %v1628 = vlaneseq
        %v1629 = vshrl.u32 %v1628, 7
        %v1630 = vsub.s32 %v1627, %v1629
        %v1631 = vrot.slane %v1615, %v1630
        %v1633 = vunpack.c.l.s4 1966171168
        %v1634 = vunpack.c.0.s8 %v1633
        %v1635 = vlaneseq
        %v1636 = vshrl.u32 %v1635, 7
        %v1637 = vsub.s32 %v1634, %v1636
        %v1638 = vrot.slane %v1616, %v1637
        %v1640 = vunpack.c.l.s4 1966171168
        %v1641 = vunpack.c.0.s8 %v1640
        %v1642 = vlaneseq
        %v1643 = vshrl.u32 %v1642, 7
        %v1644 = vsub.s32 %v1641, %v1643
        %v1645 = vrot.slane %v1617, %v1644
        %v1646 = vcombine.high %v1624, %v1624
        %v1647 = vcombine.high %v1631, %v1631
        %v1648 = vcombine.high %v1638, %v1638
        %v1649 = vcombine.high %v1645, %v1645
        %v1650 = vcombine.high %v1590, %v1590
        %v1652 = vunpack.c.l.s4 1966171168
        %v1653 = vunpack.c.0.s8 %v1652
        %v1654 = vlaneseq
        %v1655 = vshrl.u32 %v1654, 7
        %v1656 = vsub.s32 %v1653, %v1655
        %v1657 = vrot.slane %v1590, %v1656
        %v1659 = vunpack.c.l.s4 1966171168
        %v1660 = vunpack.c.0.s8 %v1659
        %v1661 = vlaneseq
        %v1662 = vshrl.u32 %v1661, 7
        %v1663 = vsub.s32 %v1660, %v1662
        %v1664 = vrot.slane %v1650, %v1663
        %v1665 = vcombine.high %v1657, %v1657
        %v1666 = vcombine.high %v1664, %v1664
        %v1668 = vunpack.c.l.s4 1966171168
        %v1669 = vunpack.c.0.s8 %v1668
        %v1670 = vlaneseq
        %v1671 = vshrl.u32 %v1670, 7
        %v1672 = vsub.s32 %v1669, %v1671
        %v1673 = vrot.slane %v1657, %v1672
        %v1675 = vunpack.c.l.s4 1966171168
        %v1676 = vunpack.c.0.s8 %v1675
        %v1677 = vlaneseq
        %v1678 = vshrl.u32 %v1677, 7
        %v1679 = vsub.s32 %v1676, %v1678
        %v1680 = vrot.slane %v1664, %v1679
        %v1682 = vunpack.c.l.s4 1966171168
        %v1683 = vunpack.c.0.s8 %v1682
        %v1684 = vlaneseq
        %v1685 = vshrl.u32 %v1684, 7
        %v1686 = vsub.s32 %v1683, %v1685
        %v1687 = vrot.slane %v1665, %v1686
        %v1689 = vunpack.c.l.s4 1966171168
        %v1690 = vunpack.c.0.s8 %v1689
        %v1691 = vlaneseq
        %v1692 = vshrl.u32 %v1691, 7
        %v1693 = vsub.s32 %v1690, %v1692
        %v1694 = vrot.slane %v1666, %v1693
        %v1695 = vcombine.high %v1673, %v1673
        %v1696 = vcombine.high %v1680, %v1680
        %v1697 = vcombine.high %v1687, %v1687
        %v1698 = vcombine.high %v1694, %v1694
        %v1699 = vlaneseq
        %v1700 = vshrl.u32 %v1699, 7
        %v1701 = vsub.s32 0, %v1700
        %v1702 = vrot.slane %v1624, %v1701
        %v1703 = vlaneseq
        %v1704 = vshrl.u32 %v1703, 7
        %v1705 = vsub.s32 0, %v1704
        %v1706 = vrot.slane %v1638, %v1705
        %v1707 = vlaneseq
        %v1708 = vshrl.u32 %v1707, 7
        %v1709 = vsub.s32 0, %v1708
        %v1710 = vrot.slane %v1646, %v1709
        %v1711 = vlaneseq
        %v1712 = vshrl.u32 %v1711, 7
        %v1713 = vsub.s32 0, %v1712
        %v1714 = vrot.slane %v1648, %v1713
        %v1715 = vlaneseq
        %v1716 = vshrl.u32 %v1715, 7
        %v1717 = vsub.s32 0, %v1716
        %v1718 = vrot.slane %v1631, %v1717
        %v1719 = vlaneseq
        %v1720 = vshrl.u32 %v1719, 7
        %v1721 = vsub.s32 0, %v1720
        %v1722 = vrot.slane %v1645, %v1721
        %v1723 = vlaneseq
        %v1724 = vshrl.u32 %v1723, 7
        %v1725 = vsub.s32 0, %v1724
        %v1726 = vrot.slane %v1647, %v1725
        %v1727 = vlaneseq
        %v1728 = vshrl.u32 %v1727, 7
        %v1729 = vsub.s32 0, %v1728
        %v1730 = vrot.slane %v1649, %v1729
        %v1731 = vlaneseq
        %v1732 = vshrl.u32 %v1731, 7
        %v1733 = vsub.s32 0, %v1732
        %v1734 = vrot.slane %v1673, %v1733
        %v1735 = vlaneseq
        %v1736 = vshrl.u32 %v1735, 7
        %v1737 = vsub.s32 0, %v1736
        %v1738 = vrot.slane %v1687, %v1737
        %v1739 = vlaneseq
        %v1740 = vshrl.u32 %v1739, 7
        %v1741 = vsub.s32 0, %v1740
        %v1742 = vrot.slane %v1695, %v1741
        %v1743 = vlaneseq
        %v1744 = vshrl.u32 %v1743, 7
        %v1745 = vsub.s32 0, %v1744
        %v1746 = vrot.slane %v1697, %v1745
        %v1747 = vlaneseq
        %v1748 = vshrl.u32 %v1747, 7
        %v1749 = vsub.s32 0, %v1748
        %v1750 = vrot.slane %v1680, %v1749
        %v1751 = vlaneseq
        %v1752 = vshrl.u32 %v1751, 7
        %v1753 = vsub.s32 0, %v1752
        %v1754 = vrot.slane %v1694, %v1753
        %v1755 = vlaneseq
        %v1756 = vshrl.u32 %v1755, 7
        %v1757 = vsub.s32 0, %v1756
        %v1758 = vrot.slane %v1696, %v1757
        %v1759 = vlaneseq
        %v1760 = vshrl.u32 %v1759, 7
        %v1761 = vsub.s32 0, %v1760
        %v1762 = vrot.slane %v1698, %v1761
        %v1779 = vmul.f32 %v1702, %v1597
        %v1780 = vmul.f32 %v1702, %v1598
        %v1781 = vmul.f32 %v1706, %v1597
        %v1782 = vmul.f32 %v1706, %v1598
        %v1783 = vmul.f32 %v1710, %v1597
        %v1784 = vmul.f32 %v1710, %v1598
        %v1785 = vmul.f32 %v1714, %v1597
        %v1786 = vmul.f32 %v1714, %v1598
        %v1787 = vmul.f32 %v1718, %v1597
        %v1788 = vmul.f32 %v1718, %v1598
        %v1789 = vmul.f32 %v1722, %v1597
        %v1790 = vmul.f32 %v1722, %v1598
        %v1791 = vmul.f32 %v1726, %v1597
        %v1792 = vmul.f32 %v1726, %v1598
        %v1793 = vmul.f32 %v1730, %v1597
        %v1794 = vmul.f32 %v1730, %v1598
        %v1795 = vmul.f32 %v1734, %v1597
        %v1796 = vmul.f32 %v1734, %v1598
        %v1797 = vmul.f32 %v1738, %v1597
        %v1798 = vmul.f32 %v1738, %v1598
        %v1799 = vmul.f32 %v1742, %v1597
        %v1800 = vmul.f32 %v1742, %v1598
        %v1801 = vmul.f32 %v1746, %v1597
        %v1802 = vmul.f32 %v1746, %v1598
        %v1803 = vmul.f32 %v1750, %v1597
        %v1804 = vmul.f32 %v1750, %v1598
        %v1805 = vmul.f32 %v1754, %v1597
        %v1806 = vmul.f32 %v1754, %v1598
        %v1807 = vmul.f32 %v1758, %v1597
        %v1808 = vmul.f32 %v1758, %v1598
        %v1809 = vmul.f32 %v1762, %v1597
        %v1810 = vmul.f32 %v1762, %v1598
        %v1811 = vmul.f32 %v1779, 1.442695
        %v1812 = vpow.pop %v1811
        %v1813 = vmul.f32 %v1780, 1.442695
        %v1814 = vpow.pop %v1813
        %v1815 = vmul.f32 %v1781, 1.442695
        %v1816 = vpow.pop %v1815
        %v1817 = vmul.f32 %v1782, 1.442695
        %v1818 = vpow.pop %v1817
        %v1819 = vmul.f32 %v1783, 1.442695
        %v1820 = vpow.pop %v1819
        %v1821 = vmul.f32 %v1784, 1.442695
        %v1822 = vpow.pop %v1821
        %v1823 = vmul.f32 %v1785, 1.442695
        %v1824 = vpow.pop %v1823
        %v1825 = vmul.f32 %v1786, 1.442695
        %v1826 = vpow.pop %v1825
        %v1827 = vmul.f32 %v1787, 1.442695
        %v1828 = vpow.pop %v1827
        %v1829 = vmul.f32 %v1788, 1.442695
        %v1830 = vpow.pop %v1829
        %v1831 = vmul.f32 %v1789, 1.442695
        %v1832 = vpow.pop %v1831
        %v1833 = vmul.f32 %v1790, 1.442695
        %v1834 = vpow.pop %v1833
        %v1835 = vmul.f32 %v1791, 1.442695
        %v1836 = vpow.pop %v1835
        %v1837 = vmul.f32 %v1792, 1.442695
        %v1838 = vpow.pop %v1837
        %v1839 = vmul.f32 %v1793, 1.442695
        %v1840 = vpow.pop %v1839
        %v1841 = vmul.f32 %v1794, 1.442695
        %v1842 = vpow.pop %v1841
        %v1843 = vmul.f32 %v1795, 1.442695
        %v1844 = vpow.pop %v1843
        %v1845 = vmul.f32 %v1796, 1.442695
        %v1846 = vpow.pop %v1845
        %v1847 = vmul.f32 %v1797, 1.442695
        %v1848 = vpow.pop %v1847
        %v1849 = vmul.f32 %v1798, 1.442695
        %v1850 = vpow.pop %v1849
        %v1851 = vmul.f32 %v1799, 1.442695
        %v1852 = vpow.pop %v1851
        %v1853 = vmul.f32 %v1800, 1.442695
        %v1854 = vpow.pop %v1853
        %v1855 = vmul.f32 %v1801, 1.442695
        %v1856 = vpow.pop %v1855
        %v1857 = vmul.f32 %v1802, 1.442695
        %v1858 = vpow.pop %v1857
        %v1859 = vmul.f32 %v1803, 1.442695
        %v1860 = vpow.pop %v1859
        %v1861 = vmul.f32 %v1804, 1.442695
        %v1862 = vpow.pop %v1861
        %v1863 = vmul.f32 %v1805, 1.442695
        %v1864 = vpow.pop %v1863
        %v1865 = vmul.f32 %v1806, 1.442695
        %v1866 = vpow.pop %v1865
        %v1867 = vmul.f32 %v1807, 1.442695
        %v1868 = vpow.pop %v1867
        %v1869 = vmul.f32 %v1808, 1.442695
        %v1870 = vpow.pop %v1869
        %v1871 = vmul.f32 %v1809, 1.442695
        %v1872 = vpow.pop %v1871
        %v1873 = vmul.f32 %v1810, 1.442695
        %v1874 = vpow.pop %v1873
        %v1875 = vlaneseq
        %v1876 = vshrl.u32 %v1875, 7
        %v1877 = vsub.s32 0, %v1876
        %v1878 = vrot.slane %v1384, %v1877
        %1880 = vbcast.lane.b32.xlu0 %v1878, 256
        %v1881 = vpop.permute.xlu0 %1880
        %s1883 = sor.u32 256, 8
        %1884 = vbcast.lane.b32.xlu0 %v1878, %s1883
        %v1885 = vpop.permute.xlu0 %1884
        %v1886 = vlaneseq
        %v1887 = vshrl.u32 %v1886, 7
        %v1888 = vsub.s32 1, %v1887
        %v1889 = vrot.slane %v1384, %v1888
        %1891 = vbcast.lane.b32.xlu0 %v1889, 256
        %v1892 = vpop.permute.xlu0 %1891
        %s1894 = sor.u32 256, 8
        %1895 = vbcast.lane.b32.xlu0 %v1889, %s1894
        %v1896 = vpop.permute.xlu0 %1895
        %v1897 = vlaneseq
        %v1898 = vshrl.u32 %v1897, 7
        %v1899 = vsub.s32 2, %v1898
        %v1900 = vrot.slane %v1384, %v1899
        %1902 = vbcast.lane.b32.xlu0 %v1900, 256
        %v1903 = vpop.permute.xlu0 %1902
        %s1905 = sor.u32 256, 8
        %1906 = vbcast.lane.b32.xlu0 %v1900, %s1905
        %v1907 = vpop.permute.xlu0 %1906
        %v1908 = vlaneseq
        %v1909 = vshrl.u32 %v1908, 7
        %v1910 = vsub.s32 3, %v1909
        %v1911 = vrot.slane %v1384, %v1910
        %1913 = vbcast.lane.b32.xlu0 %v1911, 256
        %v1914 = vpop.permute.xlu0 %1913
        %s1916 = sor.u32 256, 8
        %1917 = vbcast.lane.b32.xlu0 %v1911, %s1916
        %v1918 = vpop.permute.xlu0 %1917
        %v1919 = vlaneseq
        %v1920 = vshrl.u32 %v1919, 7
        %v1921 = vsub.s32 4, %v1920
        %v1922 = vrot.slane %v1384, %v1921
        %1924 = vbcast.lane.b32.xlu0 %v1922, 256
        %v1925 = vpop.permute.xlu0 %1924
        %s1927 = sor.u32 256, 8
        %1928 = vbcast.lane.b32.xlu0 %v1922, %s1927
        %v1929 = vpop.permute.xlu0 %1928
        %v1930 = vlaneseq
        %v1931 = vshrl.u32 %v1930, 7
        %v1932 = vsub.s32 5, %v1931
        %v1933 = vrot.slane %v1384, %v1932
        %1935 = vbcast.lane.b32.xlu0 %v1933, 256
        %v1936 = vpop.permute.xlu0 %1935
        %s1938 = sor.u32 256, 8
        %1939 = vbcast.lane.b32.xlu0 %v1933, %s1938
        %v1940 = vpop.permute.xlu0 %1939
        %v1941 = vlaneseq
        %v1942 = vshrl.u32 %v1941, 7
        %v1943 = vsub.s32 6, %v1942
        %v1944 = vrot.slane %v1384, %v1943
        %1946 = vbcast.lane.b32.xlu0 %v1944, 256
        %v1947 = vpop.permute.xlu0 %1946
        %s1949 = sor.u32 256, 8
        %1950 = vbcast.lane.b32.xlu0 %v1944, %s1949
        %v1951 = vpop.permute.xlu0 %1950
        %v1952 = vlaneseq
        %v1953 = vshrl.u32 %v1952, 7
        %v1954 = vsub.s32 7, %v1953
        %v1955 = vrot.slane %v1384, %v1954
        %1957 = vbcast.lane.b32.xlu0 %v1955, 256
        %v1958 = vpop.permute.xlu0 %1957
        %s1960 = sor.u32 256, 8
        %1961 = vbcast.lane.b32.xlu0 %v1955, %s1960
        %v1962 = vpop.permute.xlu0 %1961
        %v1963 = vlaneseq
        %v1964 = vshrl.u32 %v1963, 7
        %v1965 = vsub.s32 0, %v1964
        %v1966 = vrot.slane %v1389, %v1965
        %1968 = vbcast.lane.b32.xlu0 %v1966, 256
        %v1969 = vpop.permute.xlu0 %1968
        %s1971 = sor.u32 256, 8
        %1972 = vbcast.lane.b32.xlu0 %v1966, %s1971
        %v1973 = vpop.permute.xlu0 %1972
        %v1974 = vlaneseq
        %v1975 = vshrl.u32 %v1974, 7
        %v1976 = vsub.s32 1, %v1975
        %v1977 = vrot.slane %v1389, %v1976
        %1979 = vbcast.lane.b32.xlu0 %v1977, 256
        %v1980 = vpop.permute.xlu0 %1979
        %s1982 = sor.u32 256, 8
        %1983 = vbcast.lane.b32.xlu0 %v1977, %s1982
        %v1984 = vpop.permute.xlu0 %1983
        %v1985 = vlaneseq
        %v1986 = vshrl.u32 %v1985, 7
        %v1987 = vsub.s32 2, %v1986
        %v1988 = vrot.slane %v1389, %v1987
        %1990 = vbcast.lane.b32.xlu0 %v1988, 256
        %v1991 = vpop.permute.xlu0 %1990
        %s1993 = sor.u32 256, 8
        %1994 = vbcast.lane.b32.xlu0 %v1988, %s1993
        %v1995 = vpop.permute.xlu0 %1994
        %v1996 = vlaneseq
        %v1997 = vshrl.u32 %v1996, 7
        %v1998 = vsub.s32 3, %v1997
        %v1999 = vrot.slane %v1389, %v1998
        %2001 = vbcast.lane.b32.xlu0 %v1999, 256
        %v2002 = vpop.permute.xlu0 %2001
        %s2004 = sor.u32 256, 8
        %2005 = vbcast.lane.b32.xlu0 %v1999, %s2004
        %v2006 = vpop.permute.xlu0 %2005
        %v2007 = vlaneseq
        %v2008 = vshrl.u32 %v2007, 7
        %v2009 = vsub.s32 4, %v2008
        %v2010 = vrot.slane %v1389, %v2009
        %2012 = vbcast.lane.b32.xlu0 %v2010, 256
        %v2013 = vpop.permute.xlu0 %2012
        %s2015 = sor.u32 256, 8
        %2016 = vbcast.lane.b32.xlu0 %v2010, %s2015
        %v2017 = vpop.permute.xlu0 %2016
        %v2018 = vlaneseq
        %v2019 = vshrl.u32 %v2018, 7
        %v2020 = vsub.s32 5, %v2019
        %v2021 = vrot.slane %v1389, %v2020
        %2023 = vbcast.lane.b32.xlu0 %v2021, 256
        %v2024 = vpop.permute.xlu0 %2023
        %s2026 = sor.u32 256, 8
        %2027 = vbcast.lane.b32.xlu0 %v2021, %s2026
        %v2028 = vpop.permute.xlu0 %2027
        %v2029 = vlaneseq
        %v2030 = vshrl.u32 %v2029, 7
        %v2031 = vsub.s32 6, %v2030
        %v2032 = vrot.slane %v1389, %v2031
        %2034 = vbcast.lane.b32.xlu0 %v2032, 256
        %v2035 = vpop.permute.xlu0 %2034
        %s2037 = sor.u32 256, 8
        %2038 = vbcast.lane.b32.xlu0 %v2032, %s2037
        %v2039 = vpop.permute.xlu0 %2038
        %v2040 = vlaneseq
        %v2041 = vshrl.u32 %v2040, 7
        %v2042 = vsub.s32 7, %v2041
        %v2043 = vrot.slane %v1389, %v2042
        %2045 = vbcast.lane.b32.xlu0 %v2043, 256
        %v2046 = vpop.permute.xlu0 %2045
        %s2048 = sor.u32 256, 8
        %2049 = vbcast.lane.b32.xlu0 %v2043, %s2048
        %v2050 = vpop.permute.xlu0 %2049
        %v2051 = vmul.f32 %v1589, %v1300
        %v2052 = vmul.f32 %v1590, %v1301
        %v2055 = vcombine.high %v2051, %v2051
        %v2057 = vunpack.c.l.s4 1966171168
        %v2058 = vunpack.c.0.s8 %v2057
        %v2059 = vlaneseq
        %v2060 = vshrl.u32 %v2059, 7
        %v2061 = vsub.s32 %v2058, %v2060
        %v2062 = vrot.slane %v2051, %v2061
        %v2064 = vunpack.c.l.s4 1966171168
        %v2065 = vunpack.c.0.s8 %v2064
        %v2066 = vlaneseq
        %v2067 = vshrl.u32 %v2066, 7
        %v2068 = vsub.s32 %v2065, %v2067
        %v2069 = vrot.slane %v2055, %v2068
        %v2070 = vcombine.high %v2062, %v2062
        %v2071 = vcombine.high %v2069, %v2069
        %v2073 = vunpack.c.l.s4 1966171168
        %v2074 = vunpack.c.0.s8 %v2073
        %v2075 = vlaneseq
        %v2076 = vshrl.u32 %v2075, 7
        %v2077 = vsub.s32 %v2074, %v2076
        %v2078 = vrot.slane %v2062, %v2077
        %v2080 = vunpack.c.l.s4 1966171168
        %v2081 = vunpack.c.0.s8 %v2080
        %v2082 = vlaneseq
        %v2083 = vshrl.u32 %v2082, 7
        %v2084 = vsub.s32 %v2081, %v2083
        %v2085 = vrot.slane %v2069, %v2084
        %v2087 = vunpack.c.l.s4 1966171168
        %v2088 = vunpack.c.0.s8 %v2087
        %v2089 = vlaneseq
        %v2090 = vshrl.u32 %v2089, 7
        %v2091 = vsub.s32 %v2088, %v2090
        %v2092 = vrot.slane %v2070, %v2091
        %v2094 = vunpack.c.l.s4 1966171168
        %v2095 = vunpack.c.0.s8 %v2094
        %v2096 = vlaneseq
        %v2097 = vshrl.u32 %v2096, 7
        %v2098 = vsub.s32 %v2095, %v2097
        %v2099 = vrot.slane %v2071, %v2098
        %v2100 = vcombine.high %v2078, %v2078
        %v2101 = vcombine.high %v2085, %v2085
        %v2102 = vcombine.high %v2092, %v2092
        %v2103 = vcombine.high %v2099, %v2099
        %v2104 = vcombine.high %v2052, %v2052
        %v2106 = vunpack.c.l.s4 1966171168
        %v2107 = vunpack.c.0.s8 %v2106
        %v2108 = vlaneseq
        %v2109 = vshrl.u32 %v2108, 7
        %v2110 = vsub.s32 %v2107, %v2109
        %v2111 = vrot.slane %v2052, %v2110
        %v2113 = vunpack.c.l.s4 1966171168
        %v2114 = vunpack.c.0.s8 %v2113
        %v2115 = vlaneseq
        %v2116 = vshrl.u32 %v2115, 7
        %v2117 = vsub.s32 %v2114, %v2116
        %v2118 = vrot.slane %v2104, %v2117
        %v2119 = vcombine.high %v2111, %v2111
        %v2120 = vcombine.high %v2118, %v2118
        %v2122 = vunpack.c.l.s4 1966171168
        %v2123 = vunpack.c.0.s8 %v2122
        %v2124 = vlaneseq
        %v2125 = vshrl.u32 %v2124, 7
        %v2126 = vsub.s32 %v2123, %v2125
        %v2127 = vrot.slane %v2111, %v2126
        %v2129 = vunpack.c.l.s4 1966171168
        %v2130 = vunpack.c.0.s8 %v2129
        %v2131 = vlaneseq
        %v2132 = vshrl.u32 %v2131, 7
        %v2133 = vsub.s32 %v2130, %v2132
        %v2134 = vrot.slane %v2118, %v2133
        %v2136 = vunpack.c.l.s4 1966171168
        %v2137 = vunpack.c.0.s8 %v2136
        %v2138 = vlaneseq
        %v2139 = vshrl.u32 %v2138, 7
        %v2140 = vsub.s32 %v2137, %v2139
        %v2141 = vrot.slane %v2119, %v2140
        %v2143 = vunpack.c.l.s4 1966171168
        %v2144 = vunpack.c.0.s8 %v2143
        %v2145 = vlaneseq
        %v2146 = vshrl.u32 %v2145, 7
        %v2147 = vsub.s32 %v2144, %v2146
        %v2148 = vrot.slane %v2120, %v2147
        %v2149 = vcombine.high %v2127, %v2127
        %v2150 = vcombine.high %v2134, %v2134
        %v2151 = vcombine.high %v2141, %v2141
        %v2152 = vcombine.high %v2148, %v2148
        %v2153 = vlaneseq
        %v2154 = vshrl.u32 %v2153, 7
        %v2155 = vsub.s32 0, %v2154
        %v2156 = vrot.slane %v2078, %v2155
        %v2157 = vlaneseq
        %v2158 = vshrl.u32 %v2157, 7
        %v2159 = vsub.s32 0, %v2158
        %v2160 = vrot.slane %v2092, %v2159
        %v2161 = vlaneseq
        %v2162 = vshrl.u32 %v2161, 7
        %v2163 = vsub.s32 0, %v2162
        %v2164 = vrot.slane %v2100, %v2163
        %v2165 = vlaneseq
        %v2166 = vshrl.u32 %v2165, 7
        %v2167 = vsub.s32 0, %v2166
        %v2168 = vrot.slane %v2102, %v2167
        %v2169 = vlaneseq
        %v2170 = vshrl.u32 %v2169, 7
        %v2171 = vsub.s32 0, %v2170
        %v2172 = vrot.slane %v2085, %v2171
        %v2173 = vlaneseq
        %v2174 = vshrl.u32 %v2173, 7
        %v2175 = vsub.s32 0, %v2174
        %v2176 = vrot.slane %v2099, %v2175
        %v2177 = vlaneseq
        %v2178 = vshrl.u32 %v2177, 7
        %v2179 = vsub.s32 0, %v2178
        %v2180 = vrot.slane %v2101, %v2179
        %v2181 = vlaneseq
        %v2182 = vshrl.u32 %v2181, 7
        %v2183 = vsub.s32 0, %v2182
        %v2184 = vrot.slane %v2103, %v2183
        %v2185 = vlaneseq
        %v2186 = vshrl.u32 %v2185, 7
        %v2187 = vsub.s32 0, %v2186
        %v2188 = vrot.slane %v2127, %v2187
        %v2189 = vlaneseq
        %v2190 = vshrl.u32 %v2189, 7
        %v2191 = vsub.s32 0, %v2190
        %v2192 = vrot.slane %v2141, %v2191
        %v2193 = vlaneseq
        %v2194 = vshrl.u32 %v2193, 7
        %v2195 = vsub.s32 0, %v2194
        %v2196 = vrot.slane %v2149, %v2195
        %v2197 = vlaneseq
        %v2198 = vshrl.u32 %v2197, 7
        %v2199 = vsub.s32 0, %v2198
        %v2200 = vrot.slane %v2151, %v2199
        %v2201 = vlaneseq
        %v2202 = vshrl.u32 %v2201, 7
        %v2203 = vsub.s32 0, %v2202
        %v2204 = vrot.slane %v2134, %v2203
        %v2205 = vlaneseq
        %v2206 = vshrl.u32 %v2205, 7
        %v2207 = vsub.s32 0, %v2206
        %v2208 = vrot.slane %v2148, %v2207
        %v2209 = vlaneseq
        %v2210 = vshrl.u32 %v2209, 7
        %v2211 = vsub.s32 0, %v2210
        %v2212 = vrot.slane %v2150, %v2211
        %v2213 = vlaneseq
        %v2214 = vshrl.u32 %v2213, 7
        %v2215 = vsub.s32 0, %v2214
        %v2216 = vrot.slane %v2152, %v2215
        %v2233 = vmul.f32 %v1881, %v2156
        %v2234 = vmul.f32 %v1885, %v2156
        %v2235 = vmul.f32 %v1892, %v2160
        %v2236 = vmul.f32 %v1896, %v2160
        %v2237 = vmul.f32 %v1903, %v2164
        %v2238 = vmul.f32 %v1907, %v2164
        %v2239 = vmul.f32 %v1914, %v2168
        %v2240 = vmul.f32 %v1918, %v2168
        %v2241 = vmul.f32 %v1925, %v2172
        %v2242 = vmul.f32 %v1929, %v2172
        %v2243 = vmul.f32 %v1936, %v2176
        %v2244 = vmul.f32 %v1940, %v2176
        %v2245 = vmul.f32 %v1947, %v2180
        %v2246 = vmul.f32 %v1951, %v2180
        %v2247 = vmul.f32 %v1958, %v2184
        %v2248 = vmul.f32 %v1962, %v2184
        %v2249 = vmul.f32 %v1969, %v2188
        %v2250 = vmul.f32 %v1973, %v2188
        %v2251 = vmul.f32 %v1980, %v2192
        %v2252 = vmul.f32 %v1984, %v2192
        %v2253 = vmul.f32 %v1991, %v2196
        %v2254 = vmul.f32 %v1995, %v2196
        %v2255 = vmul.f32 %v2002, %v2200
        %v2256 = vmul.f32 %v2006, %v2200
        %v2257 = vmul.f32 %v2013, %v2204
        %v2258 = vmul.f32 %v2017, %v2204
        %v2259 = vmul.f32 %v2024, %v2208
        %v2260 = vmul.f32 %v2028, %v2208
        %v2261 = vmul.f32 %v2035, %v2212
        %v2262 = vmul.f32 %v2039, %v2212
        %v2263 = vmul.f32 %v2046, %v2216
        %v2264 = vmul.f32 %v2050, %v2216
        %v2265 = vlaneseq
        %v2266 = vshrl.u32 %v2265, 7
        %v2267 = vsub.s32 0, %v2266
        %v2268 = vrot.slane %v1467, %v2267
        %2270 = vbcast.lane.b32.xlu0 %v2268, 256
        %v2271 = vpop.permute.xlu0 %2270
        %s2273 = sor.u32 256, 8
        %2274 = vbcast.lane.b32.xlu0 %v2268, %s2273
        %v2275 = vpop.permute.xlu0 %2274
        %v2276 = vlaneseq
        %v2277 = vshrl.u32 %v2276, 7
        %v2278 = vsub.s32 1, %v2277
        %v2279 = vrot.slane %v1467, %v2278
        %2281 = vbcast.lane.b32.xlu0 %v2279, 256
        %v2282 = vpop.permute.xlu0 %2281
        %s2284 = sor.u32 256, 8
        %2285 = vbcast.lane.b32.xlu0 %v2279, %s2284
        %v2286 = vpop.permute.xlu0 %2285
        %v2287 = vlaneseq
        %v2288 = vshrl.u32 %v2287, 7
        %v2289 = vsub.s32 2, %v2288
        %v2290 = vrot.slane %v1467, %v2289
        %2292 = vbcast.lane.b32.xlu0 %v2290, 256
        %v2293 = vpop.permute.xlu0 %2292
        %s2295 = sor.u32 256, 8
        %2296 = vbcast.lane.b32.xlu0 %v2290, %s2295
        %v2297 = vpop.permute.xlu0 %2296
        %v2298 = vlaneseq
        %v2299 = vshrl.u32 %v2298, 7
        %v2300 = vsub.s32 3, %v2299
        %v2301 = vrot.slane %v1467, %v2300
        %2303 = vbcast.lane.b32.xlu0 %v2301, 256
        %v2304 = vpop.permute.xlu0 %2303
        %s2306 = sor.u32 256, 8
        %2307 = vbcast.lane.b32.xlu0 %v2301, %s2306
        %v2308 = vpop.permute.xlu0 %2307
        %v2309 = vlaneseq
        %v2310 = vshrl.u32 %v2309, 7
        %v2311 = vsub.s32 4, %v2310
        %v2312 = vrot.slane %v1467, %v2311
        %2314 = vbcast.lane.b32.xlu0 %v2312, 256
        %v2315 = vpop.permute.xlu0 %2314
        %s2317 = sor.u32 256, 8
        %2318 = vbcast.lane.b32.xlu0 %v2312, %s2317
        %v2319 = vpop.permute.xlu0 %2318
        %v2320 = vlaneseq
        %v2321 = vshrl.u32 %v2320, 7
        %v2322 = vsub.s32 5, %v2321
        %v2323 = vrot.slane %v1467, %v2322
        %2325 = vbcast.lane.b32.xlu0 %v2323, 256
        %v2326 = vpop.permute.xlu0 %2325
        %s2328 = sor.u32 256, 8
        %2329 = vbcast.lane.b32.xlu0 %v2323, %s2328
        %v2330 = vpop.permute.xlu0 %2329
        %v2331 = vlaneseq
        %v2332 = vshrl.u32 %v2331, 7
        %v2333 = vsub.s32 6, %v2332
        %v2334 = vrot.slane %v1467, %v2333
        %2336 = vbcast.lane.b32.xlu0 %v2334, 256
        %v2337 = vpop.permute.xlu0 %2336
        %s2339 = sor.u32 256, 8
        %2340 = vbcast.lane.b32.xlu0 %v2334, %s2339
        %v2341 = vpop.permute.xlu0 %2340
        %v2342 = vlaneseq
        %v2343 = vshrl.u32 %v2342, 7
        %v2344 = vsub.s32 7, %v2343
        %v2345 = vrot.slane %v1467, %v2344
        %2347 = vbcast.lane.b32.xlu0 %v2345, 256
        %v2348 = vpop.permute.xlu0 %2347
        %s2350 = sor.u32 256, 8
        %2351 = vbcast.lane.b32.xlu0 %v2345, %s2350
        %v2352 = vpop.permute.xlu0 %2351
        %v2353 = vlaneseq
        %v2354 = vshrl.u32 %v2353, 7
        %v2355 = vsub.s32 0, %v2354
        %v2356 = vrot.slane %v1472, %v2355
        %2358 = vbcast.lane.b32.xlu0 %v2356, 256
        %v2359 = vpop.permute.xlu0 %2358
        %s2361 = sor.u32 256, 8
        %2362 = vbcast.lane.b32.xlu0 %v2356, %s2361
        %v2363 = vpop.permute.xlu0 %2362
        %v2364 = vlaneseq
        %v2365 = vshrl.u32 %v2364, 7
        %v2366 = vsub.s32 1, %v2365
        %v2367 = vrot.slane %v1472, %v2366
        %2369 = vbcast.lane.b32.xlu0 %v2367, 256
        %v2370 = vpop.permute.xlu0 %2369
        %s2372 = sor.u32 256, 8
        %2373 = vbcast.lane.b32.xlu0 %v2367, %s2372
        %v2374 = vpop.permute.xlu0 %2373
        %v2375 = vlaneseq
        %v2376 = vshrl.u32 %v2375, 7
        %v2377 = vsub.s32 2, %v2376
        %v2378 = vrot.slane %v1472, %v2377
        %2380 = vbcast.lane.b32.xlu0 %v2378, 256
        %v2381 = vpop.permute.xlu0 %2380
        %s2383 = sor.u32 256, 8
        %2384 = vbcast.lane.b32.xlu0 %v2378, %s2383
        %v2385 = vpop.permute.xlu0 %2384
        %v2386 = vlaneseq
        %v2387 = vshrl.u32 %v2386, 7
        %v2388 = vsub.s32 3, %v2387
        %v2389 = vrot.slane %v1472, %v2388
        %2391 = vbcast.lane.b32.xlu0 %v2389, 256
        %v2392 = vpop.permute.xlu0 %2391
        %s2394 = sor.u32 256, 8
        %2395 = vbcast.lane.b32.xlu0 %v2389, %s2394
        %v2396 = vpop.permute.xlu0 %2395
        %v2397 = vlaneseq
        %v2398 = vshrl.u32 %v2397, 7
        %v2399 = vsub.s32 4, %v2398
        %v2400 = vrot.slane %v1472, %v2399
        %2402 = vbcast.lane.b32.xlu0 %v2400, 256
        %v2403 = vpop.permute.xlu0 %2402
        %s2405 = sor.u32 256, 8
        %2406 = vbcast.lane.b32.xlu0 %v2400, %s2405
        %v2407 = vpop.permute.xlu0 %2406
        %v2408 = vlaneseq
        %v2409 = vshrl.u32 %v2408, 7
        %v2410 = vsub.s32 5, %v2409
        %v2411 = vrot.slane %v1472, %v2410
        %2413 = vbcast.lane.b32.xlu0 %v2411, 256
        %v2414 = vpop.permute.xlu0 %2413
        %s2416 = sor.u32 256, 8
        %2417 = vbcast.lane.b32.xlu0 %v2411, %s2416
        %v2418 = vpop.permute.xlu0 %2417
        %v2419 = vlaneseq
        %v2420 = vshrl.u32 %v2419, 7
        %v2421 = vsub.s32 6, %v2420
        %v2422 = vrot.slane %v1472, %v2421
        %2424 = vbcast.lane.b32.xlu0 %v2422, 256
        %v2425 = vpop.permute.xlu0 %2424
        %s2427 = sor.u32 256, 8
        %2428 = vbcast.lane.b32.xlu0 %v2422, %s2427
        %v2429 = vpop.permute.xlu0 %2428
        %v2430 = vlaneseq
        %v2431 = vshrl.u32 %v2430, 7
        %v2432 = vsub.s32 7, %v2431
        %v2433 = vrot.slane %v1472, %v2432
        %2435 = vbcast.lane.b32.xlu0 %v2433, 256
        %v2436 = vpop.permute.xlu0 %2435
        %s2438 = sor.u32 256, 8
        %2439 = vbcast.lane.b32.xlu0 %v2433, %s2438
        %v2440 = vpop.permute.xlu0 %2439
        %v2441 = vmul.f32 %v1812, 0.0
        %v2442 = vmul.f32 %v1814, 0.0
        %v2443 = vadd.f32 %v2441, %v2233
        %v2444 = vadd.f32 %v2442, %v2234
        %v2445 = vmul.f32 %v2443, %v2271
        %v2446 = vmul.f32 %v2444, %v2275
        %v2447 = vsel %vm1310, %v2445, 0.0
        %v2448 = vsel %vm1310, %v2446, 0.0
        %v2449 = vadd.f32 %v2447, %v2448
        %v2450 = vrot.slane %v2449, 4
        %v2451 = vadd.f32 %v2449, %v2450
        %v2452 = vrot.slane %v2451, 2
        %v2453 = vadd.f32 %v2451, %v2452
        %v2454 = vrot.slane %v2453, 1
        %v2455 = vadd.f32 %v2453, %v2454
        %vm2456 = vcmask 516096
        %2457 = vst.msk [vmem:[#allocation4] sm:$0x1] %vm2456, %v2455
        %v2458 = vmul.f32 %v1844, 0.0
        %v2459 = vmul.f32 %v1846, 0.0
        %v2460 = vadd.f32 %v2458, %v2249
        %v2461 = vadd.f32 %v2459, %v2250
        %v2462 = vmul.f32 %v2460, %v2359
        %v2463 = vmul.f32 %v2461, %v2363
        %v2464 = vsel %vm1310, %v2462, 0.0
        %v2465 = vsel %vm1310, %v2463, 0.0
        %v2466 = vadd.f32 %v2464, %v2465
        %v2467 = vrot.slane %v2466, 4
        %v2468 = vadd.f32 %v2466, %v2467
        %v2469 = vrot.slane %v2468, 2
        %v2470 = vadd.f32 %v2468, %v2469
        %v2471 = vrot.slane %v2470, 1
        %v2472 = vadd.f32 %v2470, %v2471
        %2473 = vst.msk [vmem:[#allocation4 + $0x8] sm:$0x1] %vm2456, %v2472
        %v2474 = vmul.f32 %v1816, %v2443
        %v2475 = vmul.f32 %v1818, %v2444
        %v2476 = vadd.f32 %v2474, %v2235
        %v2477 = vadd.f32 %v2475, %v2236
        %v2478 = vmul.f32 %v2476, %v2282
        %v2479 = vmul.f32 %v2477, %v2286
        %v2480 = vsel %vm1310, %v2478, 0.0
        %v2481 = vsel %vm1310, %v2479, 0.0
        %v2482 = vadd.f32 %v2480, %v2481
        %v2483 = vrot.slane %v2482, 4
        %v2484 = vadd.f32 %v2482, %v2483
        %v2485 = vrot.slane %v2484, 2
        %v2486 = vadd.f32 %v2484, %v2485
        %v2487 = vrot.slane %v2486, 1
        %v2488 = vadd.f32 %v2486, %v2487
        %2489 = vst.msk [vmem:[#allocation4 + $0x1] sm:$0x1] %vm2456, %v2488
        %v2490 = vmul.f32 %v1848, %v2460
        %v2491 = vmul.f32 %v1850, %v2461
        %v2492 = vadd.f32 %v2490, %v2251
        %v2493 = vadd.f32 %v2491, %v2252
        %v2494 = vmul.f32 %v2492, %v2370
        %v2495 = vmul.f32 %v2493, %v2374
        %v2496 = vsel %vm1310, %v2494, 0.0
        %v2497 = vsel %vm1310, %v2495, 0.0
        %v2498 = vadd.f32 %v2496, %v2497
        %v2499 = vrot.slane %v2498, 4
        %v2500 = vadd.f32 %v2498, %v2499
        %v2501 = vrot.slane %v2500, 2
        %v2502 = vadd.f32 %v2500, %v2501
        %v2503 = vrot.slane %v2502, 1
        %v2504 = vadd.f32 %v2502, %v2503
        %2505 = vst.msk [vmem:[#allocation4 + $0x9] sm:$0x1] %vm2456, %v2504
        %v2506 = vmul.f32 %v1820, %v2476
        %v2507 = vmul.f32 %v1822, %v2477
        %v2508 = vadd.f32 %v2506, %v2237
        %v2509 = vadd.f32 %v2507, %v2238
        %v2510 = vmul.f32 %v2508, %v2293
        %v2511 = vmul.f32 %v2509, %v2297
        %v2512 = vsel %vm1310, %v2510, 0.0
        %v2513 = vsel %vm1310, %v2511, 0.0
        %v2514 = vadd.f32 %v2512, %v2513
        %v2515 = vrot.slane %v2514, 4
        %v2516 = vadd.f32 %v2514, %v2515
        %v2517 = vrot.slane %v2516, 2
        %v2518 = vadd.f32 %v2516, %v2517
        %v2519 = vrot.slane %v2518, 1
        %v2520 = vadd.f32 %v2518, %v2519
        %2521 = vst.msk [vmem:[#allocation4 + $0x2] sm:$0x1] %vm2456, %v2520
        %v2522 = vmul.f32 %v1852, %v2492
        %v2523 = vmul.f32 %v1854, %v2493
        %v2524 = vadd.f32 %v2522, %v2253
        %v2525 = vadd.f32 %v2523, %v2254
        %v2526 = vmul.f32 %v2524, %v2381
        %v2527 = vmul.f32 %v2525, %v2385
        %v2528 = vsel %vm1310, %v2526, 0.0
        %v2529 = vsel %vm1310, %v2527, 0.0
        %v2530 = vadd.f32 %v2528, %v2529
        %v2531 = vrot.slane %v2530, 4
        %v2532 = vadd.f32 %v2530, %v2531
        %v2533 = vrot.slane %v2532, 2
        %v2534 = vadd.f32 %v2532, %v2533
        %v2535 = vrot.slane %v2534, 1
        %v2536 = vadd.f32 %v2534, %v2535
        %2537 = vst.msk [vmem:[#allocation4 + $0xa] sm:$0x1] %vm2456, %v2536
        %v2538 = vmul.f32 %v1824, %v2508
        %v2539 = vmul.f32 %v1826, %v2509
        %v2540 = vadd.f32 %v2538, %v2239
        %v2541 = vadd.f32 %v2539, %v2240
        %v2542 = vmul.f32 %v2540, %v2304
        %v2543 = vmul.f32 %v2541, %v2308
        %v2544 = vsel %vm1310, %v2542, 0.0
        %v2545 = vsel %vm1310, %v2543, 0.0
        %v2546 = vadd.f32 %v2544, %v2545
        %v2547 = vrot.slane %v2546, 4
        %v2548 = vadd.f32 %v2546, %v2547
        %v2549 = vrot.slane %v2548, 2
        %v2550 = vadd.f32 %v2548, %v2549
        %v2551 = vrot.slane %v2550, 1
        %v2552 = vadd.f32 %v2550, %v2551
        %2553 = vst.msk [vmem:[#allocation4 + $0x3] sm:$0x1] %vm2456, %v2552
        %v2554 = vmul.f32 %v1856, %v2524
        %v2555 = vmul.f32 %v1858, %v2525
        %v2556 = vadd.f32 %v2554, %v2255
        %v2557 = vadd.f32 %v2555, %v2256
        %v2558 = vmul.f32 %v2556, %v2392
        %v2559 = vmul.f32 %v2557, %v2396
        %v2560 = vsel %vm1310, %v2558, 0.0
        %v2561 = vsel %vm1310, %v2559, 0.0
        %v2562 = vadd.f32 %v2560, %v2561
        %v2563 = vrot.slane %v2562, 4
        %v2564 = vadd.f32 %v2562, %v2563
        %v2565 = vrot.slane %v2564, 2
        %v2566 = vadd.f32 %v2564, %v2565
        %v2567 = vrot.slane %v2566, 1
        %v2568 = vadd.f32 %v2566, %v2567
        %2569 = vst.msk [vmem:[#allocation4 + $0xb] sm:$0x1] %vm2456, %v2568
        %v2570 = vmul.f32 %v1828, %v2540
        %v2571 = vmul.f32 %v1830, %v2541
        %v2572 = vadd.f32 %v2570, %v2241
        %v2573 = vadd.f32 %v2571, %v2242
        %v2574 = vmul.f32 %v2572, %v2315
        %v2575 = vmul.f32 %v2573, %v2319
        %v2576 = vsel %vm1310, %v2574, 0.0
        %v2577 = vsel %vm1310, %v2575, 0.0
        %v2578 = vadd.f32 %v2576, %v2577
        %v2579 = vrot.slane %v2578, 4
        %v2580 = vadd.f32 %v2578, %v2579
        %v2581 = vrot.slane %v2580, 2
        %v2582 = vadd.f32 %v2580, %v2581
        %v2583 = vrot.slane %v2582, 1
        %v2584 = vadd.f32 %v2582, %v2583
        %2585 = vst.msk [vmem:[#allocation4 + $0x4] sm:$0x1] %vm2456, %v2584
        %v2586 = vmul.f32 %v1860, %v2556
        %v2587 = vmul.f32 %v1862, %v2557
        %v2588 = vadd.f32 %v2586, %v2257
        %v2589 = vadd.f32 %v2587, %v2258
        %v2590 = vmul.f32 %v2588, %v2403
        %v2591 = vmul.f32 %v2589, %v2407
        %v2592 = vsel %vm1310, %v2590, 0.0
        %v2593 = vsel %vm1310, %v2591, 0.0
        %v2594 = vadd.f32 %v2592, %v2593
        %v2595 = vrot.slane %v2594, 4
        %v2596 = vadd.f32 %v2594, %v2595
        %v2597 = vrot.slane %v2596, 2
        %v2598 = vadd.f32 %v2596, %v2597
        %v2599 = vrot.slane %v2598, 1
        %v2600 = vadd.f32 %v2598, %v2599
        %2601 = vst.msk [vmem:[#allocation4 + $0xc] sm:$0x1] %vm2456, %v2600
        %v2602 = vmul.f32 %v1832, %v2572
        %v2603 = vmul.f32 %v1834, %v2573
        %v2604 = vadd.f32 %v2602, %v2243
        %v2605 = vadd.f32 %v2603, %v2244
        %v2606 = vmul.f32 %v2604, %v2326
        %v2607 = vmul.f32 %v2605, %v2330
        %v2608 = vsel %vm1310, %v2606, 0.0
        %v2609 = vsel %vm1310, %v2607, 0.0
        %v2610 = vadd.f32 %v2608, %v2609
        %v2611 = vrot.slane %v2610, 4
        %v2612 = vadd.f32 %v2610, %v2611
        %v2613 = vrot.slane %v2612, 2
        %v2614 = vadd.f32 %v2612, %v2613
        %v2615 = vrot.slane %v2614, 1
        %v2616 = vadd.f32 %v2614, %v2615
        %2617 = vst.msk [vmem:[#allocation4 + $0x5] sm:$0x1] %vm2456, %v2616
        %v2618 = vmul.f32 %v1864, %v2588
        %v2619 = vmul.f32 %v1866, %v2589
        %v2620 = vadd.f32 %v2618, %v2259
        %v2621 = vadd.f32 %v2619, %v2260
        %v2622 = vmul.f32 %v2620, %v2414
        %v2623 = vmul.f32 %v2621, %v2418
        %v2624 = vsel %vm1310, %v2622, 0.0
        %v2625 = vsel %vm1310, %v2623, 0.0
        %v2626 = vadd.f32 %v2624, %v2625
        %v2627 = vrot.slane %v2626, 4
        %v2628 = vadd.f32 %v2626, %v2627
        %v2629 = vrot.slane %v2628, 2
        %v2630 = vadd.f32 %v2628, %v2629
        %v2631 = vrot.slane %v2630, 1
        %v2632 = vadd.f32 %v2630, %v2631
        %2633 = vst.msk [vmem:[#allocation4 + $0xd] sm:$0x1] %vm2456, %v2632
        %v2634 = vmul.f32 %v1836, %v2604
        %v2635 = vmul.f32 %v1838, %v2605
        %v2636 = vadd.f32 %v2634, %v2245
        %v2637 = vadd.f32 %v2635, %v2246
        %v2638 = vmul.f32 %v2636, %v2337
        %v2639 = vmul.f32 %v2637, %v2341
        %v2640 = vsel %vm1310, %v2638, 0.0
        %v2641 = vsel %vm1310, %v2639, 0.0
        %v2642 = vadd.f32 %v2640, %v2641
        %v2643 = vrot.slane %v2642, 4
        %v2644 = vadd.f32 %v2642, %v2643
        %v2645 = vrot.slane %v2644, 2
        %v2646 = vadd.f32 %v2644, %v2645
        %v2647 = vrot.slane %v2646, 1
        %v2648 = vadd.f32 %v2646, %v2647
        %2649 = vst.msk [vmem:[#allocation4 + $0x6] sm:$0x1] %vm2456, %v2648
        %v2650 = vmul.f32 %v1868, %v2620
        %v2651 = vmul.f32 %v1870, %v2621
        %v2652 = vadd.f32 %v2650, %v2261
        %v2653 = vadd.f32 %v2651, %v2262
        %v2654 = vmul.f32 %v2652, %v2425
        %v2655 = vmul.f32 %v2653, %v2429
        %v2656 = vsel %vm1310, %v2654, 0.0
        %v2657 = vsel %vm1310, %v2655, 0.0
        %v2658 = vadd.f32 %v2656, %v2657
        %v2659 = vrot.slane %v2658, 4
        %v2660 = vadd.f32 %v2658, %v2659
        %v2661 = vrot.slane %v2660, 2
        %v2662 = vadd.f32 %v2660, %v2661
        %v2663 = vrot.slane %v2662, 1
        %v2664 = vadd.f32 %v2662, %v2663
        %2665 = vst.msk [vmem:[#allocation4 + $0xe] sm:$0x1] %vm2456, %v2664
        %v2666 = vmul.f32 %v1840, %v2636
        %v2667 = vmul.f32 %v1842, %v2637
        %v2668 = vadd.f32 %v2666, %v2247
        %v2669 = vadd.f32 %v2667, %v2248
        %v2670 = vmul.f32 %v2668, %v2348
        %v2671 = vmul.f32 %v2669, %v2352
        %v2672 = vsel %vm1310, %v2670, 0.0
        %v2673 = vsel %vm1310, %v2671, 0.0
        %v2674 = vadd.f32 %v2672, %v2673
        %v2675 = vrot.slane %v2674, 4
        %v2676 = vadd.f32 %v2674, %v2675
        %v2677 = vrot.slane %v2676, 2
        %v2678 = vadd.f32 %v2676, %v2677
        %v2679 = vrot.slane %v2678, 1
        %v2680 = vadd.f32 %v2678, %v2679
        %2681 = vst.msk [vmem:[#allocation4 + $0x7] sm:$0x1] %vm2456, %v2680
        %v2682 = vmul.f32 %v1872, %v2652
        %v2683 = vmul.f32 %v1874, %v2653
        %v2684 = vadd.f32 %v2682, %v2263
        %v2685 = vadd.f32 %v2683, %v2264
        %v2686 = vmul.f32 %v2684, %v2436
        %v2687 = vmul.f32 %v2685, %v2440
        %v2688 = vsel %vm1310, %v2686, 0.0
        %v2689 = vsel %vm1310, %v2687, 0.0
        %v2690 = vadd.f32 %v2688, %v2689
        %v2691 = vrot.slane %v2690, 4
        %v2692 = vadd.f32 %v2690, %v2691
        %v2693 = vrot.slane %v2692, 2
        %v2694 = vadd.f32 %v2692, %v2693
        %v2695 = vrot.slane %v2694, 1
        %v2696 = vadd.f32 %v2694, %v2695
        %2697 = vst.msk [vmem:[#allocation4 + $0xf] sm:$0x1] %vm2456, %v2696
        %v2698 = vld [vmem:[#allocation4] sm:$0xff]
        %v2699 = vld [vmem:[#allocation4 + $0x8] sm:$0xff]
        %v2700 = vld [vmem:[%s763] sm:$0x1]
        %v2702 = vlaneseq
        %v2703 = vshrl.u32 %v2702, 7
        %v2704 = vsub.s32 0, %v2703
        %v2705 = vrot.slane %v2700, %v2704
        %v2707 = vmul.f32 %v1300, %v2705
        %v2708 = vmul.f32 %v1301, %v2705
        %v2709 = vadd.f32 %v2698, %v2707
        %v2710 = vadd.f32 %v2699, %v2708
        %v2711 = vxor.u32 %v988, 2147483648
        %v2712 = vxor.u32 %v993, 2147483648
        %v2713 = vmul.f32 %v2711, 1.442695
        %v2714 = vpow.pop %v2713
        %v2715 = vmul.f32 %v2712, 1.442695
        %v2716 = vpow.pop %v2715
        %v2717 = vadd.f32 %v2714, 1.0
        %v2718 = vadd.f32 %v2716, 1.0
        %v2719 = vrcp.pop %v2717
        %v2720 = vmul.f32 1.0, %v2719
        %v2721 = vrcp.pop %v2718
        %v2722 = vmul.f32 1.0, %v2721
        %v2723 = vmul.f32 %v988, %v2720
        %v2724 = vmul.f32 %v993, %v2722
        %v2725 = vmul.f32 %v2709, %v2723
        %v2726 = vmul.f32 %v2710, %v2724
        %v2727 = vld [vmem:[%s768] sm:$0xff]
        %v2728 = vld [vmem:[%s768 + $0x8] sm:$0xff]
        %v2729 = vld [vmem:[%s768 + $0x10] sm:$0xff]
        %v2730 = vld [vmem:[%s768 + $0x18] sm:$0xff]
        %v2731 = vld [vmem:[%s768 + $0x20] sm:$0xff]
        %v2732 = vld [vmem:[%s768 + $0x28] sm:$0xff]
        %v2733 = vld [vmem:[%s768 + $0x30] sm:$0xff]
        %v2734 = vld [vmem:[%s768 + $0x38] sm:$0xff]
        %v2736 = vsel %vm1310, %v2725, 0
        %v2739 = vsel %vm1310, %v2726, 0
        %2741 = vmatprep.subr.mxu0 0.0
        %2742 = vmatpush1.msra.mxu0 %v2727
        %2743 = vmatprep.subr.mxu0 0.0
        %2744 = vmatpush1.msra.mxu0 %v2728
        %2745 = vmatprep.subr.mxu0 0.0
        %2746 = vmatpush1.msra.mxu0 %v2729
        %2747 = vmatprep.subr.mxu0 0.0
        %2748 = vmatpush1.msra.mxu0 %v2730
        %2749 = vmatprep.subr.mxu0 0.0
        %2750 = vmatpush1.msra.mxu0 %v2731
        %2751 = vmatprep.subr.mxu0 0.0
        %2752 = vmatpush1.msra.mxu0 %v2732
        %2753 = vmatprep.subr.mxu0 0.0
        %2754 = vmatpush1.msra.mxu0 %v2733
        %2755 = vmatprep.subr.mxu0 0.0
        %2756 = vmatpush1.msra.mxu0 %v2734
        %2757 = vmatprep.subr.mxu0 0.0
        %2758 = vmatpush1.msra.mxu0 0.0
        %2759 = vmatprep.subr.mxu0 0.0
        %2760 = vmatpush1.msra.mxu0 0.0
        %2761 = vmatprep.subr.mxu0 0.0
        %2762 = vmatpush1.msra.mxu0 0.0
        %2763 = vmatprep.subr.mxu0 0.0
        %2764 = vmatpush1.msra.mxu0 0.0
        %2765 = vmatprep.subr.mxu0 0.0
        %2766 = vmatpush1.msra.mxu0 0.0
        %2767 = vmatprep.subr.mxu0 0.0
        %2768 = vmatpush1.msra.mxu0 0.0
        %2769 = vmatprep.subr.mxu0 0.0
        %2770 = vmatpush1.msra.mxu0 0.0
        %2771 = vmatprep.subr.mxu0 0.0
        %2772 = vmatpush1.msra.mxu0 0.0
        %2773 = vmatprep.subr.mxu0 0.0
        %2774 = vmatpush1.msra.mxu0 0.0
        %2775 = vmatprep.subr.mxu0 0.0
        %2776 = vmatpush1.msra.mxu0 0.0
        %2777 = vmatprep.subr.mxu0 0.0
        %2778 = vmatpush1.msra.mxu0 0.0
        %2779 = vmatprep.subr.mxu0 0.0
        %2780 = vmatpush1.msra.mxu0 0.0
        %2781 = vmatprep.subr.mxu0 0.0
        %2782 = vmatpush1.msra.mxu0 0.0
        %2783 = vmatprep.subr.mxu0 0.0
        %2784 = vmatpush1.msra.mxu0 0.0
        %2785 = vmatprep.subr.mxu0 0.0
        %2786 = vmatpush1.msra.mxu0 0.0
        %2787 = vmatprep.subr.mxu0 0.0
        %2788 = vmatpush1.msra.mxu0 0.0
        %2789 = vmatprep.subr.mxu0 0.0
        %2790 = vmatpush1.msra.mxu0 0.0
        %2791 = vmatprep.subr.mxu0 0.0
        %2792 = vmatpush1.msra.mxu0 0.0
        %2793 = vmatprep.subr.mxu0 0.0
        %2794 = vmatpush1.msra.mxu0 0.0
        %2795 = vmatprep.subr.mxu0 0.0
        %2796 = vmatpush1.msra.mxu0 0.0
        %2797 = vmatprep.subr.mxu0 0.0
        %2798 = vmatpush1.msra.mxu0 0.0
        %2799 = vmatprep.subr.mxu0 0.0
        %2800 = vmatpush1.msra.mxu0 0.0
        %2801 = vmatprep.subr.mxu0 0.0
        %2802 = vmatpush1.msra.mxu0 0.0
        %2803 = vmatprep.subr.mxu0 0.0
        %2804 = vmatpush1.msra.mxu0 0.0
        %2805 = vmatprep.mubr.f32.mxu0 0.0
        %2806 = vmatmul.mubr.f32.gmra.mrb[0].mxu0 %v2736
        %v2807 = vpop.f32.mrb[0].mxu0
        %v2808 = vadd.f32 0.0, %v2807
        %v2809 = vpop.f32.mrb[0].mxu0
        %2810 = vmatprep.mubr.f32.mxu0 0.0
        %2811 = vmatmul.mubr.f32.gmra.mrb[0].mxu0 %v2739
        %v2812 = vpop.f32.mrb[0].mxu0
        %v2813 = vadd.f32 0.0, %v2812
        %v2814 = vpop.f32.mrb[0].mxu0
        %2815 = vdwg.mxu0
        %2816 = vst.msk [vmem:[#allocation2] sm:$0xff] %vm788, %v2808
        %2817 = vst.msk [vmem:[#allocation2 + $0x8] sm:$0xff] %vm788, %v2813
        %2818 = vst.msk [vmem:[#allocation3] sm:$0xff] %vm788, %v784
        %2819 = vst.msk [vmem:[#allocation3 + $0x8] sm:$0xff] %vm788, %v785
        %p2820 = scmp.eq.s32.totalorder %s30, 1
        // Predicated region
        $region97: #{mamba_lm_forward.1} parent=91 // pred_check
          %p2821 = pneg %p2820
        $region98: #{mamba_lm_forward.1} parent=91 // pred_check_branch
          %2823 = sbr.rel (%p2821) target = $region100
        $region99: #{mamba_lm_forward.1} parent=91 // pred_region
          %v2824 = vadd.f32 %v2808, %v784
          %v2825 = vadd.f32 %v2813, %v785
          %v2826 = vld [vmem:[%s15] sm:$0x1]
          %v2827 = vld [vmem:[%s16] sm:$0x1]
          %v2828 = vsel %vm788, %v2824, 0.0
          %2829 = vadd.xlane.f32.xlu0 %v2828
          %v2830 = vpop.xlane.xlu0 %2829
          %v2831 = vsel %vm788, %v2825, 0.0
          %2832 = vadd.xlane.f32.xlu0 %v2831
          %v2833 = vpop.xlane.xlu0 %2832
          %v2834 = vmul.f32 %v2830, %v795
          %v2835 = vmul.f32 %v2833, %v795
          %v2836 = vsub.f32 %v2824, %v2834
          %v2837 = vsub.f32 %v2825, %v2835
          %v2838 = vmul.f32 %v2836, %v2836
          %v2839 = vmul.f32 %v2837, %v2837
          %v2840 = vsel %vm788, %v2838, 0.0
          %2841 = vadd.xlane.f32.xlu0 %v2840
          %v2842 = vpop.xlane.xlu0 %2841
          %v2843 = vsel %vm788, %v2839, 0.0
          %2844 = vadd.xlane.f32.xlu0 %v2843
          %v2845 = vpop.xlane.xlu0 %2844
          %v2846 = vmul.f32 %v2842, %v795
          %v2847 = vmul.f32 %v2845, %v795
          %v2848 = vadd.f32 %v2846, 1e-05
          %v2849 = vadd.f32 %v2847, 1e-05
          %v2850 = vrsqrt.pop %v2848
          %v2851 = vrsqrt.pop %v2849
          %v2852 = vmul.f32 %v2836, %v2850
          %v2853 = vmul.f32 %v2837, %v2851
          %v2855 = vlaneseq
          %v2856 = vshrl.u32 %v2855, 7
          %v2857 = vsub.s32 0, %v2856
          %v2858 = vrot.slane %v2826, %v2857
          %v2860 = vmul.f32 %v2852, %v2858
          %v2861 = vmul.f32 %v2853, %v2858
          %v2863 = vlaneseq
          %v2864 = vshrl.u32 %v2863, 7
          %v2865 = vsub.s32 0, %v2864
          %v2866 = vrot.slane %v2827, %v2865
          %v2868 = vadd.f32 %v2860, %v2866
          %v2869 = vadd.f32 %v2861, %v2866
          %v2870 = vld [vmem:[%s17] sm:$0xff]
          %v2871 = vld [vmem:[%s17 + $0x8] sm:$0xff]
          %v2872 = vld [vmem:[%s17 + $0x10] sm:$0xff]
          %v2873 = vld [vmem:[%s17 + $0x18] sm:$0xff]
          %v2875 = vsel %vm788, %v2868, 0
          %v2878 = vsel %vm788, %v2869, 0
          %2880 = vmatprep.subr.mxu0 0.0
          %2881 = vmatpush1.msra.mxu0 %v2870
          %2882 = vmatprep.subr.mxu0 0.0
          %2883 = vmatpush1.msra.mxu0 %v2871
          %2884 = vmatprep.subr.mxu0 0.0
          %2885 = vmatpush1.msra.mxu0 %v2872
          %2886 = vmatprep.subr.mxu0 0.0
          %2887 = vmatpush1.msra.mxu0 %v2873
          %2888 = vmatprep.subr.mxu0 0.0
          %2889 = vmatpush1.msra.mxu0 0.0
          %2890 = vmatprep.subr.mxu0 0.0
          %2891 = vmatpush1.msra.mxu0 0.0
          %2892 = vmatprep.subr.mxu0 0.0
          %2893 = vmatpush1.msra.mxu0 0.0
          %2894 = vmatprep.subr.mxu0 0.0
          %2895 = vmatpush1.msra.mxu0 0.0
          %2896 = vmatprep.subr.mxu0 0.0
          %2897 = vmatpush1.msra.mxu0 0.0
          %2898 = vmatprep.subr.mxu0 0.0
          %2899 = vmatpush1.msra.mxu0 0.0
          %2900 = vmatprep.subr.mxu0 0.0
          %2901 = vmatpush1.msra.mxu0 0.0
          %2902 = vmatprep.subr.mxu0 0.0
          %2903 = vmatpush1.msra.mxu0 0.0
          %2904 = vmatprep.subr.mxu0 0.0
          %2905 = vmatpush1.msra.mxu0 0.0
          %2906 = vmatprep.subr.mxu0 0.0
          %2907 = vmatpush1.msra.mxu0 0.0
          %2908 = vmatprep.subr.mxu0 0.0
          %2909 = vmatpush1.msra.mxu0 0.0
          %2910 = vmatprep.subr.mxu0 0.0
          %2911 = vmatpush1.msra.mxu0 0.0
          %2912 = vmatprep.subr.mxu0 0.0
          %2913 = vmatpush1.msra.mxu0 0.0
          %2914 = vmatprep.subr.mxu0 0.0
          %2915 = vmatpush1.msra.mxu0 0.0
          %2916 = vmatprep.subr.mxu0 0.0
          %2917 = vmatpush1.msra.mxu0 0.0
          %2918 = vmatprep.subr.mxu0 0.0
          %2919 = vmatpush1.msra.mxu0 0.0
          %2920 = vmatprep.subr.mxu0 0.0
          %2921 = vmatpush1.msra.mxu0 0.0
          %2922 = vmatprep.subr.mxu0 0.0
          %2923 = vmatpush1.msra.mxu0 0.0
          %2924 = vmatprep.subr.mxu0 0.0
          %2925 = vmatpush1.msra.mxu0 0.0
          %2926 = vmatprep.subr.mxu0 0.0
          %2927 = vmatpush1.msra.mxu0 0.0
          %2928 = vmatprep.subr.mxu0 0.0
          %2929 = vmatpush1.msra.mxu0 0.0
          %2930 = vmatprep.subr.mxu0 0.0
          %2931 = vmatpush1.msra.mxu0 0.0
          %2932 = vmatprep.subr.mxu0 0.0
          %2933 = vmatpush1.msra.mxu0 0.0
          %2934 = vmatprep.subr.mxu0 0.0
          %2935 = vmatpush1.msra.mxu0 0.0
          %2936 = vmatprep.subr.mxu0 0.0
          %2937 = vmatpush1.msra.mxu0 0.0
          %2938 = vmatprep.subr.mxu0 0.0
          %2939 = vmatpush1.msra.mxu0 0.0
          %2940 = vmatprep.subr.mxu0 0.0
          %2941 = vmatpush1.msra.mxu0 0.0
          %2942 = vmatprep.subr.mxu0 0.0
          %2943 = vmatpush1.msra.mxu0 0.0
          %2944 = vmatprep.mubr.f32.mxu0 0.0
          %2945 = vmatmul.mubr.f32.gmra.mrb[0].mxu0 %v2875
          %v2946 = vpop.f32.mrb[0].mxu0
          %v2947 = vadd.f32 0.0, %v2946
          %v2948 = vpop.f32.mrb[0].mxu0
          %2949 = vmatprep.mubr.f32.mxu0 0.0
          %2950 = vmatmul.mubr.f32.gmra.mrb[0].mxu0 %v2878
          %v2951 = vpop.f32.mrb[0].mxu0
          %v2952 = vadd.f32 0.0, %v2951
          %v2953 = vpop.f32.mrb[0].mxu0
          %2954 = vdwg.mxu0
          %2955 = vst.msk [vmem:[#allocation5] sm:$0xff] %vm1310, %v2947
          %2956 = vst.msk [vmem:[#allocation5 + $0x8] sm:$0xff] %vm1310, %v2952
        $region100: #{mamba_lm_forward.1} parent=91 // pred_fallthru
          _
        // Predicated region
        $region101: #{mamba_lm_forward.1} parent=91 // pred_check
          %p2957 = pneg %p486
        $region102: #{mamba_lm_forward.1} parent=91 // pred_check_branch
          %2959 = sbr.rel (%p2957) target = $region104
        $region103: #{mamba_lm_forward.1} parent=91 // pred_region
          %s2961 = ssub.s32 256, 256
          %2962 = vsyncadd [#allocation6], %s2961
          %s2963 = sshll.u32 [#allocation5], 4
          %s2964 = int_to_ptr.vmem [resolvable:$true] %s2963
          %2969 = dma.vmem_to_hbm [thread:$0]  %s2964, 256, %s18, [#allocation6], 128, 128, 8
        $region104: #{mamba_lm_forward.1} parent=91 // pred_fallthru
          _
        // Predicated region
        $region105: #{mamba_lm_forward.1} parent=91 // pred_check
          %p2970 = pneg %p486
        $region106: #{mamba_lm_forward.1} parent=91 // pred_check_branch
          %2972 = sbr.rel (%p2970) target = $region108
        $region107: #{mamba_lm_forward.1} parent=91 // pred_region
          %2973 = dma.done [#allocation6], 256
        $region108: #{mamba_lm_forward.1} parent=91 // pred_fallthru
          _
      $region92: #{mamba_lm_forward.1} parent=5 // pred_fallthru
        _
      %p2974 = scmp.le.s32.totalorder 2, %s25
      // Predicated region
      $region109: #{mamba_lm_forward.1} parent=5 // pred_check
        %p2975 = pneg %p2974
      $region110: #{mamba_lm_forward.1} parent=5 // pred_check_branch
        %2977 = sbr.rel (%p2975) target = $region112
      $region111: #{mamba_lm_forward.1} parent=5 // pred_region
        %s2978 = ssub.s32 %s25, 2
      $region112: #{mamba_lm_forward.1} parent=5 // pred_fallthru
        _
    $region6: #{mamba_lm_forward.1} parent=1 // loop_footer
      %s29 = sadd.s32 1, %s25
    $region7: #{mamba_lm_forward.1} parent=1 // loop_footer_branch
      %24 = sbr.rel target = $region3
    $region8: #{mamba_lm_forward.1} parent=1 // loop_exit
      _
    %2979 = vsyncpa [#allocation6], 1
    %s2980 = scalar_lea.sflag [#allocation6], 1
    %2981 = vsyncpa %s2980, 1

</llo_original>
